<compile_context>
chip_gen: v5e
topology: v5e:2x2
jax: 0.10.0
libtpu: 0.0.40
codegen_flags: <defaults>
</compile_context>

<pallas_src>
import math
import functools

import jax
import jax.numpy as jnp
from jax.experimental import pallas as pl
from jax.experimental.pallas import tpu as pltpu

# ---- mini-BERT config (synthetic weights) ----
VOCAB = 64
MAX_POS = 16
TYPE_VOCAB = 2
HIDDEN = 64
NUM_HEADS = 4
HEAD_DIM = HIDDEN // NUM_HEADS
INTERMEDIATE = 128
NUM_LAYERS = 2
LN_EPS = 1e-12
MASK_BIAS = -1e9
MXU_DTYPE = jnp.bfloat16          # bf16 MXU inputs, f32 accumulation


def _gelu(x):
    # TODO(synk): HF BERT uses exact erf-GELU; tanh approximation used for robust Mosaic lowering.
    c = math.sqrt(2.0 / math.pi)
    return 0.5 * x * (1.0 + jnp.tanh(c * (x + 0.044715 * x * x * x)))


def _layernorm(x, g, b):
    mean = jnp.mean(x, axis=-1, keepdims=True)
    var = jnp.mean((x - mean) ** 2, axis=-1, keepdims=True)
    return (x - mean) * jax.lax.rsqrt(var + LN_EPS) * g + b


# ------------------------- fused encoder kernel -------------------------

def fused_encoder_kernel(x_ref, mask_ref, tpos_ref,          # (2BS,H) f32, (2B,S) f32, (2B,1) i32
                         emb_g_ref, emb_b_ref,                # (1,H)
                         wqkv_ref, bqkv_ref,                  # (L,H,3H) bf16, (L,1,3H) f32
                         wo_ref, bo_ref,                      # (L,NH,HD,H) bf16, (L,1,H) f32
                         ln1g_ref, ln1b_ref,                  # (L,1,H)
                         wi_ref, bi_ref,                      # (L,H,I) bf16, (L,1,I) f32
                         wo2_ref, bo2_ref,                    # (L,I,H) bf16, (L,1,H) f32
                         ln2g_ref, ln2b_ref,                  # (L,1,H)
                         out_ref,                             # (2B,H) f32
                         *, nsamp, seq):
    n_rows = nsamp * seq
    scale = 1.0 / math.sqrt(HEAD_DIM)

    # Key-padding additive bias built in-kernel from the small per-sample mask.
    bias = jnp.where(mask_ref[...] > 0.5, 0.0, MASK_BIAS).astype(jnp.float32)
    bias = bias.reshape(nsamp, 1, seq)                        # broadcast over query axis

    # Embedding LayerNorm on the merged (2*B*S, H) slab.
    h = _layernorm(x_ref[...], emb_g_ref[...], emb_b_ref[...])

    for l in range(NUM_LAYERS):                               # static unroll; weights resident in VMEM
        # ---- fused QKV: one lane-dense 2D matmul, cols ordered [Q-heads|K-heads|V-heads] ----
        h_bf = h.astype(MXU_DTYPE)
        qkv = jnp.dot(h_bf, wqkv_ref[l], preferred_element_type=jnp.float32) + bqkv_ref[l]
        q = (qkv[:, :HIDDEN] * scale).astype(MXU_DTYPE)       # pre-scale Q once
        k = qkv[:, HIDDEN:2 * HIDDEN].astype(MXU_DTYPE)
        v = qkv[:, 2 * HIDDEN:].astype(MXU_DTYPE)

        # ---- per-sample attention: (nsamp, S, S) scores per head (no (B*S)^2 waste) ----
        wo_l = wo_ref[l]                                      # (NH, HD, H) bf16, loaded once per layer
        attn = jnp.zeros((n_rows, HIDDEN), jnp.float32)
        for hd in range(NUM_HEADS):                           # static unroll over heads
            sl = slice(hd * HEAD_DIM, (hd + 1) * HEAD_DIM)
            q_h = q[:, sl].reshape(nsamp, seq, HEAD_DIM)
            k_h = k[:, sl].reshape(nsamp, seq, HEAD_DIM)
            v_h = v[:, sl].reshape(nsamp, seq, HEAD_DIM)
            s = jnp.einsum('bqd,bkd->bqk', q_h, k_h,
                           preferred_element_type=jnp.float32) + bias
            m = jnp.max(s, axis=-1, keepdims=True)
            p = jnp.exp(s - m)
            p = p * pl.reciprocal(jnp.sum(p, axis=-1, keepdims=True), approx=True)
            ctx = jnp.einsum('bqk,bkd->bqd', p.astype(MXU_DTYPE), v_h,
                             preferred_element_type=jnp.float32)
            # sum_h ctx_h @ Wo_h  ==  concat(heads) @ Wo
            attn = attn + jnp.dot(ctx.reshape(n_rows, HEAD_DIM).astype(MXU_DTYPE),
                                  wo_l[hd], preferred_element_type=jnp.float32)
        attn = attn + bo_ref[l]
        h = _layernorm(attn + h, ln1g_ref[l], ln1b_ref[l])

        # ---- FFN ----
        ff = _gelu(jnp.dot(h.astype(MXU_DTYPE), wi_ref[l],
                           preferred_element_type=jnp.float32) + bi_ref[l])
        ff = jnp.dot(ff.astype(MXU_DTYPE), wo2_ref[l],
                     preferred_element_type=jnp.float32) + bo2_ref[l]
        h = _layernorm(ff + h, ln2g_ref[l], ln2b_ref[l])

    # ---- token gather via one-hot matmul + F.normalize(p=2, dim=1) ----
    row = jax.lax.broadcasted_iota(jnp.int32, (nsamp, 1), 0)
    target = tpos_ref[...] + row * seq                        # absolute row index per sample
    col = jax.lax.broadcasted_iota(jnp.int32, (nsamp, n_rows), 1)
    sel = (col == target).astype(jnp.float32)                 # (nsamp, n_rows) one-hot
    vecs = jnp.dot(sel, h, preferred_element_type=jnp.float32)    # (nsamp, H) exact f32 gather
    ssq = jnp.sum(vecs * vecs, axis=-1, keepdims=True)
    out_ref[...] = vecs * jax.lax.rsqrt(jnp.maximum(ssq, 1e-24))  # eps matches F.normalize(eps=1e-12)


# ------------------------- wrapper -------------------------

def fused_bert_contrastive(packed, x, mask, tpos):
    # x: (2*B*S, H) f32 summed embeddings; mask: (2B, S) f32; tpos: (2B, 1) int32
    n_rows, H = x.shape
    nsamp = mask.shape[0]
    seq = n_rows // nsamp

    vmem = lambda: pl.BlockSpec(memory_space=pltpu.MemorySpace.VMEM)
    kernel = functools.partial(fused_encoder_kernel, nsamp=nsamp, seq=seq)
    return pl.pallas_call(
        kernel,
        out_shape=jax.ShapeDtypeStruct((nsamp, H), jnp.float32),
        in_specs=[vmem() for _ in range(17)],
        out_specs=vmem(),
    )(x, mask, tpos,
      packed['emb_ln_g'], packed['emb_ln_b'],
      packed['wqkv'], packed['bqkv'],
      packed['wo'], packed['bo'], packed['ln1_g'], packed['ln1_b'],
      packed['wi'], packed['bi'], packed['wo2'], packed['bo2'],
      packed['ln2_g'], packed['ln2_b'])


# ------------------------- params & model glue -------------------------

def init_params(key):
    def dense(k, shape, scale=0.02):
        return scale * jax.random.normal(k, shape, dtype=jnp.float32)

    keys = jax.random.split(key, 3 + NUM_LAYERS)
    params = {
        'word_emb': dense(keys[0], (VOCAB, HIDDEN)),
        'pos_emb': dense(keys[1], (MAX_POS, HIDDEN)),
        'type_emb': dense(keys[2], (TYPE_VOCAB, HIDDEN)),
        'emb_ln_g': jnp.ones((1, HIDDEN), jnp.float32),
        'emb_ln_b': jnp.zeros((1, HIDDEN), jnp.float32),
        'layers': [],
    }
    for l in range(NUM_LAYERS):
        lk = jax.random.split(keys[3 + l], 6)
        params['layers'].append({
            'wq': dense(lk[0], (HIDDEN, HIDDEN)), 'bq': jnp.zeros((1, HIDDEN), jnp.float32),
            'wk': dense(lk[1], (HIDDEN, HIDDEN)), 'bk': jnp.zeros((1, HIDDEN), jnp.float32),
            'wv': dense(lk[2], (HIDDEN, HIDDEN)), 'bv': jnp.zeros((1, HIDDEN), jnp.float32),
            'wo': dense(lk[3], (HIDDEN, HIDDEN)), 'bo': jnp.zeros((1, HIDDEN), jnp.float32),
            'ln1_g': jnp.ones((1, HIDDEN), jnp.float32), 'ln1_b': jnp.zeros((1, HIDDEN), jnp.float32),
            'wi': dense(lk[4], (HIDDEN, INTERMEDIATE)), 'bi': jnp.zeros((1, INTERMEDIATE), jnp.float32),
            'wo2': dense(lk[5], (INTERMEDIATE, HIDDEN)), 'bo2': jnp.zeros((1, HIDDEN), jnp.float32),
            'ln2_g': jnp.ones((1, HIDDEN), jnp.float32), 'ln2_b': jnp.zeros((1, HIDDEN), jnp.float32),
        })
    return params


def pack_params(params):
    """Stack per-layer weights for the fused kernel (done once, outside the kernel).
    wqkv is (L, H, 3H) with columns ordered [Q-heads | K-heads | V-heads] so the
    kernel's Q/K/V are static lane slices; matmul weights are cast to bf16."""
    wqkv, bqkv, wo, bo, ln1g, ln1b = [], [], [], [], [], []
    wi, bi, wo2, bo2, ln2g, ln2b = [], [], [], [], [], []
    for lp in params['layers']:
        wqkv.append(jnp.concatenate([lp['wq'], lp['wk'], lp['wv']], axis=1))   # (H, 3H)
        bqkv.append(jnp.concatenate([lp['bq'], lp['bk'], lp['bv']], axis=1))   # (1, 3H)
        wo.append(lp['wo'].reshape(NUM_HEADS, HEAD_DIM, HIDDEN))               # rows split per head
        bo.append(lp['bo']); ln1g.append(lp['ln1_g']); ln1b.append(lp['ln1_b'])
        wi.append(lp['wi']); bi.append(lp['bi'])
        wo2.append(lp['wo2']); bo2.append(lp['bo2'])
        ln2g.append(lp['ln2_g']); ln2b.append(lp['ln2_b'])

    stk = lambda xs, dt: jnp.stack(xs).astype(dt)
    return {
        'emb_ln_g': params['emb_ln_g'], 'emb_ln_b': params['emb_ln_b'],
        'wqkv': stk(wqkv, MXU_DTYPE), 'bqkv': stk(bqkv, jnp.float32),
        'wo': stk(wo, MXU_DTYPE), 'bo': stk(bo, jnp.float32),
        'ln1_g': stk(ln1g, jnp.float32), 'ln1_b': stk(ln1b, jnp.float32),
        'wi': stk(wi, MXU_DTYPE), 'bi': stk(bi, jnp.float32),
        'wo2': stk(wo2, MXU_DTYPE), 'bo2': stk(bo2, jnp.float32),
        'ln2_g': stk(ln2g, jnp.float32), 'ln2_b': stk(ln2b, jnp.float32),
    }


def _embed(params, input_ids):
    # Vocab/position/type embedding gather stays in the XLA wrapper (data-dependent HBM gather).
    B, S = input_ids.shape
    return (params['word_emb'][input_ids]
            + params['pos_emb'][:S][None, :, :]
            + params['type_emb'][0][None, None, :]).astype(jnp.float32)       # token_type = 0


def bert_contrastive_forward(params, packed,
                             input_ids1, attention_mask1, token_pos1,
                             input_ids2, attention_mask2, token_pos2):
    B, S = input_ids1.shape
    x = jnp.concatenate([_embed(params, input_ids1).reshape(B * S, HIDDEN),
                         _embed(params, input_ids2).reshape(B * S, HIDDEN)], axis=0)   # (2BS, H)
    mask = jnp.concatenate([attention_mask1, attention_mask2], axis=0).astype(jnp.float32)  # (2B, S)
    tpos = jnp.concatenate([token_pos1, token_pos2]).astype(jnp.int32).reshape(2 * B, 1)
    out = fused_bert_contrastive(packed, x, mask, tpos)                        # (2B, H)
    return out[:B], out[B:]


# ------------------------- pure-JAX reference (f32) -------------------------

def _reference_encoder(params, input_ids, attention_mask, token_pos):
    B, S = input_ids.shape
    h = _layernorm(_embed(params, input_ids), params['emb_ln_g'], params['emb_ln_b'])
    bias = jnp.where(attention_mask > 0.5, 0.0, MASK_BIAS)[:, None, None, :]
    for lp in params['layers']:
        split = lambda x: x.reshape(B, S, NUM_HEADS, HEAD_DIM).transpose(0, 2, 1, 3)
        q = split(h @ lp['wq'] + lp['bq'])
        k = split(h @ lp['wk'] + lp['bk'])
        v = split(h @ lp['wv'] + lp['bv'])
        s = jnp.einsum('bnqd,bnkd->bnqk', q, k) / math.sqrt(HEAD_DIM) + bias
        p = jax.nn.softmax(s, axis=-1)
        ctx = jnp.einsum('bnqk,bnkd->bnqd', p, v).transpose(0, 2, 1, 3).reshape(B, S, HIDDEN)
        h = _layernorm(ctx @ lp['wo'] + lp['bo'] + h, lp['ln1_g'], lp['ln1_b'])
        ff = _gelu(h @ lp['wi'] + lp['bi']) @ lp['wo2'] + lp['bo2']
        h = _layernorm(ff + h, lp['ln2_g'], lp['ln2_b'])
    vecs = h[jnp.arange(B), token_pos]
    return vecs / jnp.maximum(jnp.linalg.norm(vecs, axis=1, keepdims=True), 1e-12)


if __name__ == "__main__":
    key = jax.random.PRNGKey(0)
    kp, k1, k2, k3, k4 = jax.random.split(key, 5)
    params = init_params(kp)
    packed = pack_params(params)

    B, S = 2, 8
    input_ids1 = jax.random.randint(k1, (B, S), 0, VOCAB, dtype=jnp.int32)
    input_ids2 = jax.random.randint(k2, (B, S), 0, VOCAB, dtype=jnp.int32)
    attention_mask1 = jnp.ones((B, S), jnp.float32)
    attention_mask2 = jnp.ones((B, S), jnp.float32)
    token_pos1 = jax.random.randint(k3, (B,), 0, S, dtype=jnp.int32)
    token_pos2 = jax.random.randint(k4, (B,), 0, S, dtype=jnp.int32)

    fwd = jax.jit(bert_contrastive_forward)
    v1, v2 = fwd(params, packed,
                 input_ids1, attention_mask1, token_pos1,
                 input_ids2, attention_mask2, token_pos2)
    jax.block_until_ready((v1, v2))

    # Pure-JAX f32 reference (same GELU approximation; exact softmax).
    r1 = _reference_encoder(params, input_ids1, attention_mask1, token_pos1)
    r2 = _reference_encoder(params, input_ids2, attention_mask2, token_pos2)

    assert v1.shape == (B, HIDDEN) and v2.shape == (B, HIDDEN)
    assert bool(jnp.all(jnp.isfinite(v1))) and bool(jnp.all(jnp.isfinite(v2)))
    assert bool(jnp.all(jnp.abs(jnp.linalg.norm(v1, axis=1) - 1.0) < 1e-2))
    assert bool(jnp.all(jnp.abs(jnp.linalg.norm(v2, axis=1) - 1.0) < 1e-2))
    assert float(jnp.max(jnp.abs(v1 - r1))) < 5e-2   # bf16-MXU / approx-reciprocal drift budget
    assert float(jnp.max(jnp.abs(v2 - r2))) < 5e-2
    print("KERNEL_OK")
</pallas_src>

<mosaic_0001>
module attributes {stable_mosaic.version = 11 : i64} {
  func.func @fused_encoder_kernel(%arg0: memref<32x64xf32, #tpu.memory_space<vmem>>, %arg1: memref<4x8xf32, #tpu.memory_space<vmem>>, %arg2: memref<4x1xi32, #tpu.memory_space<vmem>>, %arg3: memref<1x64xf32, #tpu.memory_space<vmem>>, %arg4: memref<1x64xf32, #tpu.memory_space<vmem>>, %arg5: memref<2x64x192xbf16, #tpu.memory_space<vmem>>, %arg6: memref<2x1x192xf32, #tpu.memory_space<vmem>>, %arg7: memref<2x4x16x64xbf16, #tpu.memory_space<vmem>>, %arg8: memref<2x1x64xf32, #tpu.memory_space<vmem>>, %arg9: memref<2x1x64xf32, #tpu.memory_space<vmem>>, %arg10: memref<2x1x64xf32, #tpu.memory_space<vmem>>, %arg11: memref<2x64x128xbf16, #tpu.memory_space<vmem>>, %arg12: memref<2x1x128xf32, #tpu.memory_space<vmem>>, %arg13: memref<2x128x64xbf16, #tpu.memory_space<vmem>>, %arg14: memref<2x1x64xf32, #tpu.memory_space<vmem>>, %arg15: memref<2x1x64xf32, #tpu.memory_space<vmem>>, %arg16: memref<2x1x64xf32, #tpu.memory_space<vmem>>, %arg17: memref<4x64xf32, #tpu.memory_space<vmem>>) attributes {dimension_semantics = [], scalar_prefetch = 0 : i64, scratch_operands = 0 : i64, tpu.core_type = #tpu.core_type<tc>} {
    %c0 = arith.constant 0 : index
    %c0_0 = arith.constant 0 : index
    %0 = vector.load %arg1[%c0, %c0_0] : memref<4x8xf32, #tpu.memory_space<vmem>>, vector<4x8xf32>
    %cst = arith.constant 5.000000e-01 : f32
    %1 = vector.broadcast %cst : f32 to vector<4x8xf32>
    %2 = arith.cmpf ogt, %0, %1 : vector<4x8xf32>
    %cst_1 = arith.constant 0.000000e+00 : f32
    %cst_2 = arith.constant -1.000000e+09 : f32
    %3 = vector.broadcast %cst_1 : f32 to vector<4x8xf32>
    %4 = vector.broadcast %cst_2 : f32 to vector<4x8xf32>
    %5 = arith.select %2, %3, %4 : vector<4x8xi1>, vector<4x8xf32>
    %6 = vector.shape_cast %5 : vector<4x8xf32> to vector<4x1x8xf32>
    %c0_3 = arith.constant 0 : index
    %c0_4 = arith.constant 0 : index
    %7 = vector.load %arg0[%c0_3, %c0_4] : memref<32x64xf32, #tpu.memory_space<vmem>>, vector<32x64xf32>
    %c0_5 = arith.constant 0 : index
    %c0_6 = arith.constant 0 : index
    %8 = vector.load %arg3[%c0_5, %c0_6] : memref<1x64xf32, #tpu.memory_space<vmem>>, vector<1x64xf32>
    %c0_7 = arith.constant 0 : index
    %c0_8 = arith.constant 0 : index
    %9 = vector.load %arg4[%c0_7, %c0_8] : memref<1x64xf32, #tpu.memory_space<vmem>>, vector<1x64xf32>
    %cst_9 = arith.constant dense<0.000000e+00> : vector<32xf32>
    %10 = vector.multi_reduction <add>, %7, %cst_9 [1] : vector<32x64xf32> to vector<32xf32>
    %11 = vector.shape_cast %10 : vector<32xf32> to vector<32x1xf32>
    %cst_10 = arith.constant 6.400000e+01 : f32
    %12 = vector.broadcast %cst_10 : f32 to vector<32x1xf32>
    %13 = arith.divf %11, %12 : vector<32x1xf32>
    %14 = vector.broadcast %13 : vector<32x1xf32> to vector<32x64xf32>
    %15 = arith.subf %7, %14 : vector<32x64xf32>
    %16 = arith.mulf %15, %15 : vector<32x64xf32>
    %cst_11 = arith.constant dense<0.000000e+00> : vector<32xf32>
    %17 = vector.multi_reduction <add>, %16, %cst_11 [1] : vector<32x64xf32> to vector<32xf32>
    %18 = vector.shape_cast %17 : vector<32xf32> to vector<32x1xf32>
    %cst_12 = arith.constant 6.400000e+01 : f32
    %19 = vector.broadcast %cst_12 : f32 to vector<32x1xf32>
    %20 = arith.divf %18, %19 : vector<32x1xf32>
    %21 = vector.broadcast %13 : vector<32x1xf32> to vector<32x64xf32>
    %22 = arith.subf %7, %21 : vector<32x64xf32>
    %cst_13 = arith.constant 9.99999996E-13 : f32
    %23 = vector.broadcast %cst_13 : f32 to vector<32x1xf32>
    %24 = arith.addf %20, %23 : vector<32x1xf32>
    %25 = math.rsqrt %24 : vector<32x1xf32>
    %26 = vector.broadcast %25 : vector<32x1xf32> to vector<32x64xf32>
    %27 = arith.mulf %22, %26 : vector<32x64xf32>
    %28 = vector.broadcast %8 : vector<1x64xf32> to vector<32x64xf32>
    %29 = arith.mulf %27, %28 : vector<32x64xf32>
    %30 = vector.broadcast %9 : vector<1x64xf32> to vector<32x64xf32>
    %31 = arith.addf %29, %30 : vector<32x64xf32>
    %32 = arith.truncf %31 : vector<32x64xf32> to vector<32x64xbf16>
    %c0_14 = arith.constant 0 : index
    %c0_15 = arith.constant 0 : index
    %c0_16 = arith.constant 0 : index
    %33 = vector.load %arg5[%c0_14, %c0_15, %c0_16] : memref<2x64x192xbf16, #tpu.memory_space<vmem>>, vector<1x64x192xbf16>
    %34 = vector.shape_cast %33 : vector<1x64x192xbf16> to vector<64x192xbf16>
    %cst_17 = arith.constant dense<0.000000e+00> : vector<32x192xf32>
    %35 = tpu.matmul %32, %34, %cst_17 {dimension_numbers = #tpu.dot_dimension_numbers<[1], [0], [0], [1], [0, 0, 1, 1], [], []>} : vector<32x64xbf16>, vector<64x192xbf16>, vector<32x192xf32> -> vector<32x192xf32>
    %c0_18 = arith.constant 0 : index
    %c0_19 = arith.constant 0 : index
    %c0_20 = arith.constant 0 : index
    %36 = vector.load %arg6[%c0_18, %c0_19, %c0_20] : memref<2x1x192xf32, #tpu.memory_space<vmem>>, vector<1x1x192xf32>
    %37 = vector.shape_cast %36 : vector<1x1x192xf32> to vector<1x192xf32>
    %38 = vector.broadcast %37 : vector<1x192xf32> to vector<32x192xf32>
    %39 = arith.addf %35, %38 : vector<32x192xf32>
    %40 = vector.extract_strided_slice %39 {offsets = [0, 0], sizes = [32, 64], strides = [1, 1]} : vector<32x192xf32> to vector<32x64xf32>
    %cst_21 = arith.constant 2.500000e-01 : f32
    %41 = vector.broadcast %cst_21 : f32 to vector<32x64xf32>
    %42 = arith.mulf %40, %41 : vector<32x64xf32>
    %43 = arith.truncf %42 : vector<32x64xf32> to vector<32x64xbf16>
    %44 = vector.extract_strided_slice %39 {offsets = [0, 64], sizes = [32, 64], strides = [1, 1]} : vector<32x192xf32> to vector<32x64xf32>
    %45 = arith.truncf %44 : vector<32x64xf32> to vector<32x64xbf16>
    %46 = vector.extract_strided_slice %39 {offsets = [0, 128], sizes = [32, 64], strides = [1, 1]} : vector<32x192xf32> to vector<32x64xf32>
    %47 = arith.truncf %46 : vector<32x64xf32> to vector<32x64xbf16>
    %c0_22 = arith.constant 0 : index
    %c0_23 = arith.constant 0 : index
    %c0_24 = arith.constant 0 : index
    %c0_25 = arith.constant 0 : index
    %48 = vector.load %arg7[%c0_22, %c0_23, %c0_24, %c0_25] : memref<2x4x16x64xbf16, #tpu.memory_space<vmem>>, vector<1x4x16x64xbf16>
    %49 = vector.shape_cast %48 : vector<1x4x16x64xbf16> to vector<4x16x64xbf16>
    %cst_26 = arith.constant 0.000000e+00 : f32
    %50 = vector.broadcast %cst_26 : f32 to vector<32x64xf32>
    %51 = vector.extract_strided_slice %43 {offsets = [0, 0], sizes = [32, 16], strides = [1, 1]} : vector<32x64xbf16> to vector<32x16xbf16>
    %52 = vector.shape_cast %51 : vector<32x16xbf16> to vector<4x8x16xbf16>
    %53 = vector.extract_strided_slice %45 {offsets = [0, 0], sizes = [32, 16], strides = [1, 1]} : vector<32x64xbf16> to vector<32x16xbf16>
    %54 = vector.shape_cast %53 : vector<32x16xbf16> to vector<4x8x16xbf16>
    %55 = vector.extract_strided_slice %47 {offsets = [0, 0], sizes = [32, 16], strides = [1, 1]} : vector<32x64xbf16> to vector<32x16xbf16>
    %56 = vector.shape_cast %55 : vector<32x16xbf16> to vector<4x8x16xbf16>
    "tpu.trace_start"() <{level = 10 : i32, message = "bqd,bkd->bqk"}> : () -> ()
    %cst_27 = arith.constant dense<0.000000e+00> : vector<4x8x8xf32>
    %57 = tpu.matmul %52, %54, %cst_27 {dimension_numbers = #tpu.dot_dimension_numbers<[2], [2], [1], [1], [0, 0, 0, 1, 1, 1], [0], [0]>} : vector<4x8x16xbf16>, vector<4x8x16xbf16>, vector<4x8x8xf32> -> vector<4x8x8xf32>
    "tpu.trace_stop"() : () -> ()
    %58 = vector.broadcast %6 : vector<4x1x8xf32> to vector<4x8x8xf32>
    %59 = arith.addf %57, %58 : vector<4x8x8xf32>
    %cst_28 = arith.constant dense<0xFF800000> : vector<4x8xf32>
    %60 = vector.multi_reduction <maximumf>, %59, %cst_28 [2] : vector<4x8x8xf32> to vector<4x8xf32>
    %61 = vector.shape_cast %60 : vector<4x8xf32> to vector<4x8x1xf32>
    %62 = vector.broadcast %61 : vector<4x8x1xf32> to vector<4x8x8xf32>
    %63 = arith.subf %59, %62 : vector<4x8x8xf32>
    %64 = math.exp %63 : vector<4x8x8xf32>
    %cst_29 = arith.constant dense<0.000000e+00> : vector<4x8xf32>
    %65 = vector.multi_reduction <add>, %64, %cst_29 [2] : vector<4x8x8xf32> to vector<4x8xf32>
    %66 = vector.shape_cast %65 : vector<4x8xf32> to vector<4x8x1xf32>
    %67 = tpu.reciprocal %66 {approx = true} : vector<4x8x1xf32> -> vector<4x8x1xf32>
    %68 = vector.broadcast %67 : vector<4x8x1xf32> to vector<4x8x8xf32>
    %69 = arith.mulf %64, %68 : vector<4x8x8xf32>
    %70 = arith.truncf %69 : vector<4x8x8xf32> to vector<4x8x8xbf16>
    "tpu.trace_start"() <{level = 10 : i32, message = "bqk,bkd->bqd"}> : () -> ()
    %cst_30 = arith.constant dense<0.000000e+00> : vector<4x8x16xf32>
    %71 = tpu.matmul %70, %56, %cst_30 {dimension_numbers = #tpu.dot_dimension_numbers<[2], [1], [1], [2], [0, 0, 0, 1, 1, 2], [0], [0]>} : vector<4x8x8xbf16>, vector<4x8x16xbf16>, vector<4x8x16xf32> -> vector<4x8x16xf32>
    "tpu.trace_stop"() : () -> ()
    %72 = vector.shape_cast %71 : vector<4x8x16xf32> to vector<32x16xf32>
    %73 = arith.truncf %72 : vector<32x16xf32> to vector<32x16xbf16>
    %74 = vector.extract_strided_slice %49 {offsets = [0, 0, 0], sizes = [1, 16, 64], strides = [1, 1, 1]} : vector<4x16x64xbf16> to vector<1x16x64xbf16>
    %75 = vector.shape_cast %74 : vector<1x16x64xbf16> to vector<16x64xbf16>
    %cst_31 = arith.constant dense<0.000000e+00> : vector<32x64xf32>
    %76 = tpu.matmul %73, %75, %cst_31 {dimension_numbers = #tpu.dot_dimension_numbers<[1], [0], [0], [1], [0, 0, 1, 1], [], []>} : vector<32x16xbf16>, vector<16x64xbf16>, vector<32x64xf32> -> vector<32x64xf32>
    %77 = arith.addf %50, %76 : vector<32x64xf32>
    %78 = vector.extract_strided_slice %43 {offsets = [0, 16], sizes = [32, 16], strides = [1, 1]} : vector<32x64xbf16> to vector<32x16xbf16>
    %79 = vector.shape_cast %78 : vector<32x16xbf16> to vector<4x8x16xbf16>
    %80 = vector.extract_strided_slice %45 {offsets = [0, 16], sizes = [32, 16], strides = [1, 1]} : vector<32x64xbf16> to vector<32x16xbf16>
    %81 = vector.shape_cast %80 : vector<32x16xbf16> to vector<4x8x16xbf16>
    %82 = vector.extract_strided_slice %47 {offsets = [0, 16], sizes = [32, 16], strides = [1, 1]} : vector<32x64xbf16> to vector<32x16xbf16>
    %83 = vector.shape_cast %82 : vector<32x16xbf16> to vector<4x8x16xbf16>
    "tpu.trace_start"() <{level = 10 : i32, message = "bqd,bkd->bqk"}> : () -> ()
    %cst_32 = arith.constant dense<0.000000e+00> : vector<4x8x8xf32>
    %84 = tpu.matmul %79, %81, %cst_32 {dimension_numbers = #tpu.dot_dimension_numbers<[2], [2], [1], [1], [0, 0, 0, 1, 1, 1], [0], [0]>} : vector<4x8x16xbf16>, vector<4x8x16xbf16>, vector<4x8x8xf32> -> vector<4x8x8xf32>
    "tpu.trace_stop"() : () -> ()
    %85 = vector.broadcast %6 : vector<4x1x8xf32> to vector<4x8x8xf32>
    %86 = arith.addf %84, %85 : vector<4x8x8xf32>
    %cst_33 = arith.constant dense<0xFF800000> : vector<4x8xf32>
    %87 = vector.multi_reduction <maximumf>, %86, %cst_33 [2] : vector<4x8x8xf32> to vector<4x8xf32>
    %88 = vector.shape_cast %87 : vector<4x8xf32> to vector<4x8x1xf32>
    %89 = vector.broadcast %88 : vector<4x8x1xf32> to vector<4x8x8xf32>
    %90 = arith.subf %86, %89 : vector<4x8x8xf32>
    %91 = math.exp %90 : vector<4x8x8xf32>
    %cst_34 = arith.constant dense<0.000000e+00> : vector<4x8xf32>
    %92 = vector.multi_reduction <add>, %91, %cst_34 [2] : vector<4x8x8xf32> to vector<4x8xf32>
    %93 = vector.shape_cast %92 : vector<4x8xf32> to vector<4x8x1xf32>
    %94 = tpu.reciprocal %93 {approx = true} : vector<4x8x1xf32> -> vector<4x8x1xf32>
    %95 = vector.broadcast %94 : vector<4x8x1xf32> to vector<4x8x8xf32>
    %96 = arith.mulf %91, %95 : vector<4x8x8xf32>
    %97 = arith.truncf %96 : vector<4x8x8xf32> to vector<4x8x8xbf16>
    "tpu.trace_start"() <{level = 10 : i32, message = "bqk,bkd->bqd"}> : () -> ()
    %cst_35 = arith.constant dense<0.000000e+00> : vector<4x8x16xf32>
    %98 = tpu.matmul %97, %83, %cst_35 {dimension_numbers = #tpu.dot_dimension_numbers<[2], [1], [1], [2], [0, 0, 0, 1, 1, 2], [0], [0]>} : vector<4x8x8xbf16>, vector<4x8x16xbf16>, vector<4x8x16xf32> -> vector<4x8x16xf32>
    "tpu.trace_stop"() : () -> ()
    %99 = vector.shape_cast %98 : vector<4x8x16xf32> to vector<32x16xf32>
    %100 = arith.truncf %99 : vector<32x16xf32> to vector<32x16xbf16>
    %101 = vector.extract_strided_slice %49 {offsets = [1, 0, 0], sizes = [1, 16, 64], strides = [1, 1, 1]} : vector<4x16x64xbf16> to vector<1x16x64xbf16>
    %102 = vector.shape_cast %101 : vector<1x16x64xbf16> to vector<16x64xbf16>
    %cst_36 = arith.constant dense<0.000000e+00> : vector<32x64xf32>
    %103 = tpu.matmul %100, %102, %cst_36 {dimension_numbers = #tpu.dot_dimension_numbers<[1], [0], [0], [1], [0, 0, 1, 1], [], []>} : vector<32x16xbf16>, vector<16x64xbf16>, vector<32x64xf32> -> vector<32x64xf32>
    %104 = arith.addf %77, %103 : vector<32x64xf32>
    %105 = vector.extract_strided_slice %43 {offsets = [0, 32], sizes = [32, 16], strides = [1, 1]} : vector<32x64xbf16> to vector<32x16xbf16>
    %106 = vector.shape_cast %105 : vector<32x16xbf16> to vector<4x8x16xbf16>
    %107 = vector.extract_strided_slice %45 {offsets = [0, 32], sizes = [32, 16], strides = [1, 1]} : vector<32x64xbf16> to vector<32x16xbf16>
    %108 = vector.shape_cast %107 : vector<32x16xbf16> to vector<4x8x16xbf16>
    %109 = vector.extract_strided_slice %47 {offsets = [0, 32], sizes = [32, 16], strides = [1, 1]} : vector<32x64xbf16> to vector<32x16xbf16>
    %110 = vector.shape_cast %109 : vector<32x16xbf16> to vector<4x8x16xbf16>
    "tpu.trace_start"() <{level = 10 : i32, message = "bqd,bkd->bqk"}> : () -> ()
    %cst_37 = arith.constant dense<0.000000e+00> : vector<4x8x8xf32>
    %111 = tpu.matmul %106, %108, %cst_37 {dimension_numbers = #tpu.dot_dimension_numbers<[2], [2], [1], [1], [0, 0, 0, 1, 1, 1], [0], [0]>} : vector<4x8x16xbf16>, vector<4x8x16xbf16>, vector<4x8x8xf32> -> vector<4x8x8xf32>
    "tpu.trace_stop"() : () -> ()
    %112 = vector.broadcast %6 : vector<4x1x8xf32> to vector<4x8x8xf32>
    %113 = arith.addf %111, %112 : vector<4x8x8xf32>
    %cst_38 = arith.constant dense<0xFF800000> : vector<4x8xf32>
    %114 = vector.multi_reduction <maximumf>, %113, %cst_38 [2] : vector<4x8x8xf32> to vector<4x8xf32>
    %115 = vector.shape_cast %114 : vector<4x8xf32> to vector<4x8x1xf32>
    %116 = vector.broadcast %115 : vector<4x8x1xf32> to vector<4x8x8xf32>
    %117 = arith.subf %113, %116 : vector<4x8x8xf32>
    %118 = math.exp %117 : vector<4x8x8xf32>
    %cst_39 = arith.constant dense<0.000000e+00> : vector<4x8xf32>
    %119 = vector.multi_reduction <add>, %118, %cst_39 [2] : vector<4x8x8xf32> to vector<4x8xf32>
    %120 = vector.shape_cast %119 : vector<4x8xf32> to vector<4x8x1xf32>
    %121 = tpu.reciprocal %120 {approx = true} : vector<4x8x1xf32> -> vector<4x8x1xf32>
    %122 = vector.broadcast %121 : vector<4x8x1xf32> to vector<4x8x8xf32>
    %123 = arith.mulf %118, %122 : vector<4x8x8xf32>
    %124 = arith.truncf %123 : vector<4x8x8xf32> to vector<4x8x8xbf16>
    "tpu.trace_start"() <{level = 10 : i32, message = "bqk,bkd->bqd"}> : () -> ()
    %cst_40 = arith.constant dense<0.000000e+00> : vector<4x8x16xf32>
    %125 = tpu.matmul %124, %110, %cst_40 {dimension_numbers = #tpu.dot_dimension_numbers<[2], [1], [1], [2], [0, 0, 0, 1, 1, 2], [0], [0]>} : vector<4x8x8xbf16>, vector<4x8x16xbf16>, vector<4x8x16xf32> -> vector<4x8x16xf32>
    "tpu.trace_stop"() : () -> ()
    %126 = vector.shape_cast %125 : vector<4x8x16xf32> to vector<32x16xf32>
    %127 = arith.truncf %126 : vector<32x16xf32> to vector<32x16xbf16>
    %128 = vector.extract_strided_slice %49 {offsets = [2, 0, 0], sizes = [1, 16, 64], strides = [1, 1, 1]} : vector<4x16x64xbf16> to vector<1x16x64xbf16>
    %129 = vector.shape_cast %128 : vector<1x16x64xbf16> to vector<16x64xbf16>
    %cst_41 = arith.constant dense<0.000000e+00> : vector<32x64xf32>
    %130 = tpu.matmul %127, %129, %cst_41 {dimension_numbers = #tpu.dot_dimension_numbers<[1], [0], [0], [1], [0, 0, 1, 1], [], []>} : vector<32x16xbf16>, vector<16x64xbf16>, vector<32x64xf32> -> vector<32x64xf32>
    %131 = arith.addf %104, %130 : vector<32x64xf32>
    %132 = vector.extract_strided_slice %43 {offsets = [0, 48], sizes = [32, 16], strides = [1, 1]} : vector<32x64xbf16> to vector<32x16xbf16>
    %133 = vector.shape_cast %132 : vector<32x16xbf16> to vector<4x8x16xbf16>
    %134 = vector.extract_strided_slice %45 {offsets = [0, 48], sizes = [32, 16], strides = [1, 1]} : vector<32x64xbf16> to vector<32x16xbf16>
    %135 = vector.shape_cast %134 : vector<32x16xbf16> to vector<4x8x16xbf16>
    %136 = vector.extract_strided_slice %47 {offsets = [0, 48], sizes = [32, 16], strides = [1, 1]} : vector<32x64xbf16> to vector<32x16xbf16>
    %137 = vector.shape_cast %136 : vector<32x16xbf16> to vector<4x8x16xbf16>
    "tpu.trace_start"() <{level = 10 : i32, message = "bqd,bkd->bqk"}> : () -> ()
    %cst_42 = arith.constant dense<0.000000e+00> : vector<4x8x8xf32>
    %138 = tpu.matmul %133, %135, %cst_42 {dimension_numbers = #tpu.dot_dimension_numbers<[2], [2], [1], [1], [0, 0, 0, 1, 1, 1], [0], [0]>} : vector<4x8x16xbf16>, vector<4x8x16xbf16>, vector<4x8x8xf32> -> vector<4x8x8xf32>
    "tpu.trace_stop"() : () -> ()
    %139 = vector.broadcast %6 : vector<4x1x8xf32> to vector<4x8x8xf32>
    %140 = arith.addf %138, %139 : vector<4x8x8xf32>
    %cst_43 = arith.constant dense<0xFF800000> : vector<4x8xf32>
    %141 = vector.multi_reduction <maximumf>, %140, %cst_43 [2] : vector<4x8x8xf32> to vector<4x8xf32>
    %142 = vector.shape_cast %141 : vector<4x8xf32> to vector<4x8x1xf32>
    %143 = vector.broadcast %142 : vector<4x8x1xf32> to vector<4x8x8xf32>
    %144 = arith.subf %140, %143 : vector<4x8x8xf32>
    %145 = math.exp %144 : vector<4x8x8xf32>
    %cst_44 = arith.constant dense<0.000000e+00> : vector<4x8xf32>
    %146 = vector.multi_reduction <add>, %145, %cst_44 [2] : vector<4x8x8xf32> to vector<4x8xf32>
    %147 = vector.shape_cast %146 : vector<4x8xf32> to vector<4x8x1xf32>
    %148 = tpu.reciprocal %147 {approx = true} : vector<4x8x1xf32> -> vector<4x8x1xf32>
    %149 = vector.broadcast %148 : vector<4x8x1xf32> to vector<4x8x8xf32>
    %150 = arith.mulf %145, %149 : vector<4x8x8xf32>
    %151 = arith.truncf %150 : vector<4x8x8xf32> to vector<4x8x8xbf16>
    "tpu.trace_start"() <{level = 10 : i32, message = "bqk,bkd->bqd"}> : () -> ()
    %cst_45 = arith.constant dense<0.000000e+00> : vector<4x8x16xf32>
    %152 = tpu.matmul %151, %137, %cst_45 {dimension_numbers = #tpu.dot_dimension_numbers<[2], [1], [1], [2], [0, 0, 0, 1, 1, 2], [0], [0]>} : vector<4x8x8xbf16>, vector<4x8x16xbf16>, vector<4x8x16xf32> -> vector<4x8x16xf32>
    "tpu.trace_stop"() : () -> ()
    %153 = vector.shape_cast %152 : vector<4x8x16xf32> to vector<32x16xf32>
    %154 = arith.truncf %153 : vector<32x16xf32> to vector<32x16xbf16>
    %155 = vector.extract_strided_slice %49 {offsets = [3, 0, 0], sizes = [1, 16, 64], strides = [1, 1, 1]} : vector<4x16x64xbf16> to vector<1x16x64xbf16>
    %156 = vector.shape_cast %155 : vector<1x16x64xbf16> to vector<16x64xbf16>
    %cst_46 = arith.constant dense<0.000000e+00> : vector<32x64xf32>
    %157 = tpu.matmul %154, %156, %cst_46 {dimension_numbers = #tpu.dot_dimension_numbers<[1], [0], [0], [1], [0, 0, 1, 1], [], []>} : vector<32x16xbf16>, vector<16x64xbf16>, vector<32x64xf32> -> vector<32x64xf32>
    %158 = arith.addf %131, %157 : vector<32x64xf32>
    %c0_47 = arith.constant 0 : index
    %c0_48 = arith.constant 0 : index
    %c0_49 = arith.constant 0 : index
    %159 = vector.load %arg8[%c0_47, %c0_48, %c0_49] : memref<2x1x64xf32, #tpu.memory_space<vmem>>, vector<1x1x64xf32>
    %160 = vector.shape_cast %159 : vector<1x1x64xf32> to vector<1x64xf32>
    %161 = vector.broadcast %160 : vector<1x64xf32> to vector<32x64xf32>
    %162 = arith.addf %158, %161 : vector<32x64xf32>
    %163 = arith.addf %162, %31 : vector<32x64xf32>
    %c0_50 = arith.constant 0 : index
    %c0_51 = arith.constant 0 : index
    %c0_52 = arith.constant 0 : index
    %164 = vector.load %arg9[%c0_50, %c0_51, %c0_52] : memref<2x1x64xf32, #tpu.memory_space<vmem>>, vector<1x1x64xf32>
    %165 = vector.shape_cast %164 : vector<1x1x64xf32> to vector<1x64xf32>
    %c0_53 = arith.constant 0 : index
    %c0_54 = arith.constant 0 : index
    %c0_55 = arith.constant 0 : index
    %166 = vector.load %arg10[%c0_53, %c0_54, %c0_55] : memref<2x1x64xf32, #tpu.memory_space<vmem>>, vector<1x1x64xf32>
    %167 = vector.shape_cast %166 : vector<1x1x64xf32> to vector<1x64xf32>
    %cst_56 = arith.constant dense<0.000000e+00> : vector<32xf32>
    %168 = vector.multi_reduction <add>, %163, %cst_56 [1] : vector<32x64xf32> to vector<32xf32>
    %169 = vector.shape_cast %168 : vector<32xf32> to vector<32x1xf32>
    %cst_57 = arith.constant 6.400000e+01 : f32
    %170 = vector.broadcast %cst_57 : f32 to vector<32x1xf32>
    %171 = arith.divf %169, %170 : vector<32x1xf32>
    %172 = vector.broadcast %171 : vector<32x1xf32> to vector<32x64xf32>
    %173 = arith.subf %163, %172 : vector<32x64xf32>
    %174 = arith.mulf %173, %173 : vector<32x64xf32>
    %cst_58 = arith.constant dense<0.000000e+00> : vector<32xf32>
    %175 = vector.multi_reduction <add>, %174, %cst_58 [1] : vector<32x64xf32> to vector<32xf32>
    %176 = vector.shape_cast %175 : vector<32xf32> to vector<32x1xf32>
    %cst_59 = arith.constant 6.400000e+01 : f32
    %177 = vector.broadcast %cst_59 : f32 to vector<32x1xf32>
    %178 = arith.divf %176, %177 : vector<32x1xf32>
    %179 = vector.broadcast %171 : vector<32x1xf32> to vector<32x64xf32>
    %180 = arith.subf %163, %179 : vector<32x64xf32>
    %cst_60 = arith.constant 9.99999996E-13 : f32
    %181 = vector.broadcast %cst_60 : f32 to vector<32x1xf32>
    %182 = arith.addf %178, %181 : vector<32x1xf32>
    %183 = math.rsqrt %182 : vector<32x1xf32>
    %184 = vector.broadcast %183 : vector<32x1xf32> to vector<32x64xf32>
    %185 = arith.mulf %180, %184 : vector<32x64xf32>
    %186 = vector.broadcast %165 : vector<1x64xf32> to vector<32x64xf32>
    %187 = arith.mulf %185, %186 : vector<32x64xf32>
    %188 = vector.broadcast %167 : vector<1x64xf32> to vector<32x64xf32>
    %189 = arith.addf %187, %188 : vector<32x64xf32>
    %190 = arith.truncf %189 : vector<32x64xf32> to vector<32x64xbf16>
    %c0_61 = arith.constant 0 : index
    %c0_62 = arith.constant 0 : index
    %c0_63 = arith.constant 0 : index
    %191 = vector.load %arg11[%c0_61, %c0_62, %c0_63] : memref<2x64x128xbf16, #tpu.memory_space<vmem>>, vector<1x64x128xbf16>
    %192 = vector.shape_cast %191 : vector<1x64x128xbf16> to vector<64x128xbf16>
    %cst_64 = arith.constant dense<0.000000e+00> : vector<32x128xf32>
    %193 = tpu.matmul %190, %192, %cst_64 {dimension_numbers = #tpu.dot_dimension_numbers<[1], [0], [0], [1], [0, 0, 1, 1], [], []>} : vector<32x64xbf16>, vector<64x128xbf16>, vector<32x128xf32> -> vector<32x128xf32>
    %c0_65 = arith.constant 0 : index
    %c0_66 = arith.constant 0 : index
    %c0_67 = arith.constant 0 : index
    %194 = vector.load %arg12[%c0_65, %c0_66, %c0_67] : memref<2x1x128xf32, #tpu.memory_space<vmem>>, vector<1x1x128xf32>
    %195 = vector.shape_cast %194 : vector<1x1x128xf32> to vector<1x128xf32>
    %196 = vector.broadcast %195 : vector<1x128xf32> to vector<32x128xf32>
    %197 = arith.addf %193, %196 : vector<32x128xf32>
    %cst_68 = arith.constant 5.000000e-01 : f32
    %198 = vector.broadcast %cst_68 : f32 to vector<32x128xf32>
    %199 = arith.mulf %198, %197 : vector<32x128xf32>
    %cst_69 = arith.constant 4.471500e-02 : f32
    %200 = vector.broadcast %cst_69 : f32 to vector<32x128xf32>
    %201 = arith.mulf %200, %197 : vector<32x128xf32>
    %202 = arith.mulf %201, %197 : vector<32x128xf32>
    %203 = arith.mulf %202, %197 : vector<32x128xf32>
    %204 = arith.addf %197, %203 : vector<32x128xf32>
    %cst_70 = arith.constant 0.797884583 : f32
    %205 = vector.broadcast %cst_70 : f32 to vector<32x128xf32>
    %206 = arith.mulf %205, %204 : vector<32x128xf32>
    %207 = math.tanh %206 : vector<32x128xf32>
    %cst_71 = arith.constant 1.000000e+00 : f32
    %208 = vector.broadcast %cst_71 : f32 to vector<32x128xf32>
    %209 = arith.addf %208, %207 : vector<32x128xf32>
    %210 = arith.mulf %199, %209 : vector<32x128xf32>
    %211 = arith.truncf %210 : vector<32x128xf32> to vector<32x128xbf16>
    %c0_72 = arith.constant 0 : index
    %c0_73 = arith.constant 0 : index
    %c0_74 = arith.constant 0 : index
    %212 = vector.load %arg13[%c0_72, %c0_73, %c0_74] : memref<2x128x64xbf16, #tpu.memory_space<vmem>>, vector<1x128x64xbf16>
    %213 = vector.shape_cast %212 : vector<1x128x64xbf16> to vector<128x64xbf16>
    %cst_75 = arith.constant dense<0.000000e+00> : vector<32x64xf32>
    %214 = tpu.matmul %211, %213, %cst_75 {dimension_numbers = #tpu.dot_dimension_numbers<[1], [0], [0], [1], [0, 0, 1, 1], [], []>} : vector<32x128xbf16>, vector<128x64xbf16>, vector<32x64xf32> -> vector<32x64xf32>
    %c0_76 = arith.constant 0 : index
    %c0_77 = arith.constant 0 : index
    %c0_78 = arith.constant 0 : index
    %215 = vector.load %arg14[%c0_76, %c0_77, %c0_78] : memref<2x1x64xf32, #tpu.memory_space<vmem>>, vector<1x1x64xf32>
    %216 = vector.shape_cast %215 : vector<1x1x64xf32> to vector<1x64xf32>
    %217 = vector.broadcast %216 : vector<1x64xf32> to vector<32x64xf32>
    %218 = arith.addf %214, %217 : vector<32x64xf32>
    %219 = arith.addf %218, %189 : vector<32x64xf32>
    %c0_79 = arith.constant 0 : index
    %c0_80 = arith.constant 0 : index
    %c0_81 = arith.constant 0 : index
    %220 = vector.load %arg15[%c0_79, %c0_80, %c0_81] : memref<2x1x64xf32, #tpu.memory_space<vmem>>, vector<1x1x64xf32>
    %221 = vector.shape_cast %220 : vector<1x1x64xf32> to vector<1x64xf32>
    %c0_82 = arith.constant 0 : index
    %c0_83 = arith.constant 0 : index
    %c0_84 = arith.constant 0 : index
    %222 = vector.load %arg16[%c0_82, %c0_83, %c0_84] : memref<2x1x64xf32, #tpu.memory_space<vmem>>, vector<1x1x64xf32>
    %223 = vector.shape_cast %222 : vector<1x1x64xf32> to vector<1x64xf32>
    %cst_85 = arith.constant dense<0.000000e+00> : vector<32xf32>
    %224 = vector.multi_reduction <add>, %219, %cst_85 [1] : vector<32x64xf32> to vector<32xf32>
    %225 = vector.shape_cast %224 : vector<32xf32> to vector<32x1xf32>
    %cst_86 = arith.constant 6.400000e+01 : f32
    %226 = vector.broadcast %cst_86 : f32 to vector<32x1xf32>
    %227 = arith.divf %225, %226 : vector<32x1xf32>
    %228 = vector.broadcast %227 : vector<32x1xf32> to vector<32x64xf32>
    %229 = arith.subf %219, %228 : vector<32x64xf32>
    %230 = arith.mulf %229, %229 : vector<32x64xf32>
    %cst_87 = arith.constant dense<0.000000e+00> : vector<32xf32>
    %231 = vector.multi_reduction <add>, %230, %cst_87 [1] : vector<32x64xf32> to vector<32xf32>
    %232 = vector.shape_cast %231 : vector<32xf32> to vector<32x1xf32>
    %cst_88 = arith.constant 6.400000e+01 : f32
    %233 = vector.broadcast %cst_88 : f32 to vector<32x1xf32>
    %234 = arith.divf %232, %233 : vector<32x1xf32>
    %235 = vector.broadcast %227 : vector<32x1xf32> to vector<32x64xf32>
    %236 = arith.subf %219, %235 : vector<32x64xf32>
    %cst_89 = arith.constant 9.99999996E-13 : f32
    %237 = vector.broadcast %cst_89 : f32 to vector<32x1xf32>
    %238 = arith.addf %234, %237 : vector<32x1xf32>
    %239 = math.rsqrt %238 : vector<32x1xf32>
    %240 = vector.broadcast %239 : vector<32x1xf32> to vector<32x64xf32>
    %241 = arith.mulf %236, %240 : vector<32x64xf32>
    %242 = vector.broadcast %221 : vector<1x64xf32> to vector<32x64xf32>
    %243 = arith.mulf %241, %242 : vector<32x64xf32>
    %244 = vector.broadcast %223 : vector<1x64xf32> to vector<32x64xf32>
    %245 = arith.addf %243, %244 : vector<32x64xf32>
    %246 = arith.truncf %245 : vector<32x64xf32> to vector<32x64xbf16>
    %c1 = arith.constant 1 : index
    %c0_90 = arith.constant 0 : index
    %c0_91 = arith.constant 0 : index
    %247 = vector.load %arg5[%c1, %c0_90, %c0_91] : memref<2x64x192xbf16, #tpu.memory_space<vmem>>, vector<1x64x192xbf16>
    %248 = vector.shape_cast %247 : vector<1x64x192xbf16> to vector<64x192xbf16>
    %cst_92 = arith.constant dense<0.000000e+00> : vector<32x192xf32>
    %249 = tpu.matmul %246, %248, %cst_92 {dimension_numbers = #tpu.dot_dimension_numbers<[1], [0], [0], [1], [0, 0, 1, 1], [], []>} : vector<32x64xbf16>, vector<64x192xbf16>, vector<32x192xf32> -> vector<32x192xf32>
    %c1_93 = arith.constant 1 : index
    %c0_94 = arith.constant 0 : index
    %c0_95 = arith.constant 0 : index
    %250 = vector.load %arg6[%c1_93, %c0_94, %c0_95] : memref<2x1x192xf32, #tpu.memory_space<vmem>>, vector<1x1x192xf32>
    %251 = vector.shape_cast %250 : vector<1x1x192xf32> to vector<1x192xf32>
    %252 = vector.broadcast %251 : vector<1x192xf32> to vector<32x192xf32>
    %253 = arith.addf %249, %252 : vector<32x192xf32>
    %254 = vector.extract_strided_slice %253 {offsets = [0, 0], sizes = [32, 64], strides = [1, 1]} : vector<32x192xf32> to vector<32x64xf32>
    %cst_96 = arith.constant 2.500000e-01 : f32
    %255 = vector.broadcast %cst_96 : f32 to vector<32x64xf32>
    %256 = arith.mulf %254, %255 : vector<32x64xf32>
    %257 = arith.truncf %256 : vector<32x64xf32> to vector<32x64xbf16>
    %258 = vector.extract_strided_slice %253 {offsets = [0, 64], sizes = [32, 64], strides = [1, 1]} : vector<32x192xf32> to vector<32x64xf32>
    %259 = arith.truncf %258 : vector<32x64xf32> to vector<32x64xbf16>
    %260 = vector.extract_strided_slice %253 {offsets = [0, 128], sizes = [32, 64], strides = [1, 1]} : vector<32x192xf32> to vector<32x64xf32>
    %261 = arith.truncf %260 : vector<32x64xf32> to vector<32x64xbf16>
    %c1_97 = arith.constant 1 : index
    %c0_98 = arith.constant 0 : index
    %c0_99 = arith.constant 0 : index
    %c0_100 = arith.constant 0 : index
    %262 = vector.load %arg7[%c1_97, %c0_98, %c0_99, %c0_100] : memref<2x4x16x64xbf16, #tpu.memory_space<vmem>>, vector<1x4x16x64xbf16>
    %263 = vector.shape_cast %262 : vector<1x4x16x64xbf16> to vector<4x16x64xbf16>
    %cst_101 = arith.constant 0.000000e+00 : f32
    %264 = vector.broadcast %cst_101 : f32 to vector<32x64xf32>
    %265 = vector.extract_strided_slice %257 {offsets = [0, 0], sizes = [32, 16], strides = [1, 1]} : vector<32x64xbf16> to vector<32x16xbf16>
    %266 = vector.shape_cast %265 : vector<32x16xbf16> to vector<4x8x16xbf16>
    %267 = vector.extract_strided_slice %259 {offsets = [0, 0], sizes = [32, 16], strides = [1, 1]} : vector<32x64xbf16> to vector<32x16xbf16>
    %268 = vector.shape_cast %267 : vector<32x16xbf16> to vector<4x8x16xbf16>
    %269 = vector.extract_strided_slice %261 {offsets = [0, 0], sizes = [32, 16], strides = [1, 1]} : vector<32x64xbf16> to vector<32x16xbf16>
    %270 = vector.shape_cast %269 : vector<32x16xbf16> to vector<4x8x16xbf16>
    "tpu.trace_start"() <{level = 10 : i32, message = "bqd,bkd->bqk"}> : () -> ()
    %cst_102 = arith.constant dense<0.000000e+00> : vector<4x8x8xf32>
    %271 = tpu.matmul %266, %268, %cst_102 {dimension_numbers = #tpu.dot_dimension_numbers<[2], [2], [1], [1], [0, 0, 0, 1, 1, 1], [0], [0]>} : vector<4x8x16xbf16>, vector<4x8x16xbf16>, vector<4x8x8xf32> -> vector<4x8x8xf32>
    "tpu.trace_stop"() : () -> ()
    %272 = vector.broadcast %6 : vector<4x1x8xf32> to vector<4x8x8xf32>
    %273 = arith.addf %271, %272 : vector<4x8x8xf32>
    %cst_103 = arith.constant dense<0xFF800000> : vector<4x8xf32>
    %274 = vector.multi_reduction <maximumf>, %273, %cst_103 [2] : vector<4x8x8xf32> to vector<4x8xf32>
    %275 = vector.shape_cast %274 : vector<4x8xf32> to vector<4x8x1xf32>
    %276 = vector.broadcast %275 : vector<4x8x1xf32> to vector<4x8x8xf32>
    %277 = arith.subf %273, %276 : vector<4x8x8xf32>
    %278 = math.exp %277 : vector<4x8x8xf32>
    %cst_104 = arith.constant dense<0.000000e+00> : vector<4x8xf32>
    %279 = vector.multi_reduction <add>, %278, %cst_104 [2] : vector<4x8x8xf32> to vector<4x8xf32>
    %280 = vector.shape_cast %279 : vector<4x8xf32> to vector<4x8x1xf32>
    %281 = tpu.reciprocal %280 {approx = true} : vector<4x8x1xf32> -> vector<4x8x1xf32>
    %282 = vector.broadcast %281 : vector<4x8x1xf32> to vector<4x8x8xf32>
    %283 = arith.mulf %278, %282 : vector<4x8x8xf32>
    %284 = arith.truncf %283 : vector<4x8x8xf32> to vector<4x8x8xbf16>
    "tpu.trace_start"() <{level = 10 : i32, message = "bqk,bkd->bqd"}> : () -> ()
    %cst_105 = arith.constant dense<0.000000e+00> : vector<4x8x16xf32>
    %285 = tpu.matmul %284, %270, %cst_105 {dimension_numbers = #tpu.dot_dimension_numbers<[2], [1], [1], [2], [0, 0, 0, 1, 1, 2], [0], [0]>} : vector<4x8x8xbf16>, vector<4x8x16xbf16>, vector<4x8x16xf32> -> vector<4x8x16xf32>
    "tpu.trace_stop"() : () -> ()
    %286 = vector.shape_cast %285 : vector<4x8x16xf32> to vector<32x16xf32>
    %287 = arith.truncf %286 : vector<32x16xf32> to vector<32x16xbf16>
    %288 = vector.extract_strided_slice %263 {offsets = [0, 0, 0], sizes = [1, 16, 64], strides = [1, 1, 1]} : vector<4x16x64xbf16> to vector<1x16x64xbf16>
    %289 = vector.shape_cast %288 : vector<1x16x64xbf16> to vector<16x64xbf16>
    %cst_106 = arith.constant dense<0.000000e+00> : vector<32x64xf32>
    %290 = tpu.matmul %287, %289, %cst_106 {dimension_numbers = #tpu.dot_dimension_numbers<[1], [0], [0], [1], [0, 0, 1, 1], [], []>} : vector<32x16xbf16>, vector<16x64xbf16>, vector<32x64xf32> -> vector<32x64xf32>
    %291 = arith.addf %264, %290 : vector<32x64xf32>
    %292 = vector.extract_strided_slice %257 {offsets = [0, 16], sizes = [32, 16], strides = [1, 1]} : vector<32x64xbf16> to vector<32x16xbf16>
    %293 = vector.shape_cast %292 : vector<32x16xbf16> to vector<4x8x16xbf16>
    %294 = vector.extract_strided_slice %259 {offsets = [0, 16], sizes = [32, 16], strides = [1, 1]} : vector<32x64xbf16> to vector<32x16xbf16>
    %295 = vector.shape_cast %294 : vector<32x16xbf16> to vector<4x8x16xbf16>
    %296 = vector.extract_strided_slice %261 {offsets = [0, 16], sizes = [32, 16], strides = [1, 1]} : vector<32x64xbf16> to vector<32x16xbf16>
    %297 = vector.shape_cast %296 : vector<32x16xbf16> to vector<4x8x16xbf16>
    "tpu.trace_start"() <{level = 10 : i32, message = "bqd,bkd->bqk"}> : () -> ()
    %cst_107 = arith.constant dense<0.000000e+00> : vector<4x8x8xf32>
    %298 = tpu.matmul %293, %295, %cst_107 {dimension_numbers = #tpu.dot_dimension_numbers<[2], [2], [1], [1], [0, 0, 0, 1, 1, 1], [0], [0]>} : vector<4x8x16xbf16>, vector<4x8x16xbf16>, vector<4x8x8xf32> -> vector<4x8x8xf32>
    "tpu.trace_stop"() : () -> ()
    %299 = vector.broadcast %6 : vector<4x1x8xf32> to vector<4x8x8xf32>
    %300 = arith.addf %298, %299 : vector<4x8x8xf32>
    %cst_108 = arith.constant dense<0xFF800000> : vector<4x8xf32>
    %301 = vector.multi_reduction <maximumf>, %300, %cst_108 [2] : vector<4x8x8xf32> to vector<4x8xf32>
    %302 = vector.shape_cast %301 : vector<4x8xf32> to vector<4x8x1xf32>
    %303 = vector.broadcast %302 : vector<4x8x1xf32> to vector<4x8x8xf32>
    %304 = arith.subf %300, %303 : vector<4x8x8xf32>
    %305 = math.exp %304 : vector<4x8x8xf32>
    %cst_109 = arith.constant dense<0.000000e+00> : vector<4x8xf32>
    %306 = vector.multi_reduction <add>, %305, %cst_109 [2] : vector<4x8x8xf32> to vector<4x8xf32>
    %307 = vector.shape_cast %306 : vector<4x8xf32> to vector<4x8x1xf32>
    %308 = tpu.reciprocal %307 {approx = true} : vector<4x8x1xf32> -> vector<4x8x1xf32>
    %309 = vector.broadcast %308 : vector<4x8x1xf32> to vector<4x8x8xf32>
    %310 = arith.mulf %305, %309 : vector<4x8x8xf32>
    %311 = arith.truncf %310 : vector<4x8x8xf32> to vector<4x8x8xbf16>
    "tpu.trace_start"() <{level = 10 : i32, message = "bqk,bkd->bqd"}> : () -> ()
    %cst_110 = arith.constant dense<0.000000e+00> : vector<4x8x16xf32>
    %312 = tpu.matmul %311, %297, %cst_110 {dimension_numbers = #tpu.dot_dimension_numbers<[2], [1], [1], [2], [0, 0, 0, 1, 1, 2], [0], [0]>} : vector<4x8x8xbf16>, vector<4x8x16xbf16>, vector<4x8x16xf32> -> vector<4x8x16xf32>
    "tpu.trace_stop"() : () -> ()
    %313 = vector.shape_cast %312 : vector<4x8x16xf32> to vector<32x16xf32>
    %314 = arith.truncf %313 : vector<32x16xf32> to vector<32x16xbf16>
    %315 = vector.extract_strided_slice %263 {offsets = [1, 0, 0], sizes = [1, 16, 64], strides = [1, 1, 1]} : vector<4x16x64xbf16> to vector<1x16x64xbf16>
    %316 = vector.shape_cast %315 : vector<1x16x64xbf16> to vector<16x64xbf16>
    %cst_111 = arith.constant dense<0.000000e+00> : vector<32x64xf32>
    %317 = tpu.matmul %314, %316, %cst_111 {dimension_numbers = #tpu.dot_dimension_numbers<[1], [0], [0], [1], [0, 0, 1, 1], [], []>} : vector<32x16xbf16>, vector<16x64xbf16>, vector<32x64xf32> -> vector<32x64xf32>
    %318 = arith.addf %291, %317 : vector<32x64xf32>
    %319 = vector.extract_strided_slice %257 {offsets = [0, 32], sizes = [32, 16], strides = [1, 1]} : vector<32x64xbf16> to vector<32x16xbf16>
    %320 = vector.shape_cast %319 : vector<32x16xbf16> to vector<4x8x16xbf16>
    %321 = vector.extract_strided_slice %259 {offsets = [0, 32], sizes = [32, 16], strides = [1, 1]} : vector<32x64xbf16> to vector<32x16xbf16>
    %322 = vector.shape_cast %321 : vector<32x16xbf16> to vector<4x8x16xbf16>
    %323 = vector.extract_strided_slice %261 {offsets = [0, 32], sizes = [32, 16], strides = [1, 1]} : vector<32x64xbf16> to vector<32x16xbf16>
    %324 = vector.shape_cast %323 : vector<32x16xbf16> to vector<4x8x16xbf16>
    "tpu.trace_start"() <{level = 10 : i32, message = "bqd,bkd->bqk"}> : () -> ()
    %cst_112 = arith.constant dense<0.000000e+00> : vector<4x8x8xf32>
    %325 = tpu.matmul %320, %322, %cst_112 {dimension_numbers = #tpu.dot_dimension_numbers<[2], [2], [1], [1], [0, 0, 0, 1, 1, 1], [0], [0]>} : vector<4x8x16xbf16>, vector<4x8x16xbf16>, vector<4x8x8xf32> -> vector<4x8x8xf32>
    "tpu.trace_stop"() : () -> ()
    %326 = vector.broadcast %6 : vector<4x1x8xf32> to vector<4x8x8xf32>
    %327 = arith.addf %325, %326 : vector<4x8x8xf32>
    %cst_113 = arith.constant dense<0xFF800000> : vector<4x8xf32>
    %328 = vector.multi_reduction <maximumf>, %327, %cst_113 [2] : vector<4x8x8xf32> to vector<4x8xf32>
    %329 = vector.shape_cast %328 : vector<4x8xf32> to vector<4x8x1xf32>
    %330 = vector.broadcast %329 : vector<4x8x1xf32> to vector<4x8x8xf32>
    %331 = arith.subf %327, %330 : vector<4x8x8xf32>
    %332 = math.exp %331 : vector<4x8x8xf32>
    %cst_114 = arith.constant dense<0.000000e+00> : vector<4x8xf32>
    %333 = vector.multi_reduction <add>, %332, %cst_114 [2] : vector<4x8x8xf32> to vector<4x8xf32>
    %334 = vector.shape_cast %333 : vector<4x8xf32> to vector<4x8x1xf32>
    %335 = tpu.reciprocal %334 {approx = true} : vector<4x8x1xf32> -> vector<4x8x1xf32>
    %336 = vector.broadcast %335 : vector<4x8x1xf32> to vector<4x8x8xf32>
    %337 = arith.mulf %332, %336 : vector<4x8x8xf32>
    %338 = arith.truncf %337 : vector<4x8x8xf32> to vector<4x8x8xbf16>
    "tpu.trace_start"() <{level = 10 : i32, message = "bqk,bkd->bqd"}> : () -> ()
    %cst_115 = arith.constant dense<0.000000e+00> : vector<4x8x16xf32>
    %339 = tpu.matmul %338, %324, %cst_115 {dimension_numbers = #tpu.dot_dimension_numbers<[2], [1], [1], [2], [0, 0, 0, 1, 1, 2], [0], [0]>} : vector<4x8x8xbf16>, vector<4x8x16xbf16>, vector<4x8x16xf32> -> vector<4x8x16xf32>
    "tpu.trace_stop"() : () -> ()
    %340 = vector.shape_cast %339 : vector<4x8x16xf32> to vector<32x16xf32>
    %341 = arith.truncf %340 : vector<32x16xf32> to vector<32x16xbf16>
    %342 = vector.extract_strided_slice %263 {offsets = [2, 0, 0], sizes = [1, 16, 64], strides = [1, 1, 1]} : vector<4x16x64xbf16> to vector<1x16x64xbf16>
    %343 = vector.shape_cast %342 : vector<1x16x64xbf16> to vector<16x64xbf16>
    %cst_116 = arith.constant dense<0.000000e+00> : vector<32x64xf32>
    %344 = tpu.matmul %341, %343, %cst_116 {dimension_numbers = #tpu.dot_dimension_numbers<[1], [0], [0], [1], [0, 0, 1, 1], [], []>} : vector<32x16xbf16>, vector<16x64xbf16>, vector<32x64xf32> -> vector<32x64xf32>
    %345 = arith.addf %318, %344 : vector<32x64xf32>
    %346 = vector.extract_strided_slice %257 {offsets = [0, 48], sizes = [32, 16], strides = [1, 1]} : vector<32x64xbf16> to vector<32x16xbf16>
    %347 = vector.shape_cast %346 : vector<32x16xbf16> to vector<4x8x16xbf16>
    %348 = vector.extract_strided_slice %259 {offsets = [0, 48], sizes = [32, 16], strides = [1, 1]} : vector<32x64xbf16> to vector<32x16xbf16>
    %349 = vector.shape_cast %348 : vector<32x16xbf16> to vector<4x8x16xbf16>
    %350 = vector.extract_strided_slice %261 {offsets = [0, 48], sizes = [32, 16], strides = [1, 1]} : vector<32x64xbf16> to vector<32x16xbf16>
    %351 = vector.shape_cast %350 : vector<32x16xbf16> to vector<4x8x16xbf16>
    "tpu.trace_start"() <{level = 10 : i32, message = "bqd,bkd->bqk"}> : () -> ()
    %cst_117 = arith.constant dense<0.000000e+00> : vector<4x8x8xf32>
    %352 = tpu.matmul %347, %349, %cst_117 {dimension_numbers = #tpu.dot_dimension_numbers<[2], [2], [1], [1], [0, 0, 0, 1, 1, 1], [0], [0]>} : vector<4x8x16xbf16>, vector<4x8x16xbf16>, vector<4x8x8xf32> -> vector<4x8x8xf32>
    "tpu.trace_stop"() : () -> ()
    %353 = vector.broadcast %6 : vector<4x1x8xf32> to vector<4x8x8xf32>
    %354 = arith.addf %352, %353 : vector<4x8x8xf32>
    %cst_118 = arith.constant dense<0xFF800000> : vector<4x8xf32>
    %355 = vector.multi_reduction <maximumf>, %354, %cst_118 [2] : vector<4x8x8xf32> to vector<4x8xf32>
    %356 = vector.shape_cast %355 : vector<4x8xf32> to vector<4x8x1xf32>
    %357 = vector.broadcast %356 : vector<4x8x1xf32> to vector<4x8x8xf32>
    %358 = arith.subf %354, %357 : vector<4x8x8xf32>
    %359 = math.exp %358 : vector<4x8x8xf32>
    %cst_119 = arith.constant dense<0.000000e+00> : vector<4x8xf32>
    %360 = vector.multi_reduction <add>, %359, %cst_119 [2] : vector<4x8x8xf32> to vector<4x8xf32>
    %361 = vector.shape_cast %360 : vector<4x8xf32> to vector<4x8x1xf32>
    %362 = tpu.reciprocal %361 {approx = true} : vector<4x8x1xf32> -> vector<4x8x1xf32>
    %363 = vector.broadcast %362 : vector<4x8x1xf32> to vector<4x8x8xf32>
    %364 = arith.mulf %359, %363 : vector<4x8x8xf32>
    %365 = arith.truncf %364 : vector<4x8x8xf32> to vector<4x8x8xbf16>
    "tpu.trace_start"() <{level = 10 : i32, message = "bqk,bkd->bqd"}> : () -> ()
    %cst_120 = arith.constant dense<0.000000e+00> : vector<4x8x16xf32>
    %366 = tpu.matmul %365, %351, %cst_120 {dimension_numbers = #tpu.dot_dimension_numbers<[2], [1], [1], [2], [0, 0, 0, 1, 1, 2], [0], [0]>} : vector<4x8x8xbf16>, vector<4x8x16xbf16>, vector<4x8x16xf32> -> vector<4x8x16xf32>
    "tpu.trace_stop"() : () -> ()
    %367 = vector.shape_cast %366 : vector<4x8x16xf32> to vector<32x16xf32>
    %368 = arith.truncf %367 : vector<32x16xf32> to vector<32x16xbf16>
    %369 = vector.extract_strided_slice %263 {offsets = [3, 0, 0], sizes = [1, 16, 64], strides = [1, 1, 1]} : vector<4x16x64xbf16> to vector<1x16x64xbf16>
    %370 = vector.shape_cast %369 : vector<1x16x64xbf16> to vector<16x64xbf16>
    %cst_121 = arith.constant dense<0.000000e+00> : vector<32x64xf32>
    %371 = tpu.matmul %368, %370, %cst_121 {dimension_numbers = #tpu.dot_dimension_numbers<[1], [0], [0], [1], [0, 0, 1, 1], [], []>} : vector<32x16xbf16>, vector<16x64xbf16>, vector<32x64xf32> -> vector<32x64xf32>
    %372 = arith.addf %345, %371 : vector<32x64xf32>
    %c1_122 = arith.constant 1 : index
    %c0_123 = arith.constant 0 : index
    %c0_124 = arith.constant 0 : index
    %373 = vector.load %arg8[%c1_122, %c0_123, %c0_124] : memref<2x1x64xf32, #tpu.memory_space<vmem>>, vector<1x1x64xf32>
    %374 = vector.shape_cast %373 : vector<1x1x64xf32> to vector<1x64xf32>
    %375 = vector.broadcast %374 : vector<1x64xf32> to vector<32x64xf32>
    %376 = arith.addf %372, %375 : vector<32x64xf32>
    %377 = arith.addf %376, %245 : vector<32x64xf32>
    %c1_125 = arith.constant 1 : index
    %c0_126 = arith.constant 0 : index
    %c0_127 = arith.constant 0 : index
    %378 = vector.load %arg9[%c1_125, %c0_126, %c0_127] : memref<2x1x64xf32, #tpu.memory_space<vmem>>, vector<1x1x64xf32>
    %379 = vector.shape_cast %378 : vector<1x1x64xf32> to vector<1x64xf32>
    %c1_128 = arith.constant 1 : index
    %c0_129 = arith.constant 0 : index
    %c0_130 = arith.constant 0 : index
    %380 = vector.load %arg10[%c1_128, %c0_129, %c0_130] : memref<2x1x64xf32, #tpu.memory_space<vmem>>, vector<1x1x64xf32>
    %381 = vector.shape_cast %380 : vector<1x1x64xf32> to vector<1x64xf32>
    %cst_131 = arith.constant dense<0.000000e+00> : vector<32xf32>
    %382 = vector.multi_reduction <add>, %377, %cst_131 [1] : vector<32x64xf32> to vector<32xf32>
    %383 = vector.shape_cast %382 : vector<32xf32> to vector<32x1xf32>
    %cst_132 = arith.constant 6.400000e+01 : f32
    %384 = vector.broadcast %cst_132 : f32 to vector<32x1xf32>
    %385 = arith.divf %383, %384 : vector<32x1xf32>
    %386 = vector.broadcast %385 : vector<32x1xf32> to vector<32x64xf32>
    %387 = arith.subf %377, %386 : vector<32x64xf32>
    %388 = arith.mulf %387, %387 : vector<32x64xf32>
    %cst_133 = arith.constant dense<0.000000e+00> : vector<32xf32>
    %389 = vector.multi_reduction <add>, %388, %cst_133 [1] : vector<32x64xf32> to vector<32xf32>
    %390 = vector.shape_cast %389 : vector<32xf32> to vector<32x1xf32>
    %cst_134 = arith.constant 6.400000e+01 : f32
    %391 = vector.broadcast %cst_134 : f32 to vector<32x1xf32>
    %392 = arith.divf %390, %391 : vector<32x1xf32>
    %393 = vector.broadcast %385 : vector<32x1xf32> to vector<32x64xf32>
    %394 = arith.subf %377, %393 : vector<32x64xf32>
    %cst_135 = arith.constant 9.99999996E-13 : f32
    %395 = vector.broadcast %cst_135 : f32 to vector<32x1xf32>
    %396 = arith.addf %392, %395 : vector<32x1xf32>
    %397 = math.rsqrt %396 : vector<32x1xf32>
    %398 = vector.broadcast %397 : vector<32x1xf32> to vector<32x64xf32>
    %399 = arith.mulf %394, %398 : vector<32x64xf32>
    %400 = vector.broadcast %379 : vector<1x64xf32> to vector<32x64xf32>
    %401 = arith.mulf %399, %400 : vector<32x64xf32>
    %402 = vector.broadcast %381 : vector<1x64xf32> to vector<32x64xf32>
    %403 = arith.addf %401, %402 : vector<32x64xf32>
    %404 = arith.truncf %403 : vector<32x64xf32> to vector<32x64xbf16>
    %c1_136 = arith.constant 1 : index
    %c0_137 = arith.constant 0 : index
    %c0_138 = arith.constant 0 : index
    %405 = vector.load %arg11[%c1_136, %c0_137, %c0_138] : memref<2x64x128xbf16, #tpu.memory_space<vmem>>, vector<1x64x128xbf16>
    %406 = vector.shape_cast %405 : vector<1x64x128xbf16> to vector<64x128xbf16>
    %cst_139 = arith.constant dense<0.000000e+00> : vector<32x128xf32>
    %407 = tpu.matmul %404, %406, %cst_139 {dimension_numbers = #tpu.dot_dimension_numbers<[1], [0], [0], [1], [0, 0, 1, 1], [], []>} : vector<32x64xbf16>, vector<64x128xbf16>, vector<32x128xf32> -> vector<32x128xf32>
    %c1_140 = arith.constant 1 : index
    %c0_141 = arith.constant 0 : index
    %c0_142 = arith.constant 0 : index
    %408 = vector.load %arg12[%c1_140, %c0_141, %c0_142] : memref<2x1x128xf32, #tpu.memory_space<vmem>>, vector<1x1x128xf32>
    %409 = vector.shape_cast %408 : vector<1x1x128xf32> to vector<1x128xf32>
    %410 = vector.broadcast %409 : vector<1x128xf32> to vector<32x128xf32>
    %411 = arith.addf %407, %410 : vector<32x128xf32>
    %cst_143 = arith.constant 5.000000e-01 : f32
    %412 = vector.broadcast %cst_143 : f32 to vector<32x128xf32>
    %413 = arith.mulf %412, %411 : vector<32x128xf32>
    %cst_144 = arith.constant 4.471500e-02 : f32
    %414 = vector.broadcast %cst_144 : f32 to vector<32x128xf32>
    %415 = arith.mulf %414, %411 : vector<32x128xf32>
    %416 = arith.mulf %415, %411 : vector<32x128xf32>
    %417 = arith.mulf %416, %411 : vector<32x128xf32>
    %418 = arith.addf %411, %417 : vector<32x128xf32>
    %cst_145 = arith.constant 0.797884583 : f32
    %419 = vector.broadcast %cst_145 : f32 to vector<32x128xf32>
    %420 = arith.mulf %419, %418 : vector<32x128xf32>
    %421 = math.tanh %420 : vector<32x128xf32>
    %cst_146 = arith.constant 1.000000e+00 : f32
    %422 = vector.broadcast %cst_146 : f32 to vector<32x128xf32>
    %423 = arith.addf %422, %421 : vector<32x128xf32>
    %424 = arith.mulf %413, %423 : vector<32x128xf32>
    %425 = arith.truncf %424 : vector<32x128xf32> to vector<32x128xbf16>
    %c1_147 = arith.constant 1 : index
    %c0_148 = arith.constant 0 : index
    %c0_149 = arith.constant 0 : index
    %426 = vector.load %arg13[%c1_147, %c0_148, %c0_149] : memref<2x128x64xbf16, #tpu.memory_space<vmem>>, vector<1x128x64xbf16>
    %427 = vector.shape_cast %426 : vector<1x128x64xbf16> to vector<128x64xbf16>
    %cst_150 = arith.constant dense<0.000000e+00> : vector<32x64xf32>
    %428 = tpu.matmul %425, %427, %cst_150 {dimension_numbers = #tpu.dot_dimension_numbers<[1], [0], [0], [1], [0, 0, 1, 1], [], []>} : vector<32x128xbf16>, vector<128x64xbf16>, vector<32x64xf32> -> vector<32x64xf32>
    %c1_151 = arith.constant 1 : index
    %c0_152 = arith.constant 0 : index
    %c0_153 = arith.constant 0 : index
    %429 = vector.load %arg14[%c1_151, %c0_152, %c0_153] : memref<2x1x64xf32, #tpu.memory_space<vmem>>, vector<1x1x64xf32>
    %430 = vector.shape_cast %429 : vector<1x1x64xf32> to vector<1x64xf32>
    %431 = vector.broadcast %430 : vector<1x64xf32> to vector<32x64xf32>
    %432 = arith.addf %428, %431 : vector<32x64xf32>
    %433 = arith.addf %432, %403 : vector<32x64xf32>
    %c1_154 = arith.constant 1 : index
    %c0_155 = arith.constant 0 : index
    %c0_156 = arith.constant 0 : index
    %434 = vector.load %arg15[%c1_154, %c0_155, %c0_156] : memref<2x1x64xf32, #tpu.memory_space<vmem>>, vector<1x1x64xf32>
    %435 = vector.shape_cast %434 : vector<1x1x64xf32> to vector<1x64xf32>
    %c1_157 = arith.constant 1 : index
    %c0_158 = arith.constant 0 : index
    %c0_159 = arith.constant 0 : index
    %436 = vector.load %arg16[%c1_157, %c0_158, %c0_159] : memref<2x1x64xf32, #tpu.memory_space<vmem>>, vector<1x1x64xf32>
    %437 = vector.shape_cast %436 : vector<1x1x64xf32> to vector<1x64xf32>
    %cst_160 = arith.constant dense<0.000000e+00> : vector<32xf32>
    %438 = vector.multi_reduction <add>, %433, %cst_160 [1] : vector<32x64xf32> to vector<32xf32>
    %439 = vector.shape_cast %438 : vector<32xf32> to vector<32x1xf32>
    %cst_161 = arith.constant 6.400000e+01 : f32
    %440 = vector.broadcast %cst_161 : f32 to vector<32x1xf32>
    %441 = arith.divf %439, %440 : vector<32x1xf32>
    %442 = vector.broadcast %441 : vector<32x1xf32> to vector<32x64xf32>
    %443 = arith.subf %433, %442 : vector<32x64xf32>
    %444 = arith.mulf %443, %443 : vector<32x64xf32>
    %cst_162 = arith.constant dense<0.000000e+00> : vector<32xf32>
    %445 = vector.multi_reduction <add>, %444, %cst_162 [1] : vector<32x64xf32> to vector<32xf32>
    %446 = vector.shape_cast %445 : vector<32xf32> to vector<32x1xf32>
    %cst_163 = arith.constant 6.400000e+01 : f32
    %447 = vector.broadcast %cst_163 : f32 to vector<32x1xf32>
    %448 = arith.divf %446, %447 : vector<32x1xf32>
    %449 = vector.broadcast %441 : vector<32x1xf32> to vector<32x64xf32>
    %450 = arith.subf %433, %449 : vector<32x64xf32>
    %cst_164 = arith.constant 9.99999996E-13 : f32
    %451 = vector.broadcast %cst_164 : f32 to vector<32x1xf32>
    %452 = arith.addf %448, %451 : vector<32x1xf32>
    %453 = math.rsqrt %452 : vector<32x1xf32>
    %454 = vector.broadcast %453 : vector<32x1xf32> to vector<32x64xf32>
    %455 = arith.mulf %450, %454 : vector<32x64xf32>
    %456 = vector.broadcast %435 : vector<1x64xf32> to vector<32x64xf32>
    %457 = arith.mulf %455, %456 : vector<32x64xf32>
    %458 = vector.broadcast %437 : vector<1x64xf32> to vector<32x64xf32>
    %459 = arith.addf %457, %458 : vector<32x64xf32>
    %460 = tpu.iota {dimensions = array<i32: 0>} : vector<4x1xi32>
    %c0_165 = arith.constant 0 : index
    %c0_166 = arith.constant 0 : index
    %461 = vector.load %arg2[%c0_165, %c0_166] : memref<4x1xi32, #tpu.memory_space<vmem>>, vector<4x1xi32>
    %c8_i32 = arith.constant 8 : i32
    %462 = vector.broadcast %c8_i32 : i32 to vector<4x1xi32>
    %463 = arith.muli %460, %462 : vector<4x1xi32>
    %464 = arith.addi %461, %463 : vector<4x1xi32>
    %465 = tpu.iota {dimensions = array<i32: 1>} : vector<4x32xi32>
    %466 = vector.broadcast %464 : vector<4x1xi32> to vector<4x32xi32>
    %467 = arith.cmpi eq, %465, %466 : vector<4x32xi32>
    %468 = arith.extui %467 : vector<4x32xi1> to vector<4x32xi32>
    %469 = arith.sitofp %468 : vector<4x32xi32> to vector<4x32xf32>
    %cst_167 = arith.constant dense<0.000000e+00> : vector<4x64xf32>
    %470 = tpu.matmul %469, %459, %cst_167 {dimension_numbers = #tpu.dot_dimension_numbers<[1], [0], [0], [1], [0, 0, 1, 1], [], []>} : vector<4x32xf32>, vector<32x64xf32>, vector<4x64xf32> -> vector<4x64xf32>
    %471 = arith.mulf %470, %470 : vector<4x64xf32>
    %cst_168 = arith.constant dense<0.000000e+00> : vector<4xf32>
    %472 = vector.multi_reduction <add>, %471, %cst_168 [1] : vector<4x64xf32> to vector<4xf32>
    %473 = vector.shape_cast %472 : vector<4xf32> to vector<4x1xf32>
    %cst_169 = arith.constant 1.000000e-24 : f32
    %474 = vector.broadcast %cst_169 : f32 to vector<4x1xf32>
    %475 = arith.maximumf %473, %474 : vector<4x1xf32>
    %476 = math.rsqrt %475 : vector<4x1xf32>
    %477 = vector.broadcast %476 : vector<4x1xf32> to vector<4x64xf32>
    %478 = arith.mulf %470, %477 : vector<4x64xf32>
    %c0_170 = arith.constant 0 : index
    %c0_171 = arith.constant 0 : index
    %479 = vector.load %arg17[%c0_170, %c0_171] : memref<4x64xf32, #tpu.memory_space<vmem>>, vector<4x64xf32>
    tpu.vector_store %arg17[%c0_170, %c0_171], %478 {strides = array<i32>} : memref<4x64xf32, #tpu.memory_space<vmem>>, vector<4x64xf32>,
    return
  }
}

</mosaic_0001>

<llo_original>
// kernel: bert_contrastive_forward.1
$region0: #{bert_contrastive_forward.1}
  #allocation0 [shape = 'u32[]', space=smem, size = 0x4, offset = 0x4, fixed_abs, tag = 'smem constant byte address 0x4 - core index']
  #allocation1 [shape = 'u32[72,128]{1,0:T(1,128)}', space=vmem, size = 0x9000, scoped, tag = 'internal scratch']
  %s0 = inlined_call_operand.vmem [shape: f32[32,64], index: 0, kind: input, shape index: {}]
  %s1 = inlined_call_operand.vmem [shape: f32[4,8], index: 1, kind: input, shape index: {}]
  %s2 = inlined_call_operand.vmem [shape: s32[4,1], index: 2, kind: input, shape index: {}]
  %s3 = inlined_call_operand.vmem [shape: f32[1,64], index: 3, kind: input, shape index: {}]
  %s4 = inlined_call_operand.vmem [shape: f32[1,64], index: 4, kind: input, shape index: {}]
  %s5 = inlined_call_operand.vmem [shape: bf16[2,64,192], index: 5, kind: input, shape index: {}]
  %s6 = inlined_call_operand.vmem [shape: f32[2,1,192], index: 6, kind: input, shape index: {}]
  %s7 = inlined_call_operand.vmem [shape: bf16[2,4,16,64], index: 7, kind: input, shape index: {}]
  %s8 = inlined_call_operand.vmem [shape: f32[2,1,64], index: 8, kind: input, shape index: {}]
  %s9 = inlined_call_operand.vmem [shape: f32[2,1,64], index: 9, kind: input, shape index: {}]
  %s10 = inlined_call_operand.vmem [shape: f32[2,1,64], index: 10, kind: input, shape index: {}]
  %s11 = inlined_call_operand.vmem [shape: bf16[2,64,128], index: 11, kind: input, shape index: {}]
  %s12 = inlined_call_operand.vmem [shape: f32[2,1,128], index: 12, kind: input, shape index: {}]
  %s13 = inlined_call_operand.vmem [shape: bf16[2,128,64], index: 13, kind: input, shape index: {}]
  %s14 = inlined_call_operand.vmem [shape: f32[2,1,64], index: 14, kind: input, shape index: {}]
  %s15 = inlined_call_operand.vmem [shape: f32[2,1,64], index: 15, kind: input, shape index: {}]
  %s16 = inlined_call_operand.vmem [shape: f32[2,1,64], index: 16, kind: input, shape index: {}]
  %s17 = inlined_call_operand.vmem [shape: f32[4,64], index: 17, kind: output, shape index: {}]
  %s18 = sld [smem:[#allocation0]]
  $region78: #{bert_contrastive_forward.1} parent=0
    _
  %s20 = ssub.s32 1, %s18
  %s21 = scalar_select 0, %s20, %s18
  // Predicated region
  $region2: #{bert_contrastive_forward.1} parent=0 // pred_check
    _
  $region3: #{bert_contrastive_forward.1} parent=0 // pred_check_branch
    %23 = sbr.rel (0) target = $region5
  $region4: #{bert_contrastive_forward.1} parent=0 // pred_region
    _
  $region5: #{bert_contrastive_forward.1} parent=0 // pred_fallthru
    _
  // Predicated region
  $region6: #{bert_contrastive_forward.1} parent=0 // pred_check
    _
  $region7: #{bert_contrastive_forward.1} parent=0 // pred_check_branch
    %25 = sbr.rel (0) target = $region9
  $region8: #{bert_contrastive_forward.1} parent=0 // pred_region
    _
  $region9: #{bert_contrastive_forward.1} parent=0 // pred_fallthru
    _
  // Predicated region
  $region10: #{bert_contrastive_forward.1} parent=0 // pred_check
    _
  $region11: #{bert_contrastive_forward.1} parent=0 // pred_check_branch
    %27 = sbr.rel (0) target = $region13
  $region12: #{bert_contrastive_forward.1} parent=0 // pred_region
    _
  $region13: #{bert_contrastive_forward.1} parent=0 // pred_fallthru
    _
  // Predicated region
  $region14: #{bert_contrastive_forward.1} parent=0 // pred_check
    _
  $region15: #{bert_contrastive_forward.1} parent=0 // pred_check_branch
    %29 = sbr.rel (0) target = $region17
  $region16: #{bert_contrastive_forward.1} parent=0 // pred_region
    _
  $region17: #{bert_contrastive_forward.1} parent=0 // pred_fallthru
    _
  // Predicated region
  $region18: #{bert_contrastive_forward.1} parent=0 // pred_check
    _
  $region19: #{bert_contrastive_forward.1} parent=0 // pred_check_branch
    %31 = sbr.rel (0) target = $region21
  $region20: #{bert_contrastive_forward.1} parent=0 // pred_region
    _
  $region21: #{bert_contrastive_forward.1} parent=0 // pred_fallthru
    _
  // Predicated region
  $region22: #{bert_contrastive_forward.1} parent=0 // pred_check
    _
  $region23: #{bert_contrastive_forward.1} parent=0 // pred_check_branch
    %33 = sbr.rel (0) target = $region25
  $region24: #{bert_contrastive_forward.1} parent=0 // pred_region
    _
  $region25: #{bert_contrastive_forward.1} parent=0 // pred_fallthru
    _
  // Predicated region
  $region26: #{bert_contrastive_forward.1} parent=0 // pred_check
    _
  $region27: #{bert_contrastive_forward.1} parent=0 // pred_check_branch
    %35 = sbr.rel (0) target = $region29
  $region28: #{bert_contrastive_forward.1} parent=0 // pred_region
    _
  $region29: #{bert_contrastive_forward.1} parent=0 // pred_fallthru
    _
  // Predicated region
  $region30: #{bert_contrastive_forward.1} parent=0 // pred_check
    _
  $region31: #{bert_contrastive_forward.1} parent=0 // pred_check_branch
    %37 = sbr.rel (0) target = $region33
  $region32: #{bert_contrastive_forward.1} parent=0 // pred_region
    _
  $region33: #{bert_contrastive_forward.1} parent=0 // pred_fallthru
    _
  // Predicated region
  $region34: #{bert_contrastive_forward.1} parent=0 // pred_check
    _
  $region35: #{bert_contrastive_forward.1} parent=0 // pred_check_branch
    %39 = sbr.rel (0) target = $region37
  $region36: #{bert_contrastive_forward.1} parent=0 // pred_region
    _
  $region37: #{bert_contrastive_forward.1} parent=0 // pred_fallthru
    _
  // Predicated region
  $region38: #{bert_contrastive_forward.1} parent=0 // pred_check
    _
  $region39: #{bert_contrastive_forward.1} parent=0 // pred_check_branch
    %41 = sbr.rel (0) target = $region41
  $region40: #{bert_contrastive_forward.1} parent=0 // pred_region
    _
  $region41: #{bert_contrastive_forward.1} parent=0 // pred_fallthru
    _
  // Predicated region
  $region42: #{bert_contrastive_forward.1} parent=0 // pred_check
    _
  $region43: #{bert_contrastive_forward.1} parent=0 // pred_check_branch
    %43 = sbr.rel (0) target = $region45
  $region44: #{bert_contrastive_forward.1} parent=0 // pred_region
    _
  $region45: #{bert_contrastive_forward.1} parent=0 // pred_fallthru
    _
  // Predicated region
  $region46: #{bert_contrastive_forward.1} parent=0 // pred_check
    _
  $region47: #{bert_contrastive_forward.1} parent=0 // pred_check_branch
    %45 = sbr.rel (0) target = $region49
  $region48: #{bert_contrastive_forward.1} parent=0 // pred_region
    _
  $region49: #{bert_contrastive_forward.1} parent=0 // pred_fallthru
    _
  // Predicated region
  $region50: #{bert_contrastive_forward.1} parent=0 // pred_check
    _
  $region51: #{bert_contrastive_forward.1} parent=0 // pred_check_branch
    %47 = sbr.rel (0) target = $region53
  $region52: #{bert_contrastive_forward.1} parent=0 // pred_region
    _
  $region53: #{bert_contrastive_forward.1} parent=0 // pred_fallthru
    _
  // Predicated region
  $region54: #{bert_contrastive_forward.1} parent=0 // pred_check
    _
  $region55: #{bert_contrastive_forward.1} parent=0 // pred_check_branch
    %49 = sbr.rel (0) target = $region57
  $region56: #{bert_contrastive_forward.1} parent=0 // pred_region
    _
  $region57: #{bert_contrastive_forward.1} parent=0 // pred_fallthru
    _
  // Predicated region
  $region58: #{bert_contrastive_forward.1} parent=0 // pred_check
    _
  $region59: #{bert_contrastive_forward.1} parent=0 // pred_check_branch
    %51 = sbr.rel (0) target = $region61
  $region60: #{bert_contrastive_forward.1} parent=0 // pred_region
    _
  $region61: #{bert_contrastive_forward.1} parent=0 // pred_fallthru
    _
  // Predicated region
  $region62: #{bert_contrastive_forward.1} parent=0 // pred_check
    _
  $region63: #{bert_contrastive_forward.1} parent=0 // pred_check_branch
    %53 = sbr.rel (0) target = $region65
  $region64: #{bert_contrastive_forward.1} parent=0 // pred_region
    _
  $region65: #{bert_contrastive_forward.1} parent=0 // pred_fallthru
    _
  // Predicated region
  $region66: #{bert_contrastive_forward.1} parent=0 // pred_check
    _
  $region67: #{bert_contrastive_forward.1} parent=0 // pred_check_branch
    %55 = sbr.rel (0) target = $region69
  $region68: #{bert_contrastive_forward.1} parent=0 // pred_region
    _
  $region69: #{bert_contrastive_forward.1} parent=0 // pred_fallthru
    _
  %v57 = vld [vmem:[%s1] sm:$0xf]
  %vm58 = vcmp.gt.f32.partialorder %v57, 0.5
  %v59 = vsel %vm58, 0.0, -1e+09
  %v61 = vrot.slane %v59, 1
  %v62 = vrot.slane %v59, 2
  %v63 = vrot.slane %v59, 3
  %v64 = vld [vmem:[%s0] sm:$0xff]
  %v65 = vld [vmem:[%s0 + $0x8] sm:$0xff]
  %v66 = vld [vmem:[%s0 + $0x10] sm:$0xff]
  %v67 = vld [vmem:[%s0 + $0x18] sm:$0xff]
  %v68 = vld [vmem:[%s3] sm:$0x1]
  %v69 = vld [vmem:[%s4] sm:$0x1]
  %vm70 = vcmask 523264
  %v71 = vsel %vm70, %v64, 0.0
  %72 = vadd.xlane.f32.xlu0 %v71
  %v73 = vpop.xlane.xlu0 %72
  %v74 = vsel %vm70, %v65, 0.0
  %75 = vadd.xlane.f32.xlu0 %v74
  %v76 = vpop.xlane.xlu0 %75
  %v77 = vsel %vm70, %v66, 0.0
  %78 = vadd.xlane.f32.xlu0 %v77
  %v79 = vpop.xlane.xlu0 %78
  %v80 = vsel %vm70, %v67, 0.0
  %81 = vadd.xlane.f32.xlu0 %v80
  %v82 = vpop.xlane.xlu0 %81
  %v83 = vrcp.pop 64.0
  %v84 = vmul.f32 64.0, %v83
  %v85 = vsub.f32 1.0, %v84
  %v86 = vmul.f32 %v83, %v85
  %v87 = vadd.f32 %v83, %v86
  %vm88 = vweird.f32 %v83
  %v89 = vsel %vm88, %v83, %v87
  %v90 = vmul.f32 %v73, %v89
  %v91 = vmul.f32 %v76, %v89
  %v92 = vmul.f32 %v79, %v89
  %v93 = vmul.f32 %v82, %v89
  %v94 = vsub.f32 %v64, %v90
  %v95 = vsub.f32 %v65, %v91
  %v96 = vsub.f32 %v66, %v92
  %v97 = vsub.f32 %v67, %v93
  %v98 = vmul.f32 %v94, %v94
  %v99 = vmul.f32 %v95, %v95
  %v100 = vmul.f32 %v96, %v96
  %v101 = vmul.f32 %v97, %v97
  %v102 = vsel %vm70, %v98, 0.0
  %103 = vadd.xlane.f32.xlu0 %v102
  %v104 = vpop.xlane.xlu0 %103
  %v105 = vsel %vm70, %v99, 0.0
  %106 = vadd.xlane.f32.xlu0 %v105
  %v107 = vpop.xlane.xlu0 %106
  %v108 = vsel %vm70, %v100, 0.0
  %109 = vadd.xlane.f32.xlu0 %v108
  %v110 = vpop.xlane.xlu0 %109
  %v111 = vsel %vm70, %v101, 0.0
  %112 = vadd.xlane.f32.xlu0 %v111
  %v113 = vpop.xlane.xlu0 %112
  %v114 = vmul.f32 %v104, %v89
  %v115 = vmul.f32 %v107, %v89
  %v116 = vmul.f32 %v110, %v89
  %v117 = vmul.f32 %v113, %v89
  %v118 = vadd.f32 %v114, 1e-12
  %v119 = vadd.f32 %v115, 1e-12
  %v120 = vadd.f32 %v116, 1e-12
  %v121 = vadd.f32 %v117, 1e-12
  %v122 = vrsqrt.pop %v118
  %v123 = vmul.f32 %v122, %v118
  %v124 = vmul.f32 %v123, %v122
  %v125 = vmul.f32 0.5, %v124
  %v126 = vsub.f32 1.5, %v125
  %v127 = vmul.f32 %v122, %v126
  %vm128 = vweird.f32 %v118
  %vm129 = vweird.f32 %v122
  %vm130 = vmor %vm128, %vm129
  %v131 = vsel %vm130, %v122, %v127
  %v132 = vrsqrt.pop %v119
  %v133 = vmul.f32 %v132, %v119
  %v134 = vmul.f32 %v133, %v132
  %v135 = vmul.f32 0.5, %v134
  %v136 = vsub.f32 1.5, %v135
  %v137 = vmul.f32 %v132, %v136
  %vm138 = vweird.f32 %v119
  %vm139 = vweird.f32 %v132
  %vm140 = vmor %vm138, %vm139
  %v141 = vsel %vm140, %v132, %v137
  %v142 = vrsqrt.pop %v120
  %v143 = vmul.f32 %v142, %v120
  %v144 = vmul.f32 %v143, %v142
  %v145 = vmul.f32 0.5, %v144
  %v146 = vsub.f32 1.5, %v145
  %v147 = vmul.f32 %v142, %v146
  %vm148 = vweird.f32 %v120
  %vm149 = vweird.f32 %v142
  %vm150 = vmor %vm148, %vm149
  %v151 = vsel %vm150, %v142, %v147
  %v152 = vrsqrt.pop %v121
  %v153 = vmul.f32 %v152, %v121
  %v154 = vmul.f32 %v153, %v152
  %v155 = vmul.f32 0.5, %v154
  %v156 = vsub.f32 1.5, %v155
  %v157 = vmul.f32 %v152, %v156
  %vm158 = vweird.f32 %v121
  %vm159 = vweird.f32 %v152
  %vm160 = vmor %vm158, %vm159
  %v161 = vsel %vm160, %v152, %v157
  %v162 = vmul.f32 %v94, %v131
  %v163 = vmul.f32 %v95, %v141
  %v164 = vmul.f32 %v96, %v151
  %v165 = vmul.f32 %v97, %v161
  %v167 = vperm.slane %v68, 0
  %v169 = vmul.f32 %v162, %v167
  %v170 = vmul.f32 %v163, %v167
  %v171 = vmul.f32 %v164, %v167
  %v172 = vmul.f32 %v165, %v167
  %v174 = vperm.slane %v69, 0
  %v176 = vadd.f32 %v169, %v174
  %v177 = vadd.f32 %v170, %v174
  %v178 = vadd.f32 %v171, %v174
  %v179 = vadd.f32 %v172, %v174
  %v180 = vpack.c.bf16 %v177, %v176
  %v181 = vpack.c.bf16 %v179, %v178
  %v182 = vld [vmem:[%s5] sm:$0xff]
  %v183 = vld [vmem:[%s5 + $0x8] sm:$0xff]
  %v184 = vld [vmem:[%s5 + $0x10] sm:$0xff]
  %v185 = vld [vmem:[%s5 + $0x18] sm:$0xff]
  %v186 = vld [vmem:[%s5 + $0x20] sm:$0xff]
  %v187 = vld [vmem:[%s5 + $0x28] sm:$0xff]
  %v188 = vld [vmem:[%s5 + $0x30] sm:$0xff]
  %v189 = vld [vmem:[%s5 + $0x38] sm:$0xff]
  %v190 = vld [vmem:[%s6] sm:$0x3]
  %v192 = vperm.slane %v190, 0
  %v193 = vperm.slane %v190, 1
  %v204 = vunpack.c.l.b16 %v182
  %v205 = vunpack.c.h.b16 %v182
  %v206 = vunpack.c.l.b16 %v183
  %v207 = vunpack.c.h.b16 %v183
  %v208 = vunpack.c.l.b16 %v184
  %v209 = vunpack.c.h.b16 %v184
  %v210 = vunpack.c.l.b16 %v185
  %v211 = vunpack.c.h.b16 %v185
  %v212 = vunpack.c.l.b16 %v186
  %v213 = vunpack.c.h.b16 %v186
  %v214 = vunpack.c.l.b16 %v187
  %v215 = vunpack.c.h.b16 %v187
  %v216 = vunpack.c.l.b16 %v188
  %v217 = vunpack.c.h.b16 %v188
  %v218 = vunpack.c.l.b16 %v189
  %v219 = vunpack.c.h.b16 %v189
  %v220 = vpack.c.b16 %v206, %v204
  %v221 = vpack.c.b16 %v207, %v205
  %v222 = vpack.c.b16 %v210, %v208
  %v223 = vpack.c.b16 %v211, %v209
  %v224 = vpack.c.b16 %v214, %v212
  %v225 = vpack.c.b16 %v215, %v213
  %v226 = vpack.c.b16 %v218, %v216
  %v227 = vpack.c.b16 %v219, %v217
  %v237 = vsel %vm70, %v180, 0
  %v240 = vsel %vm70, %v181, 0
  %242 = vmatpush.bf16.msra.mxu0 0
  %243 = vmatpush.bf16.msra.mxu0 0
  %244 = vmatpush.bf16.msra.mxu0 0
  %245 = vmatpush.bf16.msra.mxu0 0
  %246 = vmatpush.bf16.msra.mxu0 %v226
  %247 = vmatpush.bf16.msra.mxu0 %v224
  %248 = vmatpush.bf16.msra.mxu0 %v222
  %249 = vmatpush.bf16.msra.mxu0 %v220
  %250 = vmatmul.bf16.gmra.mxu0 %v237
  %v251 = vpop.f32.mrf.mxu0
  %v252 = vadd.f32 %v192, %v251
  %v253 = vpop.f32.mrf.mxu0
  %v254 = vadd.f32 %v192, %v253
  %255 = vmatmul.bf16.gmra.mxu0 %v240
  %v256 = vpop.f32.mrf.mxu0
  %v257 = vadd.f32 %v192, %v256
  %v258 = vpop.f32.mrf.mxu0
  %v259 = vadd.f32 %v192, %v258
  %260 = vdwg.mxu0
  %261 = vmatpush.bf16.msra.mxu0 0
  %262 = vmatpush.bf16.msra.mxu0 0
  %263 = vmatpush.bf16.msra.mxu0 0
  %264 = vmatpush.bf16.msra.mxu0 0
  %265 = vmatpush.bf16.msra.mxu0 %v227
  %266 = vmatpush.bf16.msra.mxu0 %v225
  %267 = vmatpush.bf16.msra.mxu0 %v223
  %268 = vmatpush.bf16.msra.mxu0 %v221
  %269 = vmatmul.bf16.gmra.mxu0 %v237
  %v270 = vpop.f32.mrf.mxu0
  %v271 = vadd.f32 %v193, %v270
  %v272 = vpop.f32.mrf.mxu0
  %v273 = vadd.f32 %v193, %v272
  %274 = vmatmul.bf16.gmra.mxu0 %v240
  %v275 = vpop.f32.mrf.mxu0
  %v276 = vadd.f32 %v193, %v275
  %v277 = vpop.f32.mrf.mxu0
  %v278 = vadd.f32 %v193, %v277
  %279 = vdwg.mxu0
  %v280 = vmul.f32 %v252, 0.25
  %v281 = vmul.f32 %v254, 0.25
  %v282 = vmul.f32 %v257, 0.25
  %v283 = vmul.f32 %v259, 0.25
  %v284 = vpack.c.bf16 %v280, %v280
  %v285 = vpack.c.bf16 %v281, %v281
  %v286 = vpack.c.bf16 %v282, %v282
  %v287 = vpack.c.bf16 %v283, %v283
  %v288 = vpack.c.bf16 %v252, %v252
  %v289 = vpack.c.bf16 %v254, %v254
  %v290 = vpack.c.bf16 %v257, %v257
  %v291 = vpack.c.bf16 %v259, %v259
  %v292 = vpack.c.bf16 %v271, %v271
  %v293 = vpack.c.bf16 %v273, %v273
  %v294 = vpack.c.bf16 %v276, %v276
  %v295 = vpack.c.bf16 %v278, %v278
  %v296 = vld [vmem:[%s7] sm:$0xf]
  %v297 = vld [vmem:[%s7 + $0x4] sm:$0xf]
  %v298 = vld [vmem:[%s7 + $0x8] sm:$0xf]
  %v299 = vld [vmem:[%s7 + $0xc] sm:$0xf]
  %v300 = vld [vmem:[%s7 + $0x10] sm:$0xf]
  %v301 = vld [vmem:[%s7 + $0x14] sm:$0xf]
  %v302 = vld [vmem:[%s7 + $0x18] sm:$0xf]
  %v303 = vld [vmem:[%s7 + $0x1c] sm:$0xf]
  %v304 = vperm.slane %v59, 0
  %v305 = vperm.slane %v61, 0
  %v306 = vperm.slane %v62, 0
  %v307 = vperm.slane %v63, 0
  %v313 = vunpack.c.l.b16 %v288
  %v314 = vpack.c.b16 %v313, %v313
  %315 = vrot.lane.b32.xlu0 %v314, 64
  %v316 = vpop.permute.xlu0 %315
  %vm317 = vcmask 130048
  %v319 = vsel %vm317, %v284, 0
  %v322 = vsel %vm317, %v316, 0
  %324 = vmatpush.bf16.xpose.msra.mxu0 0
  %325 = vmatpush.bf16.xpose.msra.mxu0 0
  %326 = vmatpush.bf16.xpose.msra.mxu0 0
  %327 = vmatpush.bf16.xpose.msra.mxu0 0
  %328 = vmatpush.bf16.xpose.msra.mxu0 0
  %329 = vmatpush.bf16.xpose.msra.mxu0 0
  %330 = vmatpush.bf16.xpose.msra.mxu0 0
  %331 = vmatpush.bf16.xpose.msra.mxu0 %v322
  %332 = vmatmul.bf16.gmra.mxu0 %v319
  %v333 = vpop.f32.mrf.mxu0
  %v334 = vadd.f32 %v304, %v333
  %v335 = vpop.f32.mrf.mxu0
  %336 = vdwg.mxu0
  %v338 = vunpack.c.l.b16 %v289
  %v339 = vpack.c.b16 %v338, %v338
  %340 = vrot.lane.b32.xlu0 %v339, 64
  %v341 = vpop.permute.xlu0 %340
  %v343 = vsel %vm317, %v285, 0
  %v346 = vsel %vm317, %v341, 0
  %348 = vmatpush.bf16.xpose.msra.mxu0 0
  %349 = vmatpush.bf16.xpose.msra.mxu0 0
  %350 = vmatpush.bf16.xpose.msra.mxu0 0
  %351 = vmatpush.bf16.xpose.msra.mxu0 0
  %352 = vmatpush.bf16.xpose.msra.mxu0 0
  %353 = vmatpush.bf16.xpose.msra.mxu0 0
  %354 = vmatpush.bf16.xpose.msra.mxu0 0
  %355 = vmatpush.bf16.xpose.msra.mxu0 %v346
  %356 = vmatmul.bf16.gmra.mxu0 %v343
  %v357 = vpop.f32.mrf.mxu0
  %v358 = vadd.f32 %v305, %v357
  %v359 = vpop.f32.mrf.mxu0
  %360 = vdwg.mxu0
  %v362 = vunpack.c.l.b16 %v290
  %v363 = vpack.c.b16 %v362, %v362
  %364 = vrot.lane.b32.xlu0 %v363, 64
  %v365 = vpop.permute.xlu0 %364
  %v367 = vsel %vm317, %v286, 0
  %v370 = vsel %vm317, %v365, 0
  %372 = vmatpush.bf16.xpose.msra.mxu0 0
  %373 = vmatpush.bf16.xpose.msra.mxu0 0
  %374 = vmatpush.bf16.xpose.msra.mxu0 0
  %375 = vmatpush.bf16.xpose.msra.mxu0 0
  %376 = vmatpush.bf16.xpose.msra.mxu0 0
  %377 = vmatpush.bf16.xpose.msra.mxu0 0
  %378 = vmatpush.bf16.xpose.msra.mxu0 0
  %379 = vmatpush.bf16.xpose.msra.mxu0 %v370
  %380 = vmatmul.bf16.gmra.mxu0 %v367
  %v381 = vpop.f32.mrf.mxu0
  %v382 = vadd.f32 %v306, %v381
  %v383 = vpop.f32.mrf.mxu0
  %384 = vdwg.mxu0
  %v386 = vunpack.c.l.b16 %v291
  %v387 = vpack.c.b16 %v386, %v386
  %388 = vrot.lane.b32.xlu0 %v387, 64
  %v389 = vpop.permute.xlu0 %388
  %v391 = vsel %vm317, %v287, 0
  %v394 = vsel %vm317, %v389, 0
  %396 = vmatpush.bf16.xpose.msra.mxu0 0
  %397 = vmatpush.bf16.xpose.msra.mxu0 0
  %398 = vmatpush.bf16.xpose.msra.mxu0 0
  %399 = vmatpush.bf16.xpose.msra.mxu0 0
  %400 = vmatpush.bf16.xpose.msra.mxu0 0
  %401 = vmatpush.bf16.xpose.msra.mxu0 0
  %402 = vmatpush.bf16.xpose.msra.mxu0 0
  %403 = vmatpush.bf16.xpose.msra.mxu0 %v394
  %404 = vmatmul.bf16.gmra.mxu0 %v391
  %v405 = vpop.f32.mrf.mxu0
  %v406 = vadd.f32 %v307, %v405
  %v407 = vpop.f32.mrf.mxu0
  %408 = vdwg.mxu0
  %vm409 = vcmask 64512
  %v410 = vsel %vm409, %v334, -inf
  %411 = vmax.xlane.f32.xlu0 %v410
  %v412 = vpop.xlane.xlu0 %411
  %v413 = vsel %vm409, %v358, -inf
  %414 = vmax.xlane.f32.xlu0 %v413
  %v415 = vpop.xlane.xlu0 %414
  %v416 = vsel %vm409, %v382, -inf
  %417 = vmax.xlane.f32.xlu0 %v416
  %v418 = vpop.xlane.xlu0 %417
  %v419 = vsel %vm409, %v406, -inf
  %420 = vmax.xlane.f32.xlu0 %v419
  %v421 = vpop.xlane.xlu0 %420
  %v422 = vsub.f32 %v334, %v412
  %v423 = vsub.f32 %v358, %v415
  %v424 = vsub.f32 %v382, %v418
  %v425 = vsub.f32 %v406, %v421
  %v426 = vmul.f32 %v422, 1.442695
  %v427 = vpow.pop %v426
  %v428 = vmul.f32 %v423, 1.442695
  %v429 = vpow.pop %v428
  %v430 = vmul.f32 %v424, 1.442695
  %v431 = vpow.pop %v430
  %v432 = vmul.f32 %v425, 1.442695
  %v433 = vpow.pop %v432
  %v434 = vsel %vm409, %v427, 0.0
  %435 = vadd.xlane.f32.xlu0 %v434
  %v436 = vpop.xlane.xlu0 %435
  %v437 = vsel %vm409, %v429, 0.0
  %438 = vadd.xlane.f32.xlu0 %v437
  %v439 = vpop.xlane.xlu0 %438
  %v440 = vsel %vm409, %v431, 0.0
  %441 = vadd.xlane.f32.xlu0 %v440
  %v442 = vpop.xlane.xlu0 %441
  %v443 = vsel %vm409, %v433, 0.0
  %444 = vadd.xlane.f32.xlu0 %v443
  %v445 = vpop.xlane.xlu0 %444
  %v446 = vrcp.pop %v436
  %v447 = vrcp.pop %v439
  %v448 = vrcp.pop %v442
  %v449 = vrcp.pop %v445
  %v450 = vmul.f32 %v427, %v446
  %v451 = vmul.f32 %v429, %v447
  %v452 = vmul.f32 %v431, %v448
  %v453 = vmul.f32 %v433, %v449
  %v454 = vpack.c.bf16 %v450, %v450
  %v455 = vpack.c.bf16 %v451, %v451
  %v456 = vpack.c.bf16 %v452, %v452
  %v457 = vpack.c.bf16 %v453, %v453
  %v459 = vsel %vm409, %v454, 0
  %vm461 = vcmask 1043456
  %v463 = vsel %vm461, %v292, 0
  %465 = vmatpush.bf16.msra.mxu0 0
  %466 = vmatpush.bf16.msra.mxu0 0
  %467 = vmatpush.bf16.msra.mxu0 0
  %468 = vmatpush.bf16.msra.mxu0 0
  %469 = vmatpush.bf16.msra.mxu0 0
  %470 = vmatpush.bf16.msra.mxu0 0
  %471 = vmatpush.bf16.msra.mxu0 0
  %472 = vmatpush.bf16.msra.mxu0 %v463
  %473 = vmatmul.bf16.gmra.mxu0 %v459
  %v474 = vpop.f32.mrf.mxu0
  %v475 = vadd.f32 0.0, %v474
  %v476 = vpop.f32.mrf.mxu0
  %477 = vdwg.mxu0
  %v479 = vsel %vm409, %v455, 0
  %v482 = vsel %vm461, %v293, 0
  %484 = vmatpush.bf16.msra.mxu0 0
  %485 = vmatpush.bf16.msra.mxu0 0
  %486 = vmatpush.bf16.msra.mxu0 0
  %487 = vmatpush.bf16.msra.mxu0 0
  %488 = vmatpush.bf16.msra.mxu0 0
  %489 = vmatpush.bf16.msra.mxu0 0
  %490 = vmatpush.bf16.msra.mxu0 0
  %491 = vmatpush.bf16.msra.mxu0 %v482
  %492 = vmatmul.bf16.gmra.mxu0 %v479
  %v493 = vpop.f32.mrf.mxu0
  %v494 = vadd.f32 0.0, %v493
  %v495 = vpop.f32.mrf.mxu0
  %496 = vdwg.mxu0
  %v498 = vsel %vm409, %v456, 0
  %v501 = vsel %vm461, %v294, 0
  %503 = vmatpush.bf16.msra.mxu0 0
  %504 = vmatpush.bf16.msra.mxu0 0
  %505 = vmatpush.bf16.msra.mxu0 0
  %506 = vmatpush.bf16.msra.mxu0 0
  %507 = vmatpush.bf16.msra.mxu0 0
  %508 = vmatpush.bf16.msra.mxu0 0
  %509 = vmatpush.bf16.msra.mxu0 0
  %510 = vmatpush.bf16.msra.mxu0 %v501
  %511 = vmatmul.bf16.gmra.mxu0 %v498
  %v512 = vpop.f32.mrf.mxu0
  %v513 = vadd.f32 0.0, %v512
  %v514 = vpop.f32.mrf.mxu0
  %515 = vdwg.mxu0
  %v517 = vsel %vm409, %v457, 0
  %v520 = vsel %vm461, %v295, 0
  %522 = vmatpush.bf16.msra.mxu0 0
  %523 = vmatpush.bf16.msra.mxu0 0
  %524 = vmatpush.bf16.msra.mxu0 0
  %525 = vmatpush.bf16.msra.mxu0 0
  %526 = vmatpush.bf16.msra.mxu0 0
  %527 = vmatpush.bf16.msra.mxu0 0
  %528 = vmatpush.bf16.msra.mxu0 0
  %529 = vmatpush.bf16.msra.mxu0 %v520
  %530 = vmatmul.bf16.gmra.mxu0 %v517
  %v531 = vpop.f32.mrf.mxu0
  %v532 = vadd.f32 0.0, %v531
  %v533 = vpop.f32.mrf.mxu0
  %534 = vdwg.mxu0
  %v535 = vpack.c.bf16 %v494, %v475
  %v536 = vpack.c.bf16 %v532, %v513
  %v538 = vunpack.c.l.b16 %v284
  %v539 = vpack.c.b16 %v538, %v538
  %540 = vrot.lane.b32.xlu0 %v539, 112
  %v541 = vpop.permute.xlu0 %540
  %542 = vrot.lane.b32.xlu0 %v314, 48
  %v543 = vpop.permute.xlu0 %542
  %v545 = vsel %vm317, %v541, 0
  %v548 = vsel %vm317, %v543, 0
  %550 = vmatpush.bf16.xpose.msra.mxu0 0
  %551 = vmatpush.bf16.xpose.msra.mxu0 0
  %552 = vmatpush.bf16.xpose.msra.mxu0 0
  %553 = vmatpush.bf16.xpose.msra.mxu0 0
  %554 = vmatpush.bf16.xpose.msra.mxu0 0
  %555 = vmatpush.bf16.xpose.msra.mxu0 0
  %556 = vmatpush.bf16.xpose.msra.mxu0 0
  %557 = vmatpush.bf16.xpose.msra.mxu0 %v548
  %558 = vmatmul.bf16.gmra.mxu0 %v545
  %v559 = vpop.f32.mrf.mxu0
  %v560 = vadd.f32 %v304, %v559
  %v561 = vpop.f32.mrf.mxu0
  %562 = vdwg.mxu0
  %v564 = vunpack.c.l.b16 %v285
  %v565 = vpack.c.b16 %v564, %v564
  %566 = vrot.lane.b32.xlu0 %v565, 112
  %v567 = vpop.permute.xlu0 %566
  %568 = vrot.lane.b32.xlu0 %v339, 48
  %v569 = vpop.permute.xlu0 %568
  %v571 = vsel %vm317, %v567, 0
  %v574 = vsel %vm317, %v569, 0
  %576 = vmatpush.bf16.xpose.msra.mxu0 0
  %577 = vmatpush.bf16.xpose.msra.mxu0 0
  %578 = vmatpush.bf16.xpose.msra.mxu0 0
  %579 = vmatpush.bf16.xpose.msra.mxu0 0
  %580 = vmatpush.bf16.xpose.msra.mxu0 0
  %581 = vmatpush.bf16.xpose.msra.mxu0 0
  %582 = vmatpush.bf16.xpose.msra.mxu0 0
  %583 = vmatpush.bf16.xpose.msra.mxu0 %v574
  %584 = vmatmul.bf16.gmra.mxu0 %v571
  %v585 = vpop.f32.mrf.mxu0
  %v586 = vadd.f32 %v305, %v585
  %v587 = vpop.f32.mrf.mxu0
  %588 = vdwg.mxu0
  %v590 = vunpack.c.l.b16 %v286
  %v591 = vpack.c.b16 %v590, %v590
  %592 = vrot.lane.b32.xlu0 %v591, 112
  %v593 = vpop.permute.xlu0 %592
  %594 = vrot.lane.b32.xlu0 %v363, 48
  %v595 = vpop.permute.xlu0 %594
  %v597 = vsel %vm317, %v593, 0
  %v600 = vsel %vm317, %v595, 0
  %602 = vmatpush.bf16.xpose.msra.mxu0 0
  %603 = vmatpush.bf16.xpose.msra.mxu0 0
  %604 = vmatpush.bf16.xpose.msra.mxu0 0
  %605 = vmatpush.bf16.xpose.msra.mxu0 0
  %606 = vmatpush.bf16.xpose.msra.mxu0 0
  %607 = vmatpush.bf16.xpose.msra.mxu0 0
  %608 = vmatpush.bf16.xpose.msra.mxu0 0
  %609 = vmatpush.bf16.xpose.msra.mxu0 %v600
  %610 = vmatmul.bf16.gmra.mxu0 %v597
  %v611 = vpop.f32.mrf.mxu0
  %v612 = vadd.f32 %v306, %v611
  %v613 = vpop.f32.mrf.mxu0
  %614 = vdwg.mxu0
  %v616 = vunpack.c.l.b16 %v287
  %v617 = vpack.c.b16 %v616, %v616
  %618 = vrot.lane.b32.xlu0 %v617, 112
  %v619 = vpop.permute.xlu0 %618
  %620 = vrot.lane.b32.xlu0 %v387, 48
  %v621 = vpop.permute.xlu0 %620
  %v623 = vsel %vm317, %v619, 0
  %v626 = vsel %vm317, %v621, 0
  %628 = vmatpush.bf16.xpose.msra.mxu0 0
  %629 = vmatpush.bf16.xpose.msra.mxu0 0
  %630 = vmatpush.bf16.xpose.msra.mxu0 0
  %631 = vmatpush.bf16.xpose.msra.mxu0 0
  %632 = vmatpush.bf16.xpose.msra.mxu0 0
  %633 = vmatpush.bf16.xpose.msra.mxu0 0
  %634 = vmatpush.bf16.xpose.msra.mxu0 0
  %635 = vmatpush.bf16.xpose.msra.mxu0 %v626
  %636 = vmatmul.bf16.gmra.mxu0 %v623
  %v637 = vpop.f32.mrf.mxu0
  %v638 = vadd.f32 %v307, %v637
  %v639 = vpop.f32.mrf.mxu0
  %640 = vdwg.mxu0
  %v641 = vsel %vm409, %v560, -inf
  %642 = vmax.xlane.f32.xlu0 %v641
  %v643 = vpop.xlane.xlu0 %642
  %v644 = vsel %vm409, %v586, -inf
  %645 = vmax.xlane.f32.xlu0 %v644
  %v646 = vpop.xlane.xlu0 %645
  %v647 = vsel %vm409, %v612, -inf
  %648 = vmax.xlane.f32.xlu0 %v647
  %v649 = vpop.xlane.xlu0 %648
  %v650 = vsel %vm409, %v638, -inf
  %651 = vmax.xlane.f32.xlu0 %v650
  %v652 = vpop.xlane.xlu0 %651
  %v653 = vsub.f32 %v560, %v643
  %v654 = vsub.f32 %v586, %v646
  %v655 = vsub.f32 %v612, %v649
  %v656 = vsub.f32 %v638, %v652
  %v657 = vmul.f32 %v653, 1.442695
  %v658 = vpow.pop %v657
  %v659 = vmul.f32 %v654, 1.442695
  %v660 = vpow.pop %v659
  %v661 = vmul.f32 %v655, 1.442695
  %v662 = vpow.pop %v661
  %v663 = vmul.f32 %v656, 1.442695
  %v664 = vpow.pop %v663
  %v665 = vsel %vm409, %v658, 0.0
  %666 = vadd.xlane.f32.xlu0 %v665
  %v667 = vpop.xlane.xlu0 %666
  %v668 = vsel %vm409, %v660, 0.0
  %669 = vadd.xlane.f32.xlu0 %v668
  %v670 = vpop.xlane.xlu0 %669
  %v671 = vsel %vm409, %v662, 0.0
  %672 = vadd.xlane.f32.xlu0 %v671
  %v673 = vpop.xlane.xlu0 %672
  %v674 = vsel %vm409, %v664, 0.0
  %675 = vadd.xlane.f32.xlu0 %v674
  %v676 = vpop.xlane.xlu0 %675
  %v677 = vrcp.pop %v667
  %v678 = vrcp.pop %v670
  %v679 = vrcp.pop %v673
  %v680 = vrcp.pop %v676
  %v681 = vmul.f32 %v658, %v677
  %v682 = vmul.f32 %v660, %v678
  %v683 = vmul.f32 %v662, %v679
  %v684 = vmul.f32 %v664, %v680
  %v685 = vpack.c.bf16 %v681, %v681
  %v686 = vpack.c.bf16 %v682, %v682
  %v687 = vpack.c.bf16 %v683, %v683
  %v688 = vpack.c.bf16 %v684, %v684
  %v690 = vunpack.c.l.b16 %v292
  %v691 = vpack.c.b16 %v690, %v690
  %692 = vrot.lane.b32.xlu0 %v691, 112
  %v693 = vpop.permute.xlu0 %692
  %v695 = vsel %vm409, %v685, 0
  %v698 = vsel %vm461, %v693, 0
  %700 = vmatpush.bf16.msra.mxu0 0
  %701 = vmatpush.bf16.msra.mxu0 0
  %702 = vmatpush.bf16.msra.mxu0 0
  %703 = vmatpush.bf16.msra.mxu0 0
  %704 = vmatpush.bf16.msra.mxu0 0
  %705 = vmatpush.bf16.msra.mxu0 0
  %706 = vmatpush.bf16.msra.mxu0 0
  %707 = vmatpush.bf16.msra.mxu0 %v698
  %708 = vmatmul.bf16.gmra.mxu0 %v695
  %v709 = vpop.f32.mrf.mxu0
  %v710 = vadd.f32 0.0, %v709
  %v711 = vpop.f32.mrf.mxu0
  %712 = vdwg.mxu0
  %v714 = vunpack.c.l.b16 %v293
  %v715 = vpack.c.b16 %v714, %v714
  %716 = vrot.lane.b32.xlu0 %v715, 112
  %v717 = vpop.permute.xlu0 %716
  %v719 = vsel %vm409, %v686, 0
  %v722 = vsel %vm461, %v717, 0
  %724 = vmatpush.bf16.msra.mxu0 0
  %725 = vmatpush.bf16.msra.mxu0 0
  %726 = vmatpush.bf16.msra.mxu0 0
  %727 = vmatpush.bf16.msra.mxu0 0
  %728 = vmatpush.bf16.msra.mxu0 0
  %729 = vmatpush.bf16.msra.mxu0 0
  %730 = vmatpush.bf16.msra.mxu0 0
  %731 = vmatpush.bf16.msra.mxu0 %v722
  %732 = vmatmul.bf16.gmra.mxu0 %v719
  %v733 = vpop.f32.mrf.mxu0
  %v734 = vadd.f32 0.0, %v733
  %v735 = vpop.f32.mrf.mxu0
  %736 = vdwg.mxu0
  %v738 = vunpack.c.l.b16 %v294
  %v739 = vpack.c.b16 %v738, %v738
  %740 = vrot.lane.b32.xlu0 %v739, 112
  %v741 = vpop.permute.xlu0 %740
  %v743 = vsel %vm409, %v687, 0
  %v746 = vsel %vm461, %v741, 0
  %748 = vmatpush.bf16.msra.mxu0 0
  %749 = vmatpush.bf16.msra.mxu0 0
  %750 = vmatpush.bf16.msra.mxu0 0
  %751 = vmatpush.bf16.msra.mxu0 0
  %752 = vmatpush.bf16.msra.mxu0 0
  %753 = vmatpush.bf16.msra.mxu0 0
  %754 = vmatpush.bf16.msra.mxu0 0
  %755 = vmatpush.bf16.msra.mxu0 %v746
  %756 = vmatmul.bf16.gmra.mxu0 %v743
  %v757 = vpop.f32.mrf.mxu0
  %v758 = vadd.f32 0.0, %v757
  %v759 = vpop.f32.mrf.mxu0
  %760 = vdwg.mxu0
  %v762 = vunpack.c.l.b16 %v295
  %v763 = vpack.c.b16 %v762, %v762
  %764 = vrot.lane.b32.xlu0 %v763, 112
  %v765 = vpop.permute.xlu0 %764
  %v767 = vsel %vm409, %v688, 0
  %v770 = vsel %vm461, %v765, 0
  %772 = vmatpush.bf16.msra.mxu0 0
  %773 = vmatpush.bf16.msra.mxu0 0
  %774 = vmatpush.bf16.msra.mxu0 0
  %775 = vmatpush.bf16.msra.mxu0 0
  %776 = vmatpush.bf16.msra.mxu0 0
  %777 = vmatpush.bf16.msra.mxu0 0
  %778 = vmatpush.bf16.msra.mxu0 0
  %779 = vmatpush.bf16.msra.mxu0 %v770
  %780 = vmatmul.bf16.gmra.mxu0 %v767
  %v781 = vpop.f32.mrf.mxu0
  %v782 = vadd.f32 0.0, %v781
  %v783 = vpop.f32.mrf.mxu0
  %784 = vdwg.mxu0
  %v785 = vpack.c.bf16 %v734, %v710
  %v786 = vpack.c.bf16 %v782, %v758
  %v789 = vunpack.c.l.b16 %v298
  %v790 = vunpack.c.l.b16 %v299
  %v791 = vpack.c.b16 %v790, %v789
  %v794 = vsel %vm317, %v785, 0
  %v797 = vsel %vm317, %v786, 0
  %799 = vmatpush.bf16.msra.mxu0 0
  %800 = vmatpush.bf16.msra.mxu0 0
  %801 = vmatpush.bf16.msra.mxu0 0
  %802 = vmatpush.bf16.msra.mxu0 0
  %803 = vmatpush.bf16.msra.mxu0 0
  %804 = vmatpush.bf16.msra.mxu0 0
  %805 = vmatpush.bf16.msra.mxu0 0
  %806 = vmatpush.bf16.msra.mxu0 %v791
  %807 = vmatmul.bf16.gmra.mxu0 %v794
  %v808 = vpop.f32.mrf.mxu0
  %v809 = vadd.f32 0.0, %v808
  %v810 = vpop.f32.mrf.mxu0
  %v811 = vadd.f32 0.0, %v810
  %812 = vmatmul.bf16.gmra.mxu0 %v797
  %v813 = vpop.f32.mrf.mxu0
  %v814 = vadd.f32 0.0, %v813
  %v815 = vpop.f32.mrf.mxu0
  %v816 = vadd.f32 0.0, %v815
  %817 = vdwg.mxu0
  %v820 = vunpack.c.l.b16 %v296
  %v821 = vunpack.c.l.b16 %v297
  %v822 = vpack.c.b16 %v821, %v820
  %v825 = vsel %vm317, %v535, 0
  %v828 = vsel %vm317, %v536, 0
  %830 = vmatpush.bf16.msra.mxu0 0
  %831 = vmatpush.bf16.msra.mxu0 0
  %832 = vmatpush.bf16.msra.mxu0 0
  %833 = vmatpush.bf16.msra.mxu0 0
  %834 = vmatpush.bf16.msra.mxu0 0
  %835 = vmatpush.bf16.msra.mxu0 0
  %836 = vmatpush.bf16.msra.mxu0 0
  %837 = vmatpush.bf16.msra.mxu0 %v822
  %838 = vmatmul.bf16.gmra.mxu0 %v825
  %v839 = vpop.f32.mrf.mxu0
  %v840 = vadd.f32 %v809, %v839
  %v841 = vpop.f32.mrf.mxu0
  %v842 = vadd.f32 %v811, %v841
  %843 = vmatmul.bf16.gmra.mxu0 %v828
  %v844 = vpop.f32.mrf.mxu0
  %v845 = vadd.f32 %v814, %v844
  %v846 = vpop.f32.mrf.mxu0
  %v847 = vadd.f32 %v816, %v846
  %848 = vdwg.mxu0
  %849 = vrot.lane.b32.xlu0 %v539, 96
  %v850 = vpop.permute.xlu0 %849
  %851 = vrot.lane.b32.xlu0 %v314, 32
  %v852 = vpop.permute.xlu0 %851
  %v854 = vsel %vm317, %v850, 0
  %v857 = vsel %vm317, %v852, 0
  %859 = vmatpush.bf16.xpose.msra.mxu0 0
  %860 = vmatpush.bf16.xpose.msra.mxu0 0
  %861 = vmatpush.bf16.xpose.msra.mxu0 0
  %862 = vmatpush.bf16.xpose.msra.mxu0 0
  %863 = vmatpush.bf16.xpose.msra.mxu0 0
  %864 = vmatpush.bf16.xpose.msra.mxu0 0
  %865 = vmatpush.bf16.xpose.msra.mxu0 0
  %866 = vmatpush.bf16.xpose.msra.mxu0 %v857
  %867 = vmatmul.bf16.gmra.mxu0 %v854
  %v868 = vpop.f32.mrf.mxu0
  %v869 = vadd.f32 %v304, %v868
  %v870 = vpop.f32.mrf.mxu0
  %871 = vdwg.mxu0
  %872 = vrot.lane.b32.xlu0 %v565, 96
  %v873 = vpop.permute.xlu0 %872
  %874 = vrot.lane.b32.xlu0 %v339, 32
  %v875 = vpop.permute.xlu0 %874
  %v877 = vsel %vm317, %v873, 0
  %v880 = vsel %vm317, %v875, 0
  %882 = vmatpush.bf16.xpose.msra.mxu0 0
  %883 = vmatpush.bf16.xpose.msra.mxu0 0
  %884 = vmatpush.bf16.xpose.msra.mxu0 0
  %885 = vmatpush.bf16.xpose.msra.mxu0 0
  %886 = vmatpush.bf16.xpose.msra.mxu0 0
  %887 = vmatpush.bf16.xpose.msra.mxu0 0
  %888 = vmatpush.bf16.xpose.msra.mxu0 0
  %889 = vmatpush.bf16.xpose.msra.mxu0 %v880
  %890 = vmatmul.bf16.gmra.mxu0 %v877
  %v891 = vpop.f32.mrf.mxu0
  %v892 = vadd.f32 %v305, %v891
  %v893 = vpop.f32.mrf.mxu0
  %894 = vdwg.mxu0
  %895 = vrot.lane.b32.xlu0 %v591, 96
  %v896 = vpop.permute.xlu0 %895
  %897 = vrot.lane.b32.xlu0 %v363, 32
  %v898 = vpop.permute.xlu0 %897
  %v900 = vsel %vm317, %v896, 0
  %v903 = vsel %vm317, %v898, 0
  %905 = vmatpush.bf16.xpose.msra.mxu0 0
  %906 = vmatpush.bf16.xpose.msra.mxu0 0
  %907 = vmatpush.bf16.xpose.msra.mxu0 0
  %908 = vmatpush.bf16.xpose.msra.mxu0 0
  %909 = vmatpush.bf16.xpose.msra.mxu0 0
  %910 = vmatpush.bf16.xpose.msra.mxu0 0
  %911 = vmatpush.bf16.xpose.msra.mxu0 0
  %912 = vmatpush.bf16.xpose.msra.mxu0 %v903
  %913 = vmatmul.bf16.gmra.mxu0 %v900
  %v914 = vpop.f32.mrf.mxu0
  %v915 = vadd.f32 %v306, %v914
  %v916 = vpop.f32.mrf.mxu0
  %917 = vdwg.mxu0
  %918 = vrot.lane.b32.xlu0 %v617, 96
  %v919 = vpop.permute.xlu0 %918
  %920 = vrot.lane.b32.xlu0 %v387, 32
  %v921 = vpop.permute.xlu0 %920
  %v923 = vsel %vm317, %v919, 0
  %v926 = vsel %vm317, %v921, 0
  %928 = vmatpush.bf16.xpose.msra.mxu0 0
  %929 = vmatpush.bf16.xpose.msra.mxu0 0
  %930 = vmatpush.bf16.xpose.msra.mxu0 0
  %931 = vmatpush.bf16.xpose.msra.mxu0 0
  %932 = vmatpush.bf16.xpose.msra.mxu0 0
  %933 = vmatpush.bf16.xpose.msra.mxu0 0
  %934 = vmatpush.bf16.xpose.msra.mxu0 0
  %935 = vmatpush.bf16.xpose.msra.mxu0 %v926
  %936 = vmatmul.bf16.gmra.mxu0 %v923
  %v937 = vpop.f32.mrf.mxu0
  %v938 = vadd.f32 %v307, %v937
  %v939 = vpop.f32.mrf.mxu0
  %940 = vdwg.mxu0
  %v941 = vsel %vm409, %v869, -inf
  %942 = vmax.xlane.f32.xlu0 %v941
  %v943 = vpop.xlane.xlu0 %942
  %v944 = vsel %vm409, %v892, -inf
  %945 = vmax.xlane.f32.xlu0 %v944
  %v946 = vpop.xlane.xlu0 %945
  %v947 = vsel %vm409, %v915, -inf
  %948 = vmax.xlane.f32.xlu0 %v947
  %v949 = vpop.xlane.xlu0 %948
  %v950 = vsel %vm409, %v938, -inf
  %951 = vmax.xlane.f32.xlu0 %v950
  %v952 = vpop.xlane.xlu0 %951
  %v953 = vsub.f32 %v869, %v943
  %v954 = vsub.f32 %v892, %v946
  %v955 = vsub.f32 %v915, %v949
  %v956 = vsub.f32 %v938, %v952
  %v957 = vmul.f32 %v953, 1.442695
  %v958 = vpow.pop %v957
  %v959 = vmul.f32 %v954, 1.442695
  %v960 = vpow.pop %v959
  %v961 = vmul.f32 %v955, 1.442695
  %v962 = vpow.pop %v961
  %v963 = vmul.f32 %v956, 1.442695
  %v964 = vpow.pop %v963
  %v965 = vsel %vm409, %v958, 0.0
  %966 = vadd.xlane.f32.xlu0 %v965
  %v967 = vpop.xlane.xlu0 %966
  %v968 = vsel %vm409, %v960, 0.0
  %969 = vadd.xlane.f32.xlu0 %v968
  %v970 = vpop.xlane.xlu0 %969
  %v971 = vsel %vm409, %v962, 0.0
  %972 = vadd.xlane.f32.xlu0 %v971
  %v973 = vpop.xlane.xlu0 %972
  %v974 = vsel %vm409, %v964, 0.0
  %975 = vadd.xlane.f32.xlu0 %v974
  %v976 = vpop.xlane.xlu0 %975
  %v977 = vrcp.pop %v967
  %v978 = vrcp.pop %v970
  %v979 = vrcp.pop %v973
  %v980 = vrcp.pop %v976
  %v981 = vmul.f32 %v958, %v977
  %v982 = vmul.f32 %v960, %v978
  %v983 = vmul.f32 %v962, %v979
  %v984 = vmul.f32 %v964, %v980
  %v985 = vpack.c.bf16 %v981, %v981
  %v986 = vpack.c.bf16 %v982, %v982
  %v987 = vpack.c.bf16 %v983, %v983
  %v988 = vpack.c.bf16 %v984, %v984
  %989 = vrot.lane.b32.xlu0 %v691, 96
  %v990 = vpop.permute.xlu0 %989
  %v992 = vsel %vm409, %v985, 0
  %v995 = vsel %vm461, %v990, 0
  %997 = vmatpush.bf16.msra.mxu0 0
  %998 = vmatpush.bf16.msra.mxu0 0
  %999 = vmatpush.bf16.msra.mxu0 0
  %1000 = vmatpush.bf16.msra.mxu0 0
  %1001 = vmatpush.bf16.msra.mxu0 0
  %1002 = vmatpush.bf16.msra.mxu0 0
  %1003 = vmatpush.bf16.msra.mxu0 0
  %1004 = vmatpush.bf16.msra.mxu0 %v995
  %1005 = vmatmul.bf16.gmra.mxu0 %v992
  %v1006 = vpop.f32.mrf.mxu0
  %v1007 = vadd.f32 0.0, %v1006
  %v1008 = vpop.f32.mrf.mxu0
  %1009 = vdwg.mxu0
  %1010 = vrot.lane.b32.xlu0 %v715, 96
  %v1011 = vpop.permute.xlu0 %1010
  %v1013 = vsel %vm409, %v986, 0
  %v1016 = vsel %vm461, %v1011, 0
  %1018 = vmatpush.bf16.msra.mxu0 0
  %1019 = vmatpush.bf16.msra.mxu0 0
  %1020 = vmatpush.bf16.msra.mxu0 0
  %1021 = vmatpush.bf16.msra.mxu0 0
  %1022 = vmatpush.bf16.msra.mxu0 0
  %1023 = vmatpush.bf16.msra.mxu0 0
  %1024 = vmatpush.bf16.msra.mxu0 0
  %1025 = vmatpush.bf16.msra.mxu0 %v1016
  %1026 = vmatmul.bf16.gmra.mxu0 %v1013
  %v1027 = vpop.f32.mrf.mxu0
  %v1028 = vadd.f32 0.0, %v1027
  %v1029 = vpop.f32.mrf.mxu0
  %1030 = vdwg.mxu0
  %1031 = vrot.lane.b32.xlu0 %v739, 96
  %v1032 = vpop.permute.xlu0 %1031
  %v1034 = vsel %vm409, %v987, 0
  %v1037 = vsel %vm461, %v1032, 0
  %1039 = vmatpush.bf16.msra.mxu0 0
  %1040 = vmatpush.bf16.msra.mxu0 0
  %1041 = vmatpush.bf16.msra.mxu0 0
  %1042 = vmatpush.bf16.msra.mxu0 0
  %1043 = vmatpush.bf16.msra.mxu0 0
  %1044 = vmatpush.bf16.msra.mxu0 0
  %1045 = vmatpush.bf16.msra.mxu0 0
  %1046 = vmatpush.bf16.msra.mxu0 %v1037
  %1047 = vmatmul.bf16.gmra.mxu0 %v1034
  %v1048 = vpop.f32.mrf.mxu0
  %v1049 = vadd.f32 0.0, %v1048
  %v1050 = vpop.f32.mrf.mxu0
  %1051 = vdwg.mxu0
  %1052 = vrot.lane.b32.xlu0 %v763, 96
  %v1053 = vpop.permute.xlu0 %1052
  %v1055 = vsel %vm409, %v988, 0
  %v1058 = vsel %vm461, %v1053, 0
  %1060 = vmatpush.bf16.msra.mxu0 0
  %1061 = vmatpush.bf16.msra.mxu0 0
  %1062 = vmatpush.bf16.msra.mxu0 0
  %1063 = vmatpush.bf16.msra.mxu0 0
  %1064 = vmatpush.bf16.msra.mxu0 0
  %1065 = vmatpush.bf16.msra.mxu0 0
  %1066 = vmatpush.bf16.msra.mxu0 0
  %1067 = vmatpush.bf16.msra.mxu0 %v1058
  %1068 = vmatmul.bf16.gmra.mxu0 %v1055
  %v1069 = vpop.f32.mrf.mxu0
  %v1070 = vadd.f32 0.0, %v1069
  %v1071 = vpop.f32.mrf.mxu0
  %1072 = vdwg.mxu0
  %v1073 = vpack.c.bf16 %v1028, %v1007
  %v1074 = vpack.c.bf16 %v1070, %v1049
  %v1077 = vunpack.c.l.b16 %v300
  %v1078 = vunpack.c.l.b16 %v301
  %v1079 = vpack.c.b16 %v1078, %v1077
  %v1082 = vsel %vm317, %v1073, 0
  %v1085 = vsel %vm317, %v1074, 0
  %1087 = vmatpush.bf16.msra.mxu0 0
  %1088 = vmatpush.bf16.msra.mxu0 0
  %1089 = vmatpush.bf16.msra.mxu0 0
  %1090 = vmatpush.bf16.msra.mxu0 0
  %1091 = vmatpush.bf16.msra.mxu0 0
  %1092 = vmatpush.bf16.msra.mxu0 0
  %1093 = vmatpush.bf16.msra.mxu0 0
  %1094 = vmatpush.bf16.msra.mxu0 %v1079
  %1095 = vmatmul.bf16.gmra.mxu0 %v1082
  %v1096 = vpop.f32.mrf.mxu0
  %v1097 = vadd.f32 0.0, %v1096
  %v1098 = vpop.f32.mrf.mxu0
  %v1099 = vadd.f32 0.0, %v1098
  %1100 = vmatmul.bf16.gmra.mxu0 %v1085
  %v1101 = vpop.f32.mrf.mxu0
  %v1102 = vadd.f32 0.0, %v1101
  %v1103 = vpop.f32.mrf.mxu0
  %v1104 = vadd.f32 0.0, %v1103
  %1105 = vdwg.mxu0
  %v1106 = vadd.f32 %v840, %v1097
  %v1107 = vadd.f32 %v842, %v1099
  %v1108 = vadd.f32 %v845, %v1102
  %v1109 = vadd.f32 %v847, %v1104
  %1110 = vrot.lane.b32.xlu0 %v539, 80
  %v1111 = vpop.permute.xlu0 %1110
  %1112 = vrot.lane.b32.xlu0 %v314, 16
  %v1113 = vpop.permute.xlu0 %1112
  %v1115 = vsel %vm317, %v1111, 0
  %v1118 = vsel %vm317, %v1113, 0
  %1120 = vmatpush.bf16.xpose.msra.mxu0 0
  %1121 = vmatpush.bf16.xpose.msra.mxu0 0
  %1122 = vmatpush.bf16.xpose.msra.mxu0 0
  %1123 = vmatpush.bf16.xpose.msra.mxu0 0
  %1124 = vmatpush.bf16.xpose.msra.mxu0 0
  %1125 = vmatpush.bf16.xpose.msra.mxu0 0
  %1126 = vmatpush.bf16.xpose.msra.mxu0 0
  %1127 = vmatpush.bf16.xpose.msra.mxu0 %v1118
  %1128 = vmatmul.bf16.gmra.mxu0 %v1115
  %v1129 = vpop.f32.mrf.mxu0
  %v1130 = vadd.f32 %v304, %v1129
  %v1131 = vpop.f32.mrf.mxu0
  %1132 = vdwg.mxu0
  %1133 = vrot.lane.b32.xlu0 %v565, 80
  %v1134 = vpop.permute.xlu0 %1133
  %1135 = vrot.lane.b32.xlu0 %v339, 16
  %v1136 = vpop.permute.xlu0 %1135
  %v1138 = vsel %vm317, %v1134, 0
  %v1141 = vsel %vm317, %v1136, 0
  %1143 = vmatpush.bf16.xpose.msra.mxu0 0
  %1144 = vmatpush.bf16.xpose.msra.mxu0 0
  %1145 = vmatpush.bf16.xpose.msra.mxu0 0
  %1146 = vmatpush.bf16.xpose.msra.mxu0 0
  %1147 = vmatpush.bf16.xpose.msra.mxu0 0
  %1148 = vmatpush.bf16.xpose.msra.mxu0 0
  %1149 = vmatpush.bf16.xpose.msra.mxu0 0
  %1150 = vmatpush.bf16.xpose.msra.mxu0 %v1141
  %1151 = vmatmul.bf16.gmra.mxu0 %v1138
  %v1152 = vpop.f32.mrf.mxu0
  %v1153 = vadd.f32 %v305, %v1152
  %v1154 = vpop.f32.mrf.mxu0
  %1155 = vdwg.mxu0
  %1156 = vrot.lane.b32.xlu0 %v591, 80
  %v1157 = vpop.permute.xlu0 %1156
  %1158 = vrot.lane.b32.xlu0 %v363, 16
  %v1159 = vpop.permute.xlu0 %1158
  %v1161 = vsel %vm317, %v1157, 0
  %v1164 = vsel %vm317, %v1159, 0
  %1166 = vmatpush.bf16.xpose.msra.mxu0 0
  %1167 = vmatpush.bf16.xpose.msra.mxu0 0
  %1168 = vmatpush.bf16.xpose.msra.mxu0 0
  %1169 = vmatpush.bf16.xpose.msra.mxu0 0
  %1170 = vmatpush.bf16.xpose.msra.mxu0 0
  %1171 = vmatpush.bf16.xpose.msra.mxu0 0
  %1172 = vmatpush.bf16.xpose.msra.mxu0 0
  %1173 = vmatpush.bf16.xpose.msra.mxu0 %v1164
  %1174 = vmatmul.bf16.gmra.mxu0 %v1161
  %v1175 = vpop.f32.mrf.mxu0
  %v1176 = vadd.f32 %v306, %v1175
  %v1177 = vpop.f32.mrf.mxu0
  %1178 = vdwg.mxu0
  %1179 = vrot.lane.b32.xlu0 %v617, 80
  %v1180 = vpop.permute.xlu0 %1179
  %1181 = vrot.lane.b32.xlu0 %v387, 16
  %v1182 = vpop.permute.xlu0 %1181
  %v1184 = vsel %vm317, %v1180, 0
  %v1187 = vsel %vm317, %v1182, 0
  %1189 = vmatpush.bf16.xpose.msra.mxu0 0
  %1190 = vmatpush.bf16.xpose.msra.mxu0 0
  %1191 = vmatpush.bf16.xpose.msra.mxu0 0
  %1192 = vmatpush.bf16.xpose.msra.mxu0 0
  %1193 = vmatpush.bf16.xpose.msra.mxu0 0
  %1194 = vmatpush.bf16.xpose.msra.mxu0 0
  %1195 = vmatpush.bf16.xpose.msra.mxu0 0
  %1196 = vmatpush.bf16.xpose.msra.mxu0 %v1187
  %1197 = vmatmul.bf16.gmra.mxu0 %v1184
  %v1198 = vpop.f32.mrf.mxu0
  %v1199 = vadd.f32 %v307, %v1198
  %v1200 = vpop.f32.mrf.mxu0
  %1201 = vdwg.mxu0
  %v1202 = vsel %vm409, %v1130, -inf
  %1203 = vmax.xlane.f32.xlu0 %v1202
  %v1204 = vpop.xlane.xlu0 %1203
  %v1205 = vsel %vm409, %v1153, -inf
  %1206 = vmax.xlane.f32.xlu0 %v1205
  %v1207 = vpop.xlane.xlu0 %1206
  %v1208 = vsel %vm409, %v1176, -inf
  %1209 = vmax.xlane.f32.xlu0 %v1208
  %v1210 = vpop.xlane.xlu0 %1209
  %v1211 = vsel %vm409, %v1199, -inf
  %1212 = vmax.xlane.f32.xlu0 %v1211
  %v1213 = vpop.xlane.xlu0 %1212
  %v1214 = vsub.f32 %v1130, %v1204
  %v1215 = vsub.f32 %v1153, %v1207
  %v1216 = vsub.f32 %v1176, %v1210
  %v1217 = vsub.f32 %v1199, %v1213
  %v1218 = vmul.f32 %v1214, 1.442695
  %v1219 = vpow.pop %v1218
  %v1220 = vmul.f32 %v1215, 1.442695
  %v1221 = vpow.pop %v1220
  %v1222 = vmul.f32 %v1216, 1.442695
  %v1223 = vpow.pop %v1222
  %v1224 = vmul.f32 %v1217, 1.442695
  %v1225 = vpow.pop %v1224
  %v1226 = vsel %vm409, %v1219, 0.0
  %1227 = vadd.xlane.f32.xlu0 %v1226
  %v1228 = vpop.xlane.xlu0 %1227
  %v1229 = vsel %vm409, %v1221, 0.0
  %1230 = vadd.xlane.f32.xlu0 %v1229
  %v1231 = vpop.xlane.xlu0 %1230
  %v1232 = vsel %vm409, %v1223, 0.0
  %1233 = vadd.xlane.f32.xlu0 %v1232
  %v1234 = vpop.xlane.xlu0 %1233
  %v1235 = vsel %vm409, %v1225, 0.0
  %1236 = vadd.xlane.f32.xlu0 %v1235
  %v1237 = vpop.xlane.xlu0 %1236
  %v1238 = vrcp.pop %v1228
  %v1239 = vrcp.pop %v1231
  %v1240 = vrcp.pop %v1234
  %v1241 = vrcp.pop %v1237
  %v1242 = vmul.f32 %v1219, %v1238
  %v1243 = vmul.f32 %v1221, %v1239
  %v1244 = vmul.f32 %v1223, %v1240
  %v1245 = vmul.f32 %v1225, %v1241
  %v1246 = vpack.c.bf16 %v1242, %v1242
  %v1247 = vpack.c.bf16 %v1243, %v1243
  %v1248 = vpack.c.bf16 %v1244, %v1244
  %v1249 = vpack.c.bf16 %v1245, %v1245
  %1250 = vrot.lane.b32.xlu0 %v691, 80
  %v1251 = vpop.permute.xlu0 %1250
  %v1253 = vsel %vm409, %v1246, 0
  %v1256 = vsel %vm461, %v1251, 0
  %1258 = vmatpush.bf16.msra.mxu0 0
  %1259 = vmatpush.bf16.msra.mxu0 0
  %1260 = vmatpush.bf16.msra.mxu0 0
  %1261 = vmatpush.bf16.msra.mxu0 0
  %1262 = vmatpush.bf16.msra.mxu0 0
  %1263 = vmatpush.bf16.msra.mxu0 0
  %1264 = vmatpush.bf16.msra.mxu0 0
  %1265 = vmatpush.bf16.msra.mxu0 %v1256
  %1266 = vmatmul.bf16.gmra.mxu0 %v1253
  %v1267 = vpop.f32.mrf.mxu0
  %v1268 = vadd.f32 0.0, %v1267
  %v1269 = vpop.f32.mrf.mxu0
  %1270 = vdwg.mxu0
  %1271 = vrot.lane.b32.xlu0 %v715, 80
  %v1272 = vpop.permute.xlu0 %1271
  %v1274 = vsel %vm409, %v1247, 0
  %v1277 = vsel %vm461, %v1272, 0
  %1279 = vmatpush.bf16.msra.mxu0 0
  %1280 = vmatpush.bf16.msra.mxu0 0
  %1281 = vmatpush.bf16.msra.mxu0 0
  %1282 = vmatpush.bf16.msra.mxu0 0
  %1283 = vmatpush.bf16.msra.mxu0 0
  %1284 = vmatpush.bf16.msra.mxu0 0
  %1285 = vmatpush.bf16.msra.mxu0 0
  %1286 = vmatpush.bf16.msra.mxu0 %v1277
  %1287 = vmatmul.bf16.gmra.mxu0 %v1274
  %v1288 = vpop.f32.mrf.mxu0
  %v1289 = vadd.f32 0.0, %v1288
  %v1290 = vpop.f32.mrf.mxu0
  %1291 = vdwg.mxu0
  %1292 = vrot.lane.b32.xlu0 %v739, 80
  %v1293 = vpop.permute.xlu0 %1292
  %v1295 = vsel %vm409, %v1248, 0
  %v1298 = vsel %vm461, %v1293, 0
  %1300 = vmatpush.bf16.msra.mxu0 0
  %1301 = vmatpush.bf16.msra.mxu0 0
  %1302 = vmatpush.bf16.msra.mxu0 0
  %1303 = vmatpush.bf16.msra.mxu0 0
  %1304 = vmatpush.bf16.msra.mxu0 0
  %1305 = vmatpush.bf16.msra.mxu0 0
  %1306 = vmatpush.bf16.msra.mxu0 0
  %1307 = vmatpush.bf16.msra.mxu0 %v1298
  %1308 = vmatmul.bf16.gmra.mxu0 %v1295
  %v1309 = vpop.f32.mrf.mxu0
  %v1310 = vadd.f32 0.0, %v1309
  %v1311 = vpop.f32.mrf.mxu0
  %1312 = vdwg.mxu0
  %1313 = vrot.lane.b32.xlu0 %v763, 80
  %v1314 = vpop.permute.xlu0 %1313
  %v1316 = vsel %vm409, %v1249, 0
  %v1319 = vsel %vm461, %v1314, 0
  %1321 = vmatpush.bf16.msra.mxu0 0
  %1322 = vmatpush.bf16.msra.mxu0 0
  %1323 = vmatpush.bf16.msra.mxu0 0
  %1324 = vmatpush.bf16.msra.mxu0 0
  %1325 = vmatpush.bf16.msra.mxu0 0
  %1326 = vmatpush.bf16.msra.mxu0 0
  %1327 = vmatpush.bf16.msra.mxu0 0
  %1328 = vmatpush.bf16.msra.mxu0 %v1319
  %1329 = vmatmul.bf16.gmra.mxu0 %v1316
  %v1330 = vpop.f32.mrf.mxu0
  %v1331 = vadd.f32 0.0, %v1330
  %v1332 = vpop.f32.mrf.mxu0
  %1333 = vdwg.mxu0
  %v1334 = vpack.c.bf16 %v1289, %v1268
  %v1335 = vpack.c.bf16 %v1331, %v1310
  %v1338 = vunpack.c.l.b16 %v302
  %v1339 = vunpack.c.l.b16 %v303
  %v1340 = vpack.c.b16 %v1339, %v1338
  %v1343 = vsel %vm317, %v1334, 0
  %v1346 = vsel %vm317, %v1335, 0
  %1348 = vmatpush.bf16.msra.mxu0 0
  %1349 = vmatpush.bf16.msra.mxu0 0
  %1350 = vmatpush.bf16.msra.mxu0 0
  %1351 = vmatpush.bf16.msra.mxu0 0
  %1352 = vmatpush.bf16.msra.mxu0 0
  %1353 = vmatpush.bf16.msra.mxu0 0
  %1354 = vmatpush.bf16.msra.mxu0 0
  %1355 = vmatpush.bf16.msra.mxu0 %v1340
  %1356 = vmatmul.bf16.gmra.mxu0 %v1343
  %v1357 = vpop.f32.mrf.mxu0
  %v1358 = vadd.f32 0.0, %v1357
  %v1359 = vpop.f32.mrf.mxu0
  %v1360 = vadd.f32 0.0, %v1359
  %1361 = vmatmul.bf16.gmra.mxu0 %v1346
  %v1362 = vpop.f32.mrf.mxu0
  %v1363 = vadd.f32 0.0, %v1362
  %v1364 = vpop.f32.mrf.mxu0
  %v1365 = vadd.f32 0.0, %v1364
  %1366 = vdwg.mxu0
  %v1367 = vadd.f32 %v1106, %v1358
  %v1368 = vadd.f32 %v1107, %v1360
  %v1369 = vadd.f32 %v1108, %v1363
  %v1370 = vadd.f32 %v1109, %v1365
  %v1371 = vld [vmem:[%s8] sm:$0x1]
  %v1373 = vperm.slane %v1371, 0
  %v1375 = vadd.f32 %v1367, %v1373
  %v1376 = vadd.f32 %v1368, %v1373
  %v1377 = vadd.f32 %v1369, %v1373
  %v1378 = vadd.f32 %v1370, %v1373
  %v1379 = vadd.f32 %v1375, %v176
  %v1380 = vadd.f32 %v1376, %v177
  %v1381 = vadd.f32 %v1377, %v178
  %v1382 = vadd.f32 %v1378, %v179
  %v1383 = vld [vmem:[%s9] sm:$0x1]
  %v1384 = vld [vmem:[%s10] sm:$0x1]
  %v1385 = vsel %vm70, %v1379, 0.0
  %1386 = vadd.xlane.f32.xlu0 %v1385
  %v1387 = vpop.xlane.xlu0 %1386
  %v1388 = vsel %vm70, %v1380, 0.0
  %1389 = vadd.xlane.f32.xlu0 %v1388
  %v1390 = vpop.xlane.xlu0 %1389
  %v1391 = vsel %vm70, %v1381, 0.0
  %1392 = vadd.xlane.f32.xlu0 %v1391
  %v1393 = vpop.xlane.xlu0 %1392
  %v1394 = vsel %vm70, %v1382, 0.0
  %1395 = vadd.xlane.f32.xlu0 %v1394
  %v1396 = vpop.xlane.xlu0 %1395
  %v1397 = vmul.f32 %v1387, %v89
  %v1398 = vmul.f32 %v1390, %v89
  %v1399 = vmul.f32 %v1393, %v89
  %v1400 = vmul.f32 %v1396, %v89
  %v1401 = vsub.f32 %v1379, %v1397
  %v1402 = vsub.f32 %v1380, %v1398
  %v1403 = vsub.f32 %v1381, %v1399
  %v1404 = vsub.f32 %v1382, %v1400
  %v1405 = vmul.f32 %v1401, %v1401
  %v1406 = vmul.f32 %v1402, %v1402
  %v1407 = vmul.f32 %v1403, %v1403
  %v1408 = vmul.f32 %v1404, %v1404
  %v1409 = vsel %vm70, %v1405, 0.0
  %1410 = vadd.xlane.f32.xlu0 %v1409
  %v1411 = vpop.xlane.xlu0 %1410
  %v1412 = vsel %vm70, %v1406, 0.0
  %1413 = vadd.xlane.f32.xlu0 %v1412
  %v1414 = vpop.xlane.xlu0 %1413
  %v1415 = vsel %vm70, %v1407, 0.0
  %1416 = vadd.xlane.f32.xlu0 %v1415
  %v1417 = vpop.xlane.xlu0 %1416
  %v1418 = vsel %vm70, %v1408, 0.0
  %1419 = vadd.xlane.f32.xlu0 %v1418
  %v1420 = vpop.xlane.xlu0 %1419
  %v1421 = vmul.f32 %v1411, %v89
  %v1422 = vmul.f32 %v1414, %v89
  %v1423 = vmul.f32 %v1417, %v89
  %v1424 = vmul.f32 %v1420, %v89
  %v1425 = vadd.f32 %v1421, 1e-12
  %v1426 = vadd.f32 %v1422, 1e-12
  %v1427 = vadd.f32 %v1423, 1e-12
  %v1428 = vadd.f32 %v1424, 1e-12
  %v1429 = vrsqrt.pop %v1425
  %v1430 = vmul.f32 %v1429, %v1425
  %v1431 = vmul.f32 %v1430, %v1429
  %v1432 = vmul.f32 0.5, %v1431
  %v1433 = vsub.f32 1.5, %v1432
  %v1434 = vmul.f32 %v1429, %v1433
  %vm1435 = vweird.f32 %v1425
  %vm1436 = vweird.f32 %v1429
  %vm1437 = vmor %vm1435, %vm1436
  %v1438 = vsel %vm1437, %v1429, %v1434
  %v1439 = vrsqrt.pop %v1426
  %v1440 = vmul.f32 %v1439, %v1426
  %v1441 = vmul.f32 %v1440, %v1439
  %v1442 = vmul.f32 0.5, %v1441
  %v1443 = vsub.f32 1.5, %v1442
  %v1444 = vmul.f32 %v1439, %v1443
  %vm1445 = vweird.f32 %v1426
  %vm1446 = vweird.f32 %v1439
  %vm1447 = vmor %vm1445, %vm1446
  %v1448 = vsel %vm1447, %v1439, %v1444
  %v1449 = vrsqrt.pop %v1427
  %v1450 = vmul.f32 %v1449, %v1427
  %v1451 = vmul.f32 %v1450, %v1449
  %v1452 = vmul.f32 0.5, %v1451
  %v1453 = vsub.f32 1.5, %v1452
  %v1454 = vmul.f32 %v1449, %v1453
  %vm1455 = vweird.f32 %v1427
  %vm1456 = vweird.f32 %v1449
  %vm1457 = vmor %vm1455, %vm1456
  %v1458 = vsel %vm1457, %v1449, %v1454
  %v1459 = vrsqrt.pop %v1428
  %v1460 = vmul.f32 %v1459, %v1428
  %v1461 = vmul.f32 %v1460, %v1459
  %v1462 = vmul.f32 0.5, %v1461
  %v1463 = vsub.f32 1.5, %v1462
  %v1464 = vmul.f32 %v1459, %v1463
  %vm1465 = vweird.f32 %v1428
  %vm1466 = vweird.f32 %v1459
  %vm1467 = vmor %vm1465, %vm1466
  %v1468 = vsel %vm1467, %v1459, %v1464
  %v1469 = vmul.f32 %v1401, %v1438
  %v1470 = vmul.f32 %v1402, %v1448
  %v1471 = vmul.f32 %v1403, %v1458
  %v1472 = vmul.f32 %v1404, %v1468
  %v1474 = vperm.slane %v1383, 0
  %v1476 = vmul.f32 %v1469, %v1474
  %v1477 = vmul.f32 %v1470, %v1474
  %v1478 = vmul.f32 %v1471, %v1474
  %v1479 = vmul.f32 %v1472, %v1474
  %v1481 = vperm.slane %v1384, 0
  %v1483 = vadd.f32 %v1476, %v1481
  %v1484 = vadd.f32 %v1477, %v1481
  %v1485 = vadd.f32 %v1478, %v1481
  %v1486 = vadd.f32 %v1479, %v1481
  %v1487 = vpack.c.bf16 %v1484, %v1483
  %v1488 = vpack.c.bf16 %v1486, %v1485
  %v1489 = vld [vmem:[%s11] sm:$0xf]
  %v1490 = vld [vmem:[%s11 + $0x4] sm:$0xf]
  %v1491 = vld [vmem:[%s11 + $0x8] sm:$0xf]
  %v1492 = vld [vmem:[%s11 + $0xc] sm:$0xf]
  %v1493 = vld [vmem:[%s11 + $0x10] sm:$0xf]
  %v1494 = vld [vmem:[%s11 + $0x14] sm:$0xf]
  %v1495 = vld [vmem:[%s11 + $0x18] sm:$0xf]
  %v1496 = vld [vmem:[%s11 + $0x1c] sm:$0xf]
  %v1497 = vld [vmem:[%s12] sm:$0x1]
  %v1499 = vperm.slane %v1497, 0
  %v1509 = vunpack.c.l.b16 %v1489
  %v1510 = vunpack.c.l.b16 %v1490
  %v1511 = vunpack.c.l.b16 %v1491
  %v1512 = vunpack.c.l.b16 %v1492
  %v1513 = vunpack.c.l.b16 %v1493
  %v1514 = vunpack.c.l.b16 %v1494
  %v1515 = vunpack.c.l.b16 %v1495
  %v1516 = vunpack.c.l.b16 %v1496
  %v1517 = vpack.c.b16 %v1510, %v1509
  %v1518 = vpack.c.b16 %v1512, %v1511
  %v1519 = vpack.c.b16 %v1514, %v1513
  %v1520 = vpack.c.b16 %v1516, %v1515
  %v1526 = vsel %vm70, %v1487, 0
  %v1529 = vsel %vm70, %v1488, 0
  %1531 = vmatpush.bf16.msra.mxu0 0
  %1532 = vmatpush.bf16.msra.mxu0 0
  %1533 = vmatpush.bf16.msra.mxu0 0
  %1534 = vmatpush.bf16.msra.mxu0 0
  %1535 = vmatpush.bf16.msra.mxu0 %v1520
  %1536 = vmatpush.bf16.msra.mxu0 %v1519
  %1537 = vmatpush.bf16.msra.mxu0 %v1518
  %1538 = vmatpush.bf16.msra.mxu0 %v1517
  %1539 = vmatmul.bf16.gmra.mxu0 %v1526
  %v1540 = vpop.f32.mrf.mxu0
  %v1541 = vadd.f32 %v1499, %v1540
  %v1542 = vpop.f32.mrf.mxu0
  %v1543 = vadd.f32 %v1499, %v1542
  %1544 = vmatmul.bf16.gmra.mxu0 %v1529
  %v1545 = vpop.f32.mrf.mxu0
  %v1546 = vadd.f32 %v1499, %v1545
  %v1547 = vpop.f32.mrf.mxu0
  %v1548 = vadd.f32 %v1499, %v1547
  %1549 = vdwg.mxu0
  %v1550 = vmul.f32 %v1541, 0.5
  %v1551 = vmul.f32 %v1543, 0.5
  %v1552 = vmul.f32 %v1546, 0.5
  %v1553 = vmul.f32 %v1548, 0.5
  %v1554 = vmul.f32 %v1541, 0.044715
  %v1555 = vmul.f32 %v1543, 0.044715
  %v1556 = vmul.f32 %v1546, 0.044715
  %v1557 = vmul.f32 %v1548, 0.044715
  %v1558 = vmul.f32 %v1554, %v1541
  %v1559 = vmul.f32 %v1555, %v1543
  %v1560 = vmul.f32 %v1556, %v1546
  %v1561 = vmul.f32 %v1557, %v1548
  %v1562 = vmul.f32 %v1558, %v1541
  %v1563 = vmul.f32 %v1559, %v1543
  %v1564 = vmul.f32 %v1560, %v1546
  %v1565 = vmul.f32 %v1561, %v1548
  %v1566 = vadd.f32 %v1541, %v1562
  %v1567 = vadd.f32 %v1543, %v1563
  %v1568 = vadd.f32 %v1546, %v1564
  %v1569 = vadd.f32 %v1548, %v1565
  %v1570 = vmul.f32 %v1566, 0.7978846
  %v1571 = vmul.f32 %v1567, 0.7978846
  %v1572 = vmul.f32 %v1568, 0.7978846
  %v1573 = vmul.f32 %v1569, 0.7978846
  %v1574 = vtanh.pop %v1570
  %v1575 = vtanh.pop %v1571
  %v1576 = vtanh.pop %v1572
  %v1577 = vtanh.pop %v1573
  %v1578 = vadd.f32 %v1574, 1.0
  %v1579 = vadd.f32 %v1575, 1.0
  %v1580 = vadd.f32 %v1576, 1.0
  %v1581 = vadd.f32 %v1577, 1.0
  %v1582 = vmul.f32 %v1550, %v1578
  %v1583 = vmul.f32 %v1551, %v1579
  %v1584 = vmul.f32 %v1552, %v1580
  %v1585 = vmul.f32 %v1553, %v1581
  %v1586 = vpack.c.bf16 %v1583, %v1582
  %v1587 = vpack.c.bf16 %v1585, %v1584
  %v1588 = vld [vmem:[%s13] sm:$0xf]
  %v1589 = vld [vmem:[%s13 + $0x4] sm:$0xf]
  %v1590 = vld [vmem:[%s13 + $0x8] sm:$0xf]
  %v1591 = vld [vmem:[%s13 + $0xc] sm:$0xf]
  %v1592 = vld [vmem:[%s13 + $0x10] sm:$0xf]
  %v1593 = vld [vmem:[%s13 + $0x14] sm:$0xf]
  %v1594 = vld [vmem:[%s13 + $0x18] sm:$0xf]
  %v1595 = vld [vmem:[%s13 + $0x1c] sm:$0xf]
  %v1596 = vld [vmem:[%s13 + $0x20] sm:$0xf]
  %v1597 = vld [vmem:[%s13 + $0x24] sm:$0xf]
  %v1598 = vld [vmem:[%s13 + $0x28] sm:$0xf]
  %v1599 = vld [vmem:[%s13 + $0x2c] sm:$0xf]
  %v1600 = vld [vmem:[%s13 + $0x30] sm:$0xf]
  %v1601 = vld [vmem:[%s13 + $0x34] sm:$0xf]
  %v1602 = vld [vmem:[%s13 + $0x38] sm:$0xf]
  %v1603 = vld [vmem:[%s13 + $0x3c] sm:$0xf]
  %v1604 = vld [vmem:[%s14] sm:$0x1]
  %v1606 = vperm.slane %v1604, 0
  %v1624 = vunpack.c.l.b16 %v1588
  %v1625 = vunpack.c.l.b16 %v1589
  %v1626 = vunpack.c.l.b16 %v1590
  %v1627 = vunpack.c.l.b16 %v1591
  %v1628 = vunpack.c.l.b16 %v1592
  %v1629 = vunpack.c.l.b16 %v1593
  %v1630 = vunpack.c.l.b16 %v1594
  %v1631 = vunpack.c.l.b16 %v1595
  %v1632 = vunpack.c.l.b16 %v1596
  %v1633 = vunpack.c.l.b16 %v1597
  %v1634 = vunpack.c.l.b16 %v1598
  %v1635 = vunpack.c.l.b16 %v1599
  %v1636 = vunpack.c.l.b16 %v1600
  %v1637 = vunpack.c.l.b16 %v1601
  %v1638 = vunpack.c.l.b16 %v1602
  %v1639 = vunpack.c.l.b16 %v1603
  %v1640 = vpack.c.b16 %v1625, %v1624
  %v1641 = vpack.c.b16 %v1627, %v1626
  %v1642 = vpack.c.b16 %v1629, %v1628
  %v1643 = vpack.c.b16 %v1631, %v1630
  %v1644 = vpack.c.b16 %v1633, %v1632
  %v1645 = vpack.c.b16 %v1635, %v1634
  %v1646 = vpack.c.b16 %v1637, %v1636
  %v1647 = vpack.c.b16 %v1639, %v1638
  %1656 = vmatpush.bf16.msra.mxu0 %v1647
  %1657 = vmatpush.bf16.msra.mxu0 %v1646
  %1658 = vmatpush.bf16.msra.mxu0 %v1645
  %1659 = vmatpush.bf16.msra.mxu0 %v1644
  %1660 = vmatpush.bf16.msra.mxu0 %v1643
  %1661 = vmatpush.bf16.msra.mxu0 %v1642
  %1662 = vmatpush.bf16.msra.mxu0 %v1641
  %1663 = vmatpush.bf16.msra.mxu0 %v1640
  %1664 = vmatmul.bf16.gmra.mxu0 %v1586
  %v1665 = vpop.f32.mrf.mxu0
  %v1666 = vadd.f32 %v1606, %v1665
  %v1667 = vpop.f32.mrf.mxu0
  %v1668 = vadd.f32 %v1606, %v1667
  %1669 = vmatmul.bf16.gmra.mxu0 %v1587
  %v1670 = vpop.f32.mrf.mxu0
  %v1671 = vadd.f32 %v1606, %v1670
  %v1672 = vpop.f32.mrf.mxu0
  %v1673 = vadd.f32 %v1606, %v1672
  %1674 = vdwg.mxu0
  %v1675 = vadd.f32 %v1666, %v1483
  %v1676 = vadd.f32 %v1668, %v1484
  %v1677 = vadd.f32 %v1671, %v1485
  %v1678 = vadd.f32 %v1673, %v1486
  %v1679 = vld [vmem:[%s15] sm:$0x1]
  %v1680 = vld [vmem:[%s16] sm:$0x1]
  %v1681 = vsel %vm70, %v1675, 0.0
  %1682 = vadd.xlane.f32.xlu0 %v1681
  %v1683 = vpop.xlane.xlu0 %1682
  %v1684 = vsel %vm70, %v1676, 0.0
  %1685 = vadd.xlane.f32.xlu0 %v1684
  %v1686 = vpop.xlane.xlu0 %1685
  %v1687 = vsel %vm70, %v1677, 0.0
  %1688 = vadd.xlane.f32.xlu0 %v1687
  %v1689 = vpop.xlane.xlu0 %1688
  %v1690 = vsel %vm70, %v1678, 0.0
  %1691 = vadd.xlane.f32.xlu0 %v1690
  %v1692 = vpop.xlane.xlu0 %1691
  %v1693 = vmul.f32 %v1683, %v89
  %v1694 = vmul.f32 %v1686, %v89
  %v1695 = vmul.f32 %v1689, %v89
  %v1696 = vmul.f32 %v1692, %v89
  %v1697 = vsub.f32 %v1675, %v1693
  %v1698 = vsub.f32 %v1676, %v1694
  %v1699 = vsub.f32 %v1677, %v1695
  %v1700 = vsub.f32 %v1678, %v1696
  %v1701 = vmul.f32 %v1697, %v1697
  %v1702 = vmul.f32 %v1698, %v1698
  %v1703 = vmul.f32 %v1699, %v1699
  %v1704 = vmul.f32 %v1700, %v1700
  %v1705 = vsel %vm70, %v1701, 0.0
  %1706 = vadd.xlane.f32.xlu0 %v1705
  %v1707 = vpop.xlane.xlu0 %1706
  %v1708 = vsel %vm70, %v1702, 0.0
  %1709 = vadd.xlane.f32.xlu0 %v1708
  %v1710 = vpop.xlane.xlu0 %1709
  %v1711 = vsel %vm70, %v1703, 0.0
  %1712 = vadd.xlane.f32.xlu0 %v1711
  %v1713 = vpop.xlane.xlu0 %1712
  %v1714 = vsel %vm70, %v1704, 0.0
  %1715 = vadd.xlane.f32.xlu0 %v1714
  %v1716 = vpop.xlane.xlu0 %1715
  %v1717 = vmul.f32 %v1707, %v89
  %v1718 = vmul.f32 %v1710, %v89
  %v1719 = vmul.f32 %v1713, %v89
  %v1720 = vmul.f32 %v1716, %v89
  %v1721 = vadd.f32 %v1717, 1e-12
  %v1722 = vadd.f32 %v1718, 1e-12
  %v1723 = vadd.f32 %v1719, 1e-12
  %v1724 = vadd.f32 %v1720, 1e-12
  %v1725 = vrsqrt.pop %v1721
  %v1726 = vmul.f32 %v1725, %v1721
  %v1727 = vmul.f32 %v1726, %v1725
  %v1728 = vmul.f32 0.5, %v1727
  %v1729 = vsub.f32 1.5, %v1728
  %v1730 = vmul.f32 %v1725, %v1729
  %vm1731 = vweird.f32 %v1721
  %vm1732 = vweird.f32 %v1725
  %vm1733 = vmor %vm1731, %vm1732
  %v1734 = vsel %vm1733, %v1725, %v1730
  %v1735 = vrsqrt.pop %v1722
  %v1736 = vmul.f32 %v1735, %v1722
  %v1737 = vmul.f32 %v1736, %v1735
  %v1738 = vmul.f32 0.5, %v1737
  %v1739 = vsub.f32 1.5, %v1738
  %v1740 = vmul.f32 %v1735, %v1739
  %vm1741 = vweird.f32 %v1722
  %vm1742 = vweird.f32 %v1735
  %vm1743 = vmor %vm1741, %vm1742
  %v1744 = vsel %vm1743, %v1735, %v1740
  %v1745 = vrsqrt.pop %v1723
  %v1746 = vmul.f32 %v1745, %v1723
  %v1747 = vmul.f32 %v1746, %v1745
  %v1748 = vmul.f32 0.5, %v1747
  %v1749 = vsub.f32 1.5, %v1748
  %v1750 = vmul.f32 %v1745, %v1749
  %vm1751 = vweird.f32 %v1723
  %vm1752 = vweird.f32 %v1745
  %vm1753 = vmor %vm1751, %vm1752
  %v1754 = vsel %vm1753, %v1745, %v1750
  %v1755 = vrsqrt.pop %v1724
  %v1756 = vmul.f32 %v1755, %v1724
  %v1757 = vmul.f32 %v1756, %v1755
  %v1758 = vmul.f32 0.5, %v1757
  %v1759 = vsub.f32 1.5, %v1758
  %v1760 = vmul.f32 %v1755, %v1759
  %vm1761 = vweird.f32 %v1724
  %vm1762 = vweird.f32 %v1755
  %vm1763 = vmor %vm1761, %vm1762
  %v1764 = vsel %vm1763, %v1755, %v1760
  %v1765 = vmul.f32 %v1697, %v1734
  %v1766 = vmul.f32 %v1698, %v1744
  %v1767 = vmul.f32 %v1699, %v1754
  %v1768 = vmul.f32 %v1700, %v1764
  %v1770 = vperm.slane %v1679, 0
  %v1772 = vmul.f32 %v1765, %v1770
  %v1773 = vmul.f32 %v1766, %v1770
  %v1774 = vmul.f32 %v1767, %v1770
  %v1775 = vmul.f32 %v1768, %v1770
  %v1777 = vperm.slane %v1680, 0
  %v1779 = vadd.f32 %v1772, %v1777
  %v1780 = vadd.f32 %v1773, %v1777
  %v1781 = vadd.f32 %v1774, %v1777
  %v1782 = vadd.f32 %v1775, %v1777
  %v1783 = vpack.c.bf16 %v1780, %v1779
  %v1784 = vpack.c.bf16 %v1782, %v1781
  %s1785 = scalar_lea.vmem %s5, 64
  %v1786 = vld [vmem:[%s1785] sm:$0xff]
  %v1787 = vld [vmem:[%s1785 + $0x8] sm:$0xff]
  %v1788 = vld [vmem:[%s1785 + $0x10] sm:$0xff]
  %v1789 = vld [vmem:[%s1785 + $0x18] sm:$0xff]
  %v1790 = vld [vmem:[%s1785 + $0x20] sm:$0xff]
  %v1791 = vld [vmem:[%s1785 + $0x28] sm:$0xff]
  %v1792 = vld [vmem:[%s1785 + $0x30] sm:$0xff]
  %v1793 = vld [vmem:[%s1785 + $0x38] sm:$0xff]
  %s1794 = scalar_lea.vmem %s6, 2
  %v1795 = vld [vmem:[%s1794] sm:$0x3]
  %v1797 = vperm.slane %v1795, 0
  %v1798 = vperm.slane %v1795, 1
  %v1809 = vunpack.c.l.b16 %v1786
  %v1810 = vunpack.c.h.b16 %v1786
  %v1811 = vunpack.c.l.b16 %v1787
  %v1812 = vunpack.c.h.b16 %v1787
  %v1813 = vunpack.c.l.b16 %v1788
  %v1814 = vunpack.c.h.b16 %v1788
  %v1815 = vunpack.c.l.b16 %v1789
  %v1816 = vunpack.c.h.b16 %v1789
  %v1817 = vunpack.c.l.b16 %v1790
  %v1818 = vunpack.c.h.b16 %v1790
  %v1819 = vunpack.c.l.b16 %v1791
  %v1820 = vunpack.c.h.b16 %v1791
  %v1821 = vunpack.c.l.b16 %v1792
  %v1822 = vunpack.c.h.b16 %v1792
  %v1823 = vunpack.c.l.b16 %v1793
  %v1824 = vunpack.c.h.b16 %v1793
  %v1825 = vpack.c.b16 %v1811, %v1809
  %v1826 = vpack.c.b16 %v1812, %v1810
  %v1827 = vpack.c.b16 %v1815, %v1813
  %v1828 = vpack.c.b16 %v1816, %v1814
  %v1829 = vpack.c.b16 %v1819, %v1817
  %v1830 = vpack.c.b16 %v1820, %v1818
  %v1831 = vpack.c.b16 %v1823, %v1821
  %v1832 = vpack.c.b16 %v1824, %v1822
  %v1842 = vsel %vm70, %v1783, 0
  %v1845 = vsel %vm70, %v1784, 0
  %1847 = vmatpush.bf16.msra.mxu0 0
  %1848 = vmatpush.bf16.msra.mxu0 0
  %1849 = vmatpush.bf16.msra.mxu0 0
  %1850 = vmatpush.bf16.msra.mxu0 0
  %1851 = vmatpush.bf16.msra.mxu0 %v1831
  %1852 = vmatpush.bf16.msra.mxu0 %v1829
  %1853 = vmatpush.bf16.msra.mxu0 %v1827
  %1854 = vmatpush.bf16.msra.mxu0 %v1825
  %1855 = vmatmul.bf16.gmra.mxu0 %v1842
  %v1856 = vpop.f32.mrf.mxu0
  %v1857 = vadd.f32 %v1797, %v1856
  %v1858 = vpop.f32.mrf.mxu0
  %v1859 = vadd.f32 %v1797, %v1858
  %1860 = vmatmul.bf16.gmra.mxu0 %v1845
  %v1861 = vpop.f32.mrf.mxu0
  %v1862 = vadd.f32 %v1797, %v1861
  %v1863 = vpop.f32.mrf.mxu0
  %v1864 = vadd.f32 %v1797, %v1863
  %1865 = vdwg.mxu0
  %1866 = vmatpush.bf16.msra.mxu0 0
  %1867 = vmatpush.bf16.msra.mxu0 0
  %1868 = vmatpush.bf16.msra.mxu0 0
  %1869 = vmatpush.bf16.msra.mxu0 0
  %1870 = vmatpush.bf16.msra.mxu0 %v1832
  %1871 = vmatpush.bf16.msra.mxu0 %v1830
  %1872 = vmatpush.bf16.msra.mxu0 %v1828
  %1873 = vmatpush.bf16.msra.mxu0 %v1826
  %1874 = vmatmul.bf16.gmra.mxu0 %v1842
  %v1875 = vpop.f32.mrf.mxu0
  %v1876 = vadd.f32 %v1798, %v1875
  %v1877 = vpop.f32.mrf.mxu0
  %v1878 = vadd.f32 %v1798, %v1877
  %1879 = vmatmul.bf16.gmra.mxu0 %v1845
  %v1880 = vpop.f32.mrf.mxu0
  %v1881 = vadd.f32 %v1798, %v1880
  %v1882 = vpop.f32.mrf.mxu0
  %v1883 = vadd.f32 %v1798, %v1882
  %1884 = vdwg.mxu0
  %v1885 = vmul.f32 %v1857, 0.25
  %v1886 = vmul.f32 %v1859, 0.25
  %v1887 = vmul.f32 %v1862, 0.25
  %v1888 = vmul.f32 %v1864, 0.25
  %v1889 = vpack.c.bf16 %v1885, %v1885
  %v1890 = vpack.c.bf16 %v1886, %v1886
  %v1891 = vpack.c.bf16 %v1887, %v1887
  %v1892 = vpack.c.bf16 %v1888, %v1888
  %v1893 = vpack.c.bf16 %v1857, %v1857
  %v1894 = vpack.c.bf16 %v1859, %v1859
  %v1895 = vpack.c.bf16 %v1862, %v1862
  %v1896 = vpack.c.bf16 %v1864, %v1864
  %v1897 = vpack.c.bf16 %v1876, %v1876
  %v1898 = vpack.c.bf16 %v1878, %v1878
  %v1899 = vpack.c.bf16 %v1881, %v1881
  %v1900 = vpack.c.bf16 %v1883, %v1883
  %s1901 = scalar_lea.vmem %s7, 32
  %v1902 = vld [vmem:[%s1901] sm:$0xf]
  %v1903 = vld [vmem:[%s1901 + $0x4] sm:$0xf]
  %v1904 = vld [vmem:[%s1901 + $0x8] sm:$0xf]
  %v1905 = vld [vmem:[%s1901 + $0xc] sm:$0xf]
  %v1906 = vld [vmem:[%s1901 + $0x10] sm:$0xf]
  %v1907 = vld [vmem:[%s1901 + $0x14] sm:$0xf]
  %v1908 = vld [vmem:[%s1901 + $0x18] sm:$0xf]
  %v1909 = vld [vmem:[%s1901 + $0x1c] sm:$0xf]
  %v1911 = vunpack.c.l.b16 %v1893
  %v1912 = vpack.c.b16 %v1911, %v1911
  %1913 = vrot.lane.b32.xlu0 %v1912, 64
  %v1914 = vpop.permute.xlu0 %1913
  %v1916 = vsel %vm317, %v1889, 0
  %v1919 = vsel %vm317, %v1914, 0
  %1921 = vmatpush.bf16.xpose.msra.mxu0 0
  %1922 = vmatpush.bf16.xpose.msra.mxu0 0
  %1923 = vmatpush.bf16.xpose.msra.mxu0 0
  %1924 = vmatpush.bf16.xpose.msra.mxu0 0
  %1925 = vmatpush.bf16.xpose.msra.mxu0 0
  %1926 = vmatpush.bf16.xpose.msra.mxu0 0
  %1927 = vmatpush.bf16.xpose.msra.mxu0 0
  %1928 = vmatpush.bf16.xpose.msra.mxu0 %v1919
  %1929 = vmatmul.bf16.gmra.mxu0 %v1916
  %v1930 = vpop.f32.mrf.mxu0
  %v1931 = vadd.f32 %v304, %v1930
  %v1932 = vpop.f32.mrf.mxu0
  %1933 = vdwg.mxu0
  %v1935 = vunpack.c.l.b16 %v1894
  %v1936 = vpack.c.b16 %v1935, %v1935
  %1937 = vrot.lane.b32.xlu0 %v1936, 64
  %v1938 = vpop.permute.xlu0 %1937
  %v1940 = vsel %vm317, %v1890, 0
  %v1943 = vsel %vm317, %v1938, 0
  %1945 = vmatpush.bf16.xpose.msra.mxu0 0
  %1946 = vmatpush.bf16.xpose.msra.mxu0 0
  %1947 = vmatpush.bf16.xpose.msra.mxu0 0
  %1948 = vmatpush.bf16.xpose.msra.mxu0 0
  %1949 = vmatpush.bf16.xpose.msra.mxu0 0
  %1950 = vmatpush.bf16.xpose.msra.mxu0 0
  %1951 = vmatpush.bf16.xpose.msra.mxu0 0
  %1952 = vmatpush.bf16.xpose.msra.mxu0 %v1943
  %1953 = vmatmul.bf16.gmra.mxu0 %v1940
  %v1954 = vpop.f32.mrf.mxu0
  %v1955 = vadd.f32 %v305, %v1954
  %v1956 = vpop.f32.mrf.mxu0
  %1957 = vdwg.mxu0
  %v1959 = vunpack.c.l.b16 %v1895
  %v1960 = vpack.c.b16 %v1959, %v1959
  %1961 = vrot.lane.b32.xlu0 %v1960, 64
  %v1962 = vpop.permute.xlu0 %1961
  %v1964 = vsel %vm317, %v1891, 0
  %v1967 = vsel %vm317, %v1962, 0
  %1969 = vmatpush.bf16.xpose.msra.mxu0 0
  %1970 = vmatpush.bf16.xpose.msra.mxu0 0
  %1971 = vmatpush.bf16.xpose.msra.mxu0 0
  %1972 = vmatpush.bf16.xpose.msra.mxu0 0
  %1973 = vmatpush.bf16.xpose.msra.mxu0 0
  %1974 = vmatpush.bf16.xpose.msra.mxu0 0
  %1975 = vmatpush.bf16.xpose.msra.mxu0 0
  %1976 = vmatpush.bf16.xpose.msra.mxu0 %v1967
  %1977 = vmatmul.bf16.gmra.mxu0 %v1964
  %v1978 = vpop.f32.mrf.mxu0
  %v1979 = vadd.f32 %v306, %v1978
  %v1980 = vpop.f32.mrf.mxu0
  %1981 = vdwg.mxu0
  %v1983 = vunpack.c.l.b16 %v1896
  %v1984 = vpack.c.b16 %v1983, %v1983
  %1985 = vrot.lane.b32.xlu0 %v1984, 64
  %v1986 = vpop.permute.xlu0 %1985
  %v1988 = vsel %vm317, %v1892, 0
  %v1991 = vsel %vm317, %v1986, 0
  %1993 = vmatpush.bf16.xpose.msra.mxu0 0
  %1994 = vmatpush.bf16.xpose.msra.mxu0 0
  %1995 = vmatpush.bf16.xpose.msra.mxu0 0
  %1996 = vmatpush.bf16.xpose.msra.mxu0 0
  %1997 = vmatpush.bf16.xpose.msra.mxu0 0
  %1998 = vmatpush.bf16.xpose.msra.mxu0 0
  %1999 = vmatpush.bf16.xpose.msra.mxu0 0
  %2000 = vmatpush.bf16.xpose.msra.mxu0 %v1991
  %2001 = vmatmul.bf16.gmra.mxu0 %v1988
  %v2002 = vpop.f32.mrf.mxu0
  %v2003 = vadd.f32 %v307, %v2002
  %v2004 = vpop.f32.mrf.mxu0
  %2005 = vdwg.mxu0
  %v2006 = vsel %vm409, %v1931, -inf
  %2007 = vmax.xlane.f32.xlu0 %v2006
  %v2008 = vpop.xlane.xlu0 %2007
  %v2009 = vsel %vm409, %v1955, -inf
  %2010 = vmax.xlane.f32.xlu0 %v2009
  %v2011 = vpop.xlane.xlu0 %2010
  %v2012 = vsel %vm409, %v1979, -inf
  %2013 = vmax.xlane.f32.xlu0 %v2012
  %v2014 = vpop.xlane.xlu0 %2013
  %v2015 = vsel %vm409, %v2003, -inf
  %2016 = vmax.xlane.f32.xlu0 %v2015
  %v2017 = vpop.xlane.xlu0 %2016
  %v2018 = vsub.f32 %v1931, %v2008
  %v2019 = vsub.f32 %v1955, %v2011
  %v2020 = vsub.f32 %v1979, %v2014
  %v2021 = vsub.f32 %v2003, %v2017
  %v2022 = vmul.f32 %v2018, 1.442695
  %v2023 = vpow.pop %v2022
  %v2024 = vmul.f32 %v2019, 1.442695
  %v2025 = vpow.pop %v2024
  %v2026 = vmul.f32 %v2020, 1.442695
  %v2027 = vpow.pop %v2026
  %v2028 = vmul.f32 %v2021, 1.442695
  %v2029 = vpow.pop %v2028
  %v2030 = vsel %vm409, %v2023, 0.0
  %2031 = vadd.xlane.f32.xlu0 %v2030
  %v2032 = vpop.xlane.xlu0 %2031
  %v2033 = vsel %vm409, %v2025, 0.0
  %2034 = vadd.xlane.f32.xlu0 %v2033
  %v2035 = vpop.xlane.xlu0 %2034
  %v2036 = vsel %vm409, %v2027, 0.0
  %2037 = vadd.xlane.f32.xlu0 %v2036
  %v2038 = vpop.xlane.xlu0 %2037
  %v2039 = vsel %vm409, %v2029, 0.0
  %2040 = vadd.xlane.f32.xlu0 %v2039
  %v2041 = vpop.xlane.xlu0 %2040
  %v2042 = vrcp.pop %v2032
  %v2043 = vrcp.pop %v2035
  %v2044 = vrcp.pop %v2038
  %v2045 = vrcp.pop %v2041
  %v2046 = vmul.f32 %v2023, %v2042
  %v2047 = vmul.f32 %v2025, %v2043
  %v2048 = vmul.f32 %v2027, %v2044
  %v2049 = vmul.f32 %v2029, %v2045
  %v2050 = vpack.c.bf16 %v2046, %v2046
  %v2051 = vpack.c.bf16 %v2047, %v2047
  %v2052 = vpack.c.bf16 %v2048, %v2048
  %v2053 = vpack.c.bf16 %v2049, %v2049
  %v2055 = vsel %vm409, %v2050, 0
  %v2058 = vsel %vm461, %v1897, 0
  %2060 = vmatpush.bf16.msra.mxu0 0
  %2061 = vmatpush.bf16.msra.mxu0 0
  %2062 = vmatpush.bf16.msra.mxu0 0
  %2063 = vmatpush.bf16.msra.mxu0 0
  %2064 = vmatpush.bf16.msra.mxu0 0
  %2065 = vmatpush.bf16.msra.mxu0 0
  %2066 = vmatpush.bf16.msra.mxu0 0
  %2067 = vmatpush.bf16.msra.mxu0 %v2058
  %2068 = vmatmul.bf16.gmra.mxu0 %v2055
  %v2069 = vpop.f32.mrf.mxu0
  %v2070 = vadd.f32 0.0, %v2069
  %v2071 = vpop.f32.mrf.mxu0
  %2072 = vdwg.mxu0
  %v2074 = vsel %vm409, %v2051, 0
  %v2077 = vsel %vm461, %v1898, 0
  %2079 = vmatpush.bf16.msra.mxu0 0
  %2080 = vmatpush.bf16.msra.mxu0 0
  %2081 = vmatpush.bf16.msra.mxu0 0
  %2082 = vmatpush.bf16.msra.mxu0 0
  %2083 = vmatpush.bf16.msra.mxu0 0
  %2084 = vmatpush.bf16.msra.mxu0 0
  %2085 = vmatpush.bf16.msra.mxu0 0
  %2086 = vmatpush.bf16.msra.mxu0 %v2077
  %2087 = vmatmul.bf16.gmra.mxu0 %v2074
  %v2088 = vpop.f32.mrf.mxu0
  %v2089 = vadd.f32 0.0, %v2088
  %v2090 = vpop.f32.mrf.mxu0
  %2091 = vdwg.mxu0
  %v2093 = vsel %vm409, %v2052, 0
  %v2096 = vsel %vm461, %v1899, 0
  %2098 = vmatpush.bf16.msra.mxu0 0
  %2099 = vmatpush.bf16.msra.mxu0 0
  %2100 = vmatpush.bf16.msra.mxu0 0
  %2101 = vmatpush.bf16.msra.mxu0 0
  %2102 = vmatpush.bf16.msra.mxu0 0
  %2103 = vmatpush.bf16.msra.mxu0 0
  %2104 = vmatpush.bf16.msra.mxu0 0
  %2105 = vmatpush.bf16.msra.mxu0 %v2096
  %2106 = vmatmul.bf16.gmra.mxu0 %v2093
  %v2107 = vpop.f32.mrf.mxu0
  %v2108 = vadd.f32 0.0, %v2107
  %v2109 = vpop.f32.mrf.mxu0
  %2110 = vdwg.mxu0
  %v2112 = vsel %vm409, %v2053, 0
  %v2115 = vsel %vm461, %v1900, 0
  %2117 = vmatpush.bf16.msra.mxu0 0
  %2118 = vmatpush.bf16.msra.mxu0 0
  %2119 = vmatpush.bf16.msra.mxu0 0
  %2120 = vmatpush.bf16.msra.mxu0 0
  %2121 = vmatpush.bf16.msra.mxu0 0
  %2122 = vmatpush.bf16.msra.mxu0 0
  %2123 = vmatpush.bf16.msra.mxu0 0
  %2124 = vmatpush.bf16.msra.mxu0 %v2115
  %2125 = vmatmul.bf16.gmra.mxu0 %v2112
  %v2126 = vpop.f32.mrf.mxu0
  %v2127 = vadd.f32 0.0, %v2126
  %v2128 = vpop.f32.mrf.mxu0
  %2129 = vdwg.mxu0
  %v2130 = vpack.c.bf16 %v2089, %v2070
  %v2131 = vpack.c.bf16 %v2127, %v2108
  %v2133 = vunpack.c.l.b16 %v1889
  %v2134 = vpack.c.b16 %v2133, %v2133
  %2135 = vrot.lane.b32.xlu0 %v2134, 112
  %v2136 = vpop.permute.xlu0 %2135
  %2137 = vrot.lane.b32.xlu0 %v1912, 48
  %v2138 = vpop.permute.xlu0 %2137
  %v2140 = vsel %vm317, %v2136, 0
  %v2143 = vsel %vm317, %v2138, 0
  %2145 = vmatpush.bf16.xpose.msra.mxu0 0
  %2146 = vmatpush.bf16.xpose.msra.mxu0 0
  %2147 = vmatpush.bf16.xpose.msra.mxu0 0
  %2148 = vmatpush.bf16.xpose.msra.mxu0 0
  %2149 = vmatpush.bf16.xpose.msra.mxu0 0
  %2150 = vmatpush.bf16.xpose.msra.mxu0 0
  %2151 = vmatpush.bf16.xpose.msra.mxu0 0
  %2152 = vmatpush.bf16.xpose.msra.mxu0 %v2143
  %2153 = vmatmul.bf16.gmra.mxu0 %v2140
  %v2154 = vpop.f32.mrf.mxu0
  %v2155 = vadd.f32 %v304, %v2154
  %v2156 = vpop.f32.mrf.mxu0
  %2157 = vdwg.mxu0
  %v2159 = vunpack.c.l.b16 %v1890
  %v2160 = vpack.c.b16 %v2159, %v2159
  %2161 = vrot.lane.b32.xlu0 %v2160, 112
  %v2162 = vpop.permute.xlu0 %2161
  %2163 = vrot.lane.b32.xlu0 %v1936, 48
  %v2164 = vpop.permute.xlu0 %2163
  %v2166 = vsel %vm317, %v2162, 0
  %v2169 = vsel %vm317, %v2164, 0
  %2171 = vmatpush.bf16.xpose.msra.mxu0 0
  %2172 = vmatpush.bf16.xpose.msra.mxu0 0
  %2173 = vmatpush.bf16.xpose.msra.mxu0 0
  %2174 = vmatpush.bf16.xpose.msra.mxu0 0
  %2175 = vmatpush.bf16.xpose.msra.mxu0 0
  %2176 = vmatpush.bf16.xpose.msra.mxu0 0
  %2177 = vmatpush.bf16.xpose.msra.mxu0 0
  %2178 = vmatpush.bf16.xpose.msra.mxu0 %v2169
  %2179 = vmatmul.bf16.gmra.mxu0 %v2166
  %v2180 = vpop.f32.mrf.mxu0
  %v2181 = vadd.f32 %v305, %v2180
  %v2182 = vpop.f32.mrf.mxu0
  %2183 = vdwg.mxu0
  %v2185 = vunpack.c.l.b16 %v1891
  %v2186 = vpack.c.b16 %v2185, %v2185
  %2187 = vrot.lane.b32.xlu0 %v2186, 112
  %v2188 = vpop.permute.xlu0 %2187
  %2189 = vrot.lane.b32.xlu0 %v1960, 48
  %v2190 = vpop.permute.xlu0 %2189
  %v2192 = vsel %vm317, %v2188, 0
  %v2195 = vsel %vm317, %v2190, 0
  %2197 = vmatpush.bf16.xpose.msra.mxu0 0
  %2198 = vmatpush.bf16.xpose.msra.mxu0 0
  %2199 = vmatpush.bf16.xpose.msra.mxu0 0
  %2200 = vmatpush.bf16.xpose.msra.mxu0 0
  %2201 = vmatpush.bf16.xpose.msra.mxu0 0
  %2202 = vmatpush.bf16.xpose.msra.mxu0 0
  %2203 = vmatpush.bf16.xpose.msra.mxu0 0
  %2204 = vmatpush.bf16.xpose.msra.mxu0 %v2195
  %2205 = vmatmul.bf16.gmra.mxu0 %v2192
  %v2206 = vpop.f32.mrf.mxu0
  %v2207 = vadd.f32 %v306, %v2206
  %v2208 = vpop.f32.mrf.mxu0
  %2209 = vdwg.mxu0
  %v2211 = vunpack.c.l.b16 %v1892
  %v2212 = vpack.c.b16 %v2211, %v2211
  %2213 = vrot.lane.b32.xlu0 %v2212, 112
  %v2214 = vpop.permute.xlu0 %2213
  %2215 = vrot.lane.b32.xlu0 %v1984, 48
  %v2216 = vpop.permute.xlu0 %2215
  %v2218 = vsel %vm317, %v2214, 0
  %v2221 = vsel %vm317, %v2216, 0
  %2223 = vmatpush.bf16.xpose.msra.mxu0 0
  %2224 = vmatpush.bf16.xpose.msra.mxu0 0
  %2225 = vmatpush.bf16.xpose.msra.mxu0 0
  %2226 = vmatpush.bf16.xpose.msra.mxu0 0
  %2227 = vmatpush.bf16.xpose.msra.mxu0 0
  %2228 = vmatpush.bf16.xpose.msra.mxu0 0
  %2229 = vmatpush.bf16.xpose.msra.mxu0 0
  %2230 = vmatpush.bf16.xpose.msra.mxu0 %v2221
  %2231 = vmatmul.bf16.gmra.mxu0 %v2218
  %v2232 = vpop.f32.mrf.mxu0
  %v2233 = vadd.f32 %v307, %v2232
  %v2234 = vpop.f32.mrf.mxu0
  %2235 = vdwg.mxu0
  %v2236 = vsel %vm409, %v2155, -inf
  %2237 = vmax.xlane.f32.xlu0 %v2236
  %v2238 = vpop.xlane.xlu0 %2237
  %v2239 = vsel %vm409, %v2181, -inf
  %2240 = vmax.xlane.f32.xlu0 %v2239
  %v2241 = vpop.xlane.xlu0 %2240
  %v2242 = vsel %vm409, %v2207, -inf
  %2243 = vmax.xlane.f32.xlu0 %v2242
  %v2244 = vpop.xlane.xlu0 %2243
  %v2245 = vsel %vm409, %v2233, -inf
  %2246 = vmax.xlane.f32.xlu0 %v2245
  %v2247 = vpop.xlane.xlu0 %2246
  %v2248 = vsub.f32 %v2155, %v2238
  %v2249 = vsub.f32 %v2181, %v2241
  %v2250 = vsub.f32 %v2207, %v2244
  %v2251 = vsub.f32 %v2233, %v2247
  %v2252 = vmul.f32 %v2248, 1.442695
  %v2253 = vpow.pop %v2252
  %v2254 = vmul.f32 %v2249, 1.442695
  %v2255 = vpow.pop %v2254
  %v2256 = vmul.f32 %v2250, 1.442695
  %v2257 = vpow.pop %v2256
  %v2258 = vmul.f32 %v2251, 1.442695
  %v2259 = vpow.pop %v2258
  %v2260 = vsel %vm409, %v2253, 0.0
  %2261 = vadd.xlane.f32.xlu0 %v2260
  %v2262 = vpop.xlane.xlu0 %2261
  %v2263 = vsel %vm409, %v2255, 0.0
  %2264 = vadd.xlane.f32.xlu0 %v2263
  %v2265 = vpop.xlane.xlu0 %2264
  %v2266 = vsel %vm409, %v2257, 0.0
  %2267 = vadd.xlane.f32.xlu0 %v2266
  %v2268 = vpop.xlane.xlu0 %2267
  %v2269 = vsel %vm409, %v2259, 0.0
  %2270 = vadd.xlane.f32.xlu0 %v2269
  %v2271 = vpop.xlane.xlu0 %2270
  %v2272 = vrcp.pop %v2262
  %v2273 = vrcp.pop %v2265
  %v2274 = vrcp.pop %v2268
  %v2275 = vrcp.pop %v2271
  %v2276 = vmul.f32 %v2253, %v2272
  %v2277 = vmul.f32 %v2255, %v2273
  %v2278 = vmul.f32 %v2257, %v2274
  %v2279 = vmul.f32 %v2259, %v2275
  %v2280 = vpack.c.bf16 %v2276, %v2276
  %v2281 = vpack.c.bf16 %v2277, %v2277
  %v2282 = vpack.c.bf16 %v2278, %v2278
  %v2283 = vpack.c.bf16 %v2279, %v2279
  %v2285 = vunpack.c.l.b16 %v1897
  %v2286 = vpack.c.b16 %v2285, %v2285
  %2287 = vrot.lane.b32.xlu0 %v2286, 112
  %v2288 = vpop.permute.xlu0 %2287
  %v2290 = vsel %vm409, %v2280, 0
  %v2293 = vsel %vm461, %v2288, 0
  %2295 = vmatpush.bf16.msra.mxu0 0
  %2296 = vmatpush.bf16.msra.mxu0 0
  %2297 = vmatpush.bf16.msra.mxu0 0
  %2298 = vmatpush.bf16.msra.mxu0 0
  %2299 = vmatpush.bf16.msra.mxu0 0
  %2300 = vmatpush.bf16.msra.mxu0 0
  %2301 = vmatpush.bf16.msra.mxu0 0
  %2302 = vmatpush.bf16.msra.mxu0 %v2293
  %2303 = vmatmul.bf16.gmra.mxu0 %v2290
  %v2304 = vpop.f32.mrf.mxu0
  %v2305 = vadd.f32 0.0, %v2304
  %v2306 = vpop.f32.mrf.mxu0
  %2307 = vdwg.mxu0
  %v2309 = vunpack.c.l.b16 %v1898
  %v2310 = vpack.c.b16 %v2309, %v2309
  %2311 = vrot.lane.b32.xlu0 %v2310, 112
  %v2312 = vpop.permute.xlu0 %2311
  %v2314 = vsel %vm409, %v2281, 0
  %v2317 = vsel %vm461, %v2312, 0
  %2319 = vmatpush.bf16.msra.mxu0 0
  %2320 = vmatpush.bf16.msra.mxu0 0
  %2321 = vmatpush.bf16.msra.mxu0 0
  %2322 = vmatpush.bf16.msra.mxu0 0
  %2323 = vmatpush.bf16.msra.mxu0 0
  %2324 = vmatpush.bf16.msra.mxu0 0
  %2325 = vmatpush.bf16.msra.mxu0 0
  %2326 = vmatpush.bf16.msra.mxu0 %v2317
  %2327 = vmatmul.bf16.gmra.mxu0 %v2314
  %v2328 = vpop.f32.mrf.mxu0
  %v2329 = vadd.f32 0.0, %v2328
  %v2330 = vpop.f32.mrf.mxu0
  %2331 = vdwg.mxu0
  %v2333 = vunpack.c.l.b16 %v1899
  %v2334 = vpack.c.b16 %v2333, %v2333
  %2335 = vrot.lane.b32.xlu0 %v2334, 112
  %v2336 = vpop.permute.xlu0 %2335
  %v2338 = vsel %vm409, %v2282, 0
  %v2341 = vsel %vm461, %v2336, 0
  %2343 = vmatpush.bf16.msra.mxu0 0
  %2344 = vmatpush.bf16.msra.mxu0 0
  %2345 = vmatpush.bf16.msra.mxu0 0
  %2346 = vmatpush.bf16.msra.mxu0 0
  %2347 = vmatpush.bf16.msra.mxu0 0
  %2348 = vmatpush.bf16.msra.mxu0 0
  %2349 = vmatpush.bf16.msra.mxu0 0
  %2350 = vmatpush.bf16.msra.mxu0 %v2341
  %2351 = vmatmul.bf16.gmra.mxu0 %v2338
  %v2352 = vpop.f32.mrf.mxu0
  %v2353 = vadd.f32 0.0, %v2352
  %v2354 = vpop.f32.mrf.mxu0
  %2355 = vdwg.mxu0
  %v2357 = vunpack.c.l.b16 %v1900
  %v2358 = vpack.c.b16 %v2357, %v2357
  %2359 = vrot.lane.b32.xlu0 %v2358, 112
  %v2360 = vpop.permute.xlu0 %2359
  %v2362 = vsel %vm409, %v2283, 0
  %v2365 = vsel %vm461, %v2360, 0
  %2367 = vmatpush.bf16.msra.mxu0 0
  %2368 = vmatpush.bf16.msra.mxu0 0
  %2369 = vmatpush.bf16.msra.mxu0 0
  %2370 = vmatpush.bf16.msra.mxu0 0
  %2371 = vmatpush.bf16.msra.mxu0 0
  %2372 = vmatpush.bf16.msra.mxu0 0
  %2373 = vmatpush.bf16.msra.mxu0 0
  %2374 = vmatpush.bf16.msra.mxu0 %v2365
  %2375 = vmatmul.bf16.gmra.mxu0 %v2362
  %v2376 = vpop.f32.mrf.mxu0
  %v2377 = vadd.f32 0.0, %v2376
  %v2378 = vpop.f32.mrf.mxu0
  %2379 = vdwg.mxu0
  %v2380 = vpack.c.bf16 %v2329, %v2305
  %v2381 = vpack.c.bf16 %v2377, %v2353
  %v2384 = vunpack.c.l.b16 %v1904
  %v2385 = vunpack.c.l.b16 %v1905
  %v2386 = vpack.c.b16 %v2385, %v2384
  %v2389 = vsel %vm317, %v2380, 0
  %v2392 = vsel %vm317, %v2381, 0
  %2394 = vmatpush.bf16.msra.mxu0 0
  %2395 = vmatpush.bf16.msra.mxu0 0
  %2396 = vmatpush.bf16.msra.mxu0 0
  %2397 = vmatpush.bf16.msra.mxu0 0
  %2398 = vmatpush.bf16.msra.mxu0 0
  %2399 = vmatpush.bf16.msra.mxu0 0
  %2400 = vmatpush.bf16.msra.mxu0 0
  %2401 = vmatpush.bf16.msra.mxu0 %v2386
  %2402 = vmatmul.bf16.gmra.mxu0 %v2389
  %v2403 = vpop.f32.mrf.mxu0
  %v2404 = vadd.f32 0.0, %v2403
  %v2405 = vpop.f32.mrf.mxu0
  %v2406 = vadd.f32 0.0, %v2405
  %2407 = vmatmul.bf16.gmra.mxu0 %v2392
  %v2408 = vpop.f32.mrf.mxu0
  %v2409 = vadd.f32 0.0, %v2408
  %v2410 = vpop.f32.mrf.mxu0
  %v2411 = vadd.f32 0.0, %v2410
  %2412 = vdwg.mxu0
  %v2415 = vunpack.c.l.b16 %v1902
  %v2416 = vunpack.c.l.b16 %v1903
  %v2417 = vpack.c.b16 %v2416, %v2415
  %v2420 = vsel %vm317, %v2130, 0
  %v2423 = vsel %vm317, %v2131, 0
  %2425 = vmatpush.bf16.msra.mxu0 0
  %2426 = vmatpush.bf16.msra.mxu0 0
  %2427 = vmatpush.bf16.msra.mxu0 0
  %2428 = vmatpush.bf16.msra.mxu0 0
  %2429 = vmatpush.bf16.msra.mxu0 0
  %2430 = vmatpush.bf16.msra.mxu0 0
  %2431 = vmatpush.bf16.msra.mxu0 0
  %2432 = vmatpush.bf16.msra.mxu0 %v2417
  %2433 = vmatmul.bf16.gmra.mxu0 %v2420
  %v2434 = vpop.f32.mrf.mxu0
  %v2435 = vadd.f32 %v2404, %v2434
  %v2436 = vpop.f32.mrf.mxu0
  %v2437 = vadd.f32 %v2406, %v2436
  %2438 = vmatmul.bf16.gmra.mxu0 %v2423
  %v2439 = vpop.f32.mrf.mxu0
  %v2440 = vadd.f32 %v2409, %v2439
  %v2441 = vpop.f32.mrf.mxu0
  %v2442 = vadd.f32 %v2411, %v2441
  %2443 = vdwg.mxu0
  %2444 = vrot.lane.b32.xlu0 %v2134, 96
  %v2445 = vpop.permute.xlu0 %2444
  %2446 = vrot.lane.b32.xlu0 %v1912, 32
  %v2447 = vpop.permute.xlu0 %2446
  %v2449 = vsel %vm317, %v2445, 0
  %v2452 = vsel %vm317, %v2447, 0
  %2454 = vmatpush.bf16.xpose.msra.mxu0 0
  %2455 = vmatpush.bf16.xpose.msra.mxu0 0
  %2456 = vmatpush.bf16.xpose.msra.mxu0 0
  %2457 = vmatpush.bf16.xpose.msra.mxu0 0
  %2458 = vmatpush.bf16.xpose.msra.mxu0 0
  %2459 = vmatpush.bf16.xpose.msra.mxu0 0
  %2460 = vmatpush.bf16.xpose.msra.mxu0 0
  %2461 = vmatpush.bf16.xpose.msra.mxu0 %v2452
  %2462 = vmatmul.bf16.gmra.mxu0 %v2449
  %v2463 = vpop.f32.mrf.mxu0
  %v2464 = vadd.f32 %v304, %v2463
  %v2465 = vpop.f32.mrf.mxu0
  %2466 = vdwg.mxu0
  %2467 = vrot.lane.b32.xlu0 %v2160, 96
  %v2468 = vpop.permute.xlu0 %2467
  %2469 = vrot.lane.b32.xlu0 %v1936, 32
  %v2470 = vpop.permute.xlu0 %2469
  %v2472 = vsel %vm317, %v2468, 0
  %v2475 = vsel %vm317, %v2470, 0
  %2477 = vmatpush.bf16.xpose.msra.mxu0 0
  %2478 = vmatpush.bf16.xpose.msra.mxu0 0
  %2479 = vmatpush.bf16.xpose.msra.mxu0 0
  %2480 = vmatpush.bf16.xpose.msra.mxu0 0
  %2481 = vmatpush.bf16.xpose.msra.mxu0 0
  %2482 = vmatpush.bf16.xpose.msra.mxu0 0
  %2483 = vmatpush.bf16.xpose.msra.mxu0 0
  %2484 = vmatpush.bf16.xpose.msra.mxu0 %v2475
  %2485 = vmatmul.bf16.gmra.mxu0 %v2472
  %v2486 = vpop.f32.mrf.mxu0
  %v2487 = vadd.f32 %v305, %v2486
  %v2488 = vpop.f32.mrf.mxu0
  %2489 = vdwg.mxu0
  %2490 = vrot.lane.b32.xlu0 %v2186, 96
  %v2491 = vpop.permute.xlu0 %2490
  %2492 = vrot.lane.b32.xlu0 %v1960, 32
  %v2493 = vpop.permute.xlu0 %2492
  %v2495 = vsel %vm317, %v2491, 0
  %v2498 = vsel %vm317, %v2493, 0
  %2500 = vmatpush.bf16.xpose.msra.mxu0 0
  %2501 = vmatpush.bf16.xpose.msra.mxu0 0
  %2502 = vmatpush.bf16.xpose.msra.mxu0 0
  %2503 = vmatpush.bf16.xpose.msra.mxu0 0
  %2504 = vmatpush.bf16.xpose.msra.mxu0 0
  %2505 = vmatpush.bf16.xpose.msra.mxu0 0
  %2506 = vmatpush.bf16.xpose.msra.mxu0 0
  %2507 = vmatpush.bf16.xpose.msra.mxu0 %v2498
  %2508 = vmatmul.bf16.gmra.mxu0 %v2495
  %v2509 = vpop.f32.mrf.mxu0
  %v2510 = vadd.f32 %v306, %v2509
  %v2511 = vpop.f32.mrf.mxu0
  %2512 = vdwg.mxu0
  %2513 = vrot.lane.b32.xlu0 %v2212, 96
  %v2514 = vpop.permute.xlu0 %2513
  %2515 = vrot.lane.b32.xlu0 %v1984, 32
  %v2516 = vpop.permute.xlu0 %2515
  %v2518 = vsel %vm317, %v2514, 0
  %v2521 = vsel %vm317, %v2516, 0
  %2523 = vmatpush.bf16.xpose.msra.mxu0 0
  %2524 = vmatpush.bf16.xpose.msra.mxu0 0
  %2525 = vmatpush.bf16.xpose.msra.mxu0 0
  %2526 = vmatpush.bf16.xpose.msra.mxu0 0
  %2527 = vmatpush.bf16.xpose.msra.mxu0 0
  %2528 = vmatpush.bf16.xpose.msra.mxu0 0
  %2529 = vmatpush.bf16.xpose.msra.mxu0 0
  %2530 = vmatpush.bf16.xpose.msra.mxu0 %v2521
  %2531 = vmatmul.bf16.gmra.mxu0 %v2518
  %v2532 = vpop.f32.mrf.mxu0
  %v2533 = vadd.f32 %v307, %v2532
  %v2534 = vpop.f32.mrf.mxu0
  %2535 = vdwg.mxu0
  %v2536 = vsel %vm409, %v2464, -inf
  %2537 = vmax.xlane.f32.xlu0 %v2536
  %v2538 = vpop.xlane.xlu0 %2537
  %v2539 = vsel %vm409, %v2487, -inf
  %2540 = vmax.xlane.f32.xlu0 %v2539
  %v2541 = vpop.xlane.xlu0 %2540
  %v2542 = vsel %vm409, %v2510, -inf
  %2543 = vmax.xlane.f32.xlu0 %v2542
  %v2544 = vpop.xlane.xlu0 %2543
  %v2545 = vsel %vm409, %v2533, -inf
  %2546 = vmax.xlane.f32.xlu0 %v2545
  %v2547 = vpop.xlane.xlu0 %2546
  %v2548 = vsub.f32 %v2464, %v2538
  %v2549 = vsub.f32 %v2487, %v2541
  %v2550 = vsub.f32 %v2510, %v2544
  %v2551 = vsub.f32 %v2533, %v2547
  %v2552 = vmul.f32 %v2548, 1.442695
  %v2553 = vpow.pop %v2552
  %v2554 = vmul.f32 %v2549, 1.442695
  %v2555 = vpow.pop %v2554
  %v2556 = vmul.f32 %v2550, 1.442695
  %v2557 = vpow.pop %v2556
  %v2558 = vmul.f32 %v2551, 1.442695
  %v2559 = vpow.pop %v2558
  %v2560 = vsel %vm409, %v2553, 0.0
  %2561 = vadd.xlane.f32.xlu0 %v2560
  %v2562 = vpop.xlane.xlu0 %2561
  %v2563 = vsel %vm409, %v2555, 0.0
  %2564 = vadd.xlane.f32.xlu0 %v2563
  %v2565 = vpop.xlane.xlu0 %2564
  %v2566 = vsel %vm409, %v2557, 0.0
  %2567 = vadd.xlane.f32.xlu0 %v2566
  %v2568 = vpop.xlane.xlu0 %2567
  %v2569 = vsel %vm409, %v2559, 0.0
  %2570 = vadd.xlane.f32.xlu0 %v2569
  %v2571 = vpop.xlane.xlu0 %2570
  %v2572 = vrcp.pop %v2562
  %v2573 = vrcp.pop %v2565
  %v2574 = vrcp.pop %v2568
  %v2575 = vrcp.pop %v2571
  %v2576 = vmul.f32 %v2553, %v2572
  %v2577 = vmul.f32 %v2555, %v2573
  %v2578 = vmul.f32 %v2557, %v2574
  %v2579 = vmul.f32 %v2559, %v2575
  %v2580 = vpack.c.bf16 %v2576, %v2576
  %v2581 = vpack.c.bf16 %v2577, %v2577
  %v2582 = vpack.c.bf16 %v2578, %v2578
  %v2583 = vpack.c.bf16 %v2579, %v2579
  %2584 = vrot.lane.b32.xlu0 %v2286, 96
  %v2585 = vpop.permute.xlu0 %2584
  %v2587 = vsel %vm409, %v2580, 0
  %v2590 = vsel %vm461, %v2585, 0
  %2592 = vmatpush.bf16.msra.mxu0 0
  %2593 = vmatpush.bf16.msra.mxu0 0
  %2594 = vmatpush.bf16.msra.mxu0 0
  %2595 = vmatpush.bf16.msra.mxu0 0
  %2596 = vmatpush.bf16.msra.mxu0 0
  %2597 = vmatpush.bf16.msra.mxu0 0
  %2598 = vmatpush.bf16.msra.mxu0 0
  %2599 = vmatpush.bf16.msra.mxu0 %v2590
  %2600 = vmatmul.bf16.gmra.mxu0 %v2587
  %v2601 = vpop.f32.mrf.mxu0
  %v2602 = vadd.f32 0.0, %v2601
  %v2603 = vpop.f32.mrf.mxu0
  %2604 = vdwg.mxu0
  %2605 = vrot.lane.b32.xlu0 %v2310, 96
  %v2606 = vpop.permute.xlu0 %2605
  %v2608 = vsel %vm409, %v2581, 0
  %v2611 = vsel %vm461, %v2606, 0
  %2613 = vmatpush.bf16.msra.mxu0 0
  %2614 = vmatpush.bf16.msra.mxu0 0
  %2615 = vmatpush.bf16.msra.mxu0 0
  %2616 = vmatpush.bf16.msra.mxu0 0
  %2617 = vmatpush.bf16.msra.mxu0 0
  %2618 = vmatpush.bf16.msra.mxu0 0
  %2619 = vmatpush.bf16.msra.mxu0 0
  %2620 = vmatpush.bf16.msra.mxu0 %v2611
  %2621 = vmatmul.bf16.gmra.mxu0 %v2608
  %v2622 = vpop.f32.mrf.mxu0
  %v2623 = vadd.f32 0.0, %v2622
  %v2624 = vpop.f32.mrf.mxu0
  %2625 = vdwg.mxu0
  %2626 = vrot.lane.b32.xlu0 %v2334, 96
  %v2627 = vpop.permute.xlu0 %2626
  %v2629 = vsel %vm409, %v2582, 0
  %v2632 = vsel %vm461, %v2627, 0
  %2634 = vmatpush.bf16.msra.mxu0 0
  %2635 = vmatpush.bf16.msra.mxu0 0
  %2636 = vmatpush.bf16.msra.mxu0 0
  %2637 = vmatpush.bf16.msra.mxu0 0
  %2638 = vmatpush.bf16.msra.mxu0 0
  %2639 = vmatpush.bf16.msra.mxu0 0
  %2640 = vmatpush.bf16.msra.mxu0 0
  %2641 = vmatpush.bf16.msra.mxu0 %v2632
  %2642 = vmatmul.bf16.gmra.mxu0 %v2629
  %v2643 = vpop.f32.mrf.mxu0
  %v2644 = vadd.f32 0.0, %v2643
  %v2645 = vpop.f32.mrf.mxu0
  %2646 = vdwg.mxu0
  %2647 = vrot.lane.b32.xlu0 %v2358, 96
  %v2648 = vpop.permute.xlu0 %2647
  %v2650 = vsel %vm409, %v2583, 0
  %v2653 = vsel %vm461, %v2648, 0
  %2655 = vmatpush.bf16.msra.mxu0 0
  %2656 = vmatpush.bf16.msra.mxu0 0
  %2657 = vmatpush.bf16.msra.mxu0 0
  %2658 = vmatpush.bf16.msra.mxu0 0
  %2659 = vmatpush.bf16.msra.mxu0 0
  %2660 = vmatpush.bf16.msra.mxu0 0
  %2661 = vmatpush.bf16.msra.mxu0 0
  %2662 = vmatpush.bf16.msra.mxu0 %v2653
  %2663 = vmatmul.bf16.gmra.mxu0 %v2650
  %v2664 = vpop.f32.mrf.mxu0
  %v2665 = vadd.f32 0.0, %v2664
  %v2666 = vpop.f32.mrf.mxu0
  %2667 = vdwg.mxu0
  %v2668 = vpack.c.bf16 %v2623, %v2602
  %v2669 = vpack.c.bf16 %v2665, %v2644
  %v2672 = vunpack.c.l.b16 %v1906
  %v2673 = vunpack.c.l.b16 %v1907
  %v2674 = vpack.c.b16 %v2673, %v2672
  %v2677 = vsel %vm317, %v2668, 0
  %v2680 = vsel %vm317, %v2669, 0
  %2682 = vmatpush.bf16.msra.mxu0 0
  %2683 = vmatpush.bf16.msra.mxu0 0
  %2684 = vmatpush.bf16.msra.mxu0 0
  %2685 = vmatpush.bf16.msra.mxu0 0
  %2686 = vmatpush.bf16.msra.mxu0 0
  %2687 = vmatpush.bf16.msra.mxu0 0
  %2688 = vmatpush.bf16.msra.mxu0 0
  %2689 = vmatpush.bf16.msra.mxu0 %v2674
  %2690 = vmatmul.bf16.gmra.mxu0 %v2677
  %v2691 = vpop.f32.mrf.mxu0
  %v2692 = vadd.f32 0.0, %v2691
  %v2693 = vpop.f32.mrf.mxu0
  %v2694 = vadd.f32 0.0, %v2693
  %2695 = vmatmul.bf16.gmra.mxu0 %v2680
  %v2696 = vpop.f32.mrf.mxu0
  %v2697 = vadd.f32 0.0, %v2696
  %v2698 = vpop.f32.mrf.mxu0
  %v2699 = vadd.f32 0.0, %v2698
  %2700 = vdwg.mxu0
  %v2701 = vadd.f32 %v2435, %v2692
  %v2702 = vadd.f32 %v2437, %v2694
  %v2703 = vadd.f32 %v2440, %v2697
  %v2704 = vadd.f32 %v2442, %v2699
  %2705 = vrot.lane.b32.xlu0 %v2134, 80
  %v2706 = vpop.permute.xlu0 %2705
  %2707 = vrot.lane.b32.xlu0 %v1912, 16
  %v2708 = vpop.permute.xlu0 %2707
  %v2710 = vsel %vm317, %v2706, 0
  %v2713 = vsel %vm317, %v2708, 0
  %2715 = vmatpush.bf16.xpose.msra.mxu0 0
  %2716 = vmatpush.bf16.xpose.msra.mxu0 0
  %2717 = vmatpush.bf16.xpose.msra.mxu0 0
  %2718 = vmatpush.bf16.xpose.msra.mxu0 0
  %2719 = vmatpush.bf16.xpose.msra.mxu0 0
  %2720 = vmatpush.bf16.xpose.msra.mxu0 0
  %2721 = vmatpush.bf16.xpose.msra.mxu0 0
  %2722 = vmatpush.bf16.xpose.msra.mxu0 %v2713
  %2723 = vmatmul.bf16.gmra.mxu0 %v2710
  %v2724 = vpop.f32.mrf.mxu0
  %v2725 = vadd.f32 %v304, %v2724
  %v2726 = vpop.f32.mrf.mxu0
  %2727 = vdwg.mxu0
  %2728 = vrot.lane.b32.xlu0 %v2160, 80
  %v2729 = vpop.permute.xlu0 %2728
  %2730 = vrot.lane.b32.xlu0 %v1936, 16
  %v2731 = vpop.permute.xlu0 %2730
  %v2733 = vsel %vm317, %v2729, 0
  %v2736 = vsel %vm317, %v2731, 0
  %2738 = vmatpush.bf16.xpose.msra.mxu0 0
  %2739 = vmatpush.bf16.xpose.msra.mxu0 0
  %2740 = vmatpush.bf16.xpose.msra.mxu0 0
  %2741 = vmatpush.bf16.xpose.msra.mxu0 0
  %2742 = vmatpush.bf16.xpose.msra.mxu0 0
  %2743 = vmatpush.bf16.xpose.msra.mxu0 0
  %2744 = vmatpush.bf16.xpose.msra.mxu0 0
  %2745 = vmatpush.bf16.xpose.msra.mxu0 %v2736
  %2746 = vmatmul.bf16.gmra.mxu0 %v2733
  %v2747 = vpop.f32.mrf.mxu0
  %v2748 = vadd.f32 %v305, %v2747
  %v2749 = vpop.f32.mrf.mxu0
  %2750 = vdwg.mxu0
  %2751 = vrot.lane.b32.xlu0 %v2186, 80
  %v2752 = vpop.permute.xlu0 %2751
  %2753 = vrot.lane.b32.xlu0 %v1960, 16
  %v2754 = vpop.permute.xlu0 %2753
  %v2756 = vsel %vm317, %v2752, 0
  %v2759 = vsel %vm317, %v2754, 0
  %2761 = vmatpush.bf16.xpose.msra.mxu0 0
  %2762 = vmatpush.bf16.xpose.msra.mxu0 0
  %2763 = vmatpush.bf16.xpose.msra.mxu0 0
  %2764 = vmatpush.bf16.xpose.msra.mxu0 0
  %2765 = vmatpush.bf16.xpose.msra.mxu0 0
  %2766 = vmatpush.bf16.xpose.msra.mxu0 0
  %2767 = vmatpush.bf16.xpose.msra.mxu0 0
  %2768 = vmatpush.bf16.xpose.msra.mxu0 %v2759
  %2769 = vmatmul.bf16.gmra.mxu0 %v2756
  %v2770 = vpop.f32.mrf.mxu0
  %v2771 = vadd.f32 %v306, %v2770
  %v2772 = vpop.f32.mrf.mxu0
  %2773 = vdwg.mxu0
  %2774 = vrot.lane.b32.xlu0 %v2212, 80
  %v2775 = vpop.permute.xlu0 %2774
  %2776 = vrot.lane.b32.xlu0 %v1984, 16
  %v2777 = vpop.permute.xlu0 %2776
  %v2779 = vsel %vm317, %v2775, 0
  %v2782 = vsel %vm317, %v2777, 0
  %2784 = vmatpush.bf16.xpose.msra.mxu0 0
  %2785 = vmatpush.bf16.xpose.msra.mxu0 0
  %2786 = vmatpush.bf16.xpose.msra.mxu0 0
  %2787 = vmatpush.bf16.xpose.msra.mxu0 0
  %2788 = vmatpush.bf16.xpose.msra.mxu0 0
  %2789 = vmatpush.bf16.xpose.msra.mxu0 0
  %2790 = vmatpush.bf16.xpose.msra.mxu0 0
  %2791 = vmatpush.bf16.xpose.msra.mxu0 %v2782
  %2792 = vmatmul.bf16.gmra.mxu0 %v2779
  %v2793 = vpop.f32.mrf.mxu0
  %v2794 = vadd.f32 %v307, %v2793
  %v2795 = vpop.f32.mrf.mxu0
  %2796 = vdwg.mxu0
  %v2797 = vsel %vm409, %v2725, -inf
  %2798 = vmax.xlane.f32.xlu0 %v2797
  %v2799 = vpop.xlane.xlu0 %2798
  %v2800 = vsel %vm409, %v2748, -inf
  %2801 = vmax.xlane.f32.xlu0 %v2800
  %v2802 = vpop.xlane.xlu0 %2801
  %v2803 = vsel %vm409, %v2771, -inf
  %2804 = vmax.xlane.f32.xlu0 %v2803
  %v2805 = vpop.xlane.xlu0 %2804
  %v2806 = vsel %vm409, %v2794, -inf
  %2807 = vmax.xlane.f32.xlu0 %v2806
  %v2808 = vpop.xlane.xlu0 %2807
  %v2809 = vsub.f32 %v2725, %v2799
  %v2810 = vsub.f32 %v2748, %v2802
  %v2811 = vsub.f32 %v2771, %v2805
  %v2812 = vsub.f32 %v2794, %v2808
  %v2813 = vmul.f32 %v2809, 1.442695
  %v2814 = vpow.pop %v2813
  %v2815 = vmul.f32 %v2810, 1.442695
  %v2816 = vpow.pop %v2815
  %v2817 = vmul.f32 %v2811, 1.442695
  %v2818 = vpow.pop %v2817
  %v2819 = vmul.f32 %v2812, 1.442695
  %v2820 = vpow.pop %v2819
  %v2821 = vsel %vm409, %v2814, 0.0
  %2822 = vadd.xlane.f32.xlu0 %v2821
  %v2823 = vpop.xlane.xlu0 %2822
  %v2824 = vsel %vm409, %v2816, 0.0
  %2825 = vadd.xlane.f32.xlu0 %v2824
  %v2826 = vpop.xlane.xlu0 %2825
  %v2827 = vsel %vm409, %v2818, 0.0
  %2828 = vadd.xlane.f32.xlu0 %v2827
  %v2829 = vpop.xlane.xlu0 %2828
  %v2830 = vsel %vm409, %v2820, 0.0
  %2831 = vadd.xlane.f32.xlu0 %v2830
  %v2832 = vpop.xlane.xlu0 %2831
  %v2833 = vrcp.pop %v2823
  %v2834 = vrcp.pop %v2826
  %v2835 = vrcp.pop %v2829
  %v2836 = vrcp.pop %v2832
  %v2837 = vmul.f32 %v2814, %v2833
  %v2838 = vmul.f32 %v2816, %v2834
  %v2839 = vmul.f32 %v2818, %v2835
  %v2840 = vmul.f32 %v2820, %v2836
  %v2841 = vpack.c.bf16 %v2837, %v2837
  %v2842 = vpack.c.bf16 %v2838, %v2838
  %v2843 = vpack.c.bf16 %v2839, %v2839
  %v2844 = vpack.c.bf16 %v2840, %v2840
  %2845 = vrot.lane.b32.xlu0 %v2286, 80
  %v2846 = vpop.permute.xlu0 %2845
  %v2848 = vsel %vm409, %v2841, 0
  %v2851 = vsel %vm461, %v2846, 0
  %2853 = vmatpush.bf16.msra.mxu0 0
  %2854 = vmatpush.bf16.msra.mxu0 0
  %2855 = vmatpush.bf16.msra.mxu0 0
  %2856 = vmatpush.bf16.msra.mxu0 0
  %2857 = vmatpush.bf16.msra.mxu0 0
  %2858 = vmatpush.bf16.msra.mxu0 0
  %2859 = vmatpush.bf16.msra.mxu0 0
  %2860 = vmatpush.bf16.msra.mxu0 %v2851
  %2861 = vmatmul.bf16.gmra.mxu0 %v2848
  %v2862 = vpop.f32.mrf.mxu0
  %v2863 = vadd.f32 0.0, %v2862
  %v2864 = vpop.f32.mrf.mxu0
  %2865 = vdwg.mxu0
  %2866 = vrot.lane.b32.xlu0 %v2310, 80
  %v2867 = vpop.permute.xlu0 %2866
  %v2869 = vsel %vm409, %v2842, 0
  %v2872 = vsel %vm461, %v2867, 0
  %2874 = vmatpush.bf16.msra.mxu0 0
  %2875 = vmatpush.bf16.msra.mxu0 0
  %2876 = vmatpush.bf16.msra.mxu0 0
  %2877 = vmatpush.bf16.msra.mxu0 0
  %2878 = vmatpush.bf16.msra.mxu0 0
  %2879 = vmatpush.bf16.msra.mxu0 0
  %2880 = vmatpush.bf16.msra.mxu0 0
  %2881 = vmatpush.bf16.msra.mxu0 %v2872
  %2882 = vmatmul.bf16.gmra.mxu0 %v2869
  %v2883 = vpop.f32.mrf.mxu0
  %v2884 = vadd.f32 0.0, %v2883
  %v2885 = vpop.f32.mrf.mxu0
  %2886 = vdwg.mxu0
  %2887 = vrot.lane.b32.xlu0 %v2334, 80
  %v2888 = vpop.permute.xlu0 %2887
  %v2890 = vsel %vm409, %v2843, 0
  %v2893 = vsel %vm461, %v2888, 0
  %2895 = vmatpush.bf16.msra.mxu0 0
  %2896 = vmatpush.bf16.msra.mxu0 0
  %2897 = vmatpush.bf16.msra.mxu0 0
  %2898 = vmatpush.bf16.msra.mxu0 0
  %2899 = vmatpush.bf16.msra.mxu0 0
  %2900 = vmatpush.bf16.msra.mxu0 0
  %2901 = vmatpush.bf16.msra.mxu0 0
  %2902 = vmatpush.bf16.msra.mxu0 %v2893
  %2903 = vmatmul.bf16.gmra.mxu0 %v2890
  %v2904 = vpop.f32.mrf.mxu0
  %v2905 = vadd.f32 0.0, %v2904
  %v2906 = vpop.f32.mrf.mxu0
  %2907 = vdwg.mxu0
  %2908 = vrot.lane.b32.xlu0 %v2358, 80
  %v2909 = vpop.permute.xlu0 %2908
  %v2911 = vsel %vm409, %v2844, 0
  %v2914 = vsel %vm461, %v2909, 0
  %2916 = vmatpush.bf16.msra.mxu0 0
  %2917 = vmatpush.bf16.msra.mxu0 0
  %2918 = vmatpush.bf16.msra.mxu0 0
  %2919 = vmatpush.bf16.msra.mxu0 0
  %2920 = vmatpush.bf16.msra.mxu0 0
  %2921 = vmatpush.bf16.msra.mxu0 0
  %2922 = vmatpush.bf16.msra.mxu0 0
  %2923 = vmatpush.bf16.msra.mxu0 %v2914
  %2924 = vmatmul.bf16.gmra.mxu0 %v2911
  %v2925 = vpop.f32.mrf.mxu0
  %v2926 = vadd.f32 0.0, %v2925
  %v2927 = vpop.f32.mrf.mxu0
  %2928 = vdwg.mxu0
  %v2929 = vpack.c.bf16 %v2884, %v2863
  %v2930 = vpack.c.bf16 %v2926, %v2905
  %v2933 = vunpack.c.l.b16 %v1908
  %v2934 = vunpack.c.l.b16 %v1909
  %v2935 = vpack.c.b16 %v2934, %v2933
  %v2938 = vsel %vm317, %v2929, 0
  %v2941 = vsel %vm317, %v2930, 0
  %2943 = vmatpush.bf16.msra.mxu0 0
  %2944 = vmatpush.bf16.msra.mxu0 0
  %2945 = vmatpush.bf16.msra.mxu0 0
  %2946 = vmatpush.bf16.msra.mxu0 0
  %2947 = vmatpush.bf16.msra.mxu0 0
  %2948 = vmatpush.bf16.msra.mxu0 0
  %2949 = vmatpush.bf16.msra.mxu0 0
  %2950 = vmatpush.bf16.msra.mxu0 %v2935
  %2951 = vmatmul.bf16.gmra.mxu0 %v2938
  %v2952 = vpop.f32.mrf.mxu0
  %v2953 = vadd.f32 0.0, %v2952
  %v2954 = vpop.f32.mrf.mxu0
  %v2955 = vadd.f32 0.0, %v2954
  %2956 = vmatmul.bf16.gmra.mxu0 %v2941
  %v2957 = vpop.f32.mrf.mxu0
  %v2958 = vadd.f32 0.0, %v2957
  %v2959 = vpop.f32.mrf.mxu0
  %v2960 = vadd.f32 0.0, %v2959
  %2961 = vdwg.mxu0
  %v2962 = vadd.f32 %v2701, %v2953
  %v2963 = vadd.f32 %v2702, %v2955
  %v2964 = vadd.f32 %v2703, %v2958
  %v2965 = vadd.f32 %v2704, %v2960
  %s2966 = scalar_lea.vmem %s8, 1
  %v2967 = vld [vmem:[%s2966] sm:$0x1]
  %v2969 = vperm.slane %v2967, 0
  %v2971 = vadd.f32 %v2962, %v2969
  %v2972 = vadd.f32 %v2963, %v2969
  %v2973 = vadd.f32 %v2964, %v2969
  %v2974 = vadd.f32 %v2965, %v2969
  %v2975 = vadd.f32 %v2971, %v1779
  %v2976 = vadd.f32 %v2972, %v1780
  %v2977 = vadd.f32 %v2973, %v1781
  %v2978 = vadd.f32 %v2974, %v1782
  %s2979 = scalar_lea.vmem %s9, 1
  %v2980 = vld [vmem:[%s2979] sm:$0x1]
  %s2981 = scalar_lea.vmem %s10, 1
  %v2982 = vld [vmem:[%s2981] sm:$0x1]
  %v2983 = vsel %vm70, %v2975, 0.0
  %2984 = vadd.xlane.f32.xlu0 %v2983
  %v2985 = vpop.xlane.xlu0 %2984
  %v2986 = vsel %vm70, %v2976, 0.0
  %2987 = vadd.xlane.f32.xlu0 %v2986
  %v2988 = vpop.xlane.xlu0 %2987
  %v2989 = vsel %vm70, %v2977, 0.0
  %2990 = vadd.xlane.f32.xlu0 %v2989
  %v2991 = vpop.xlane.xlu0 %2990
  %v2992 = vsel %vm70, %v2978, 0.0
  %2993 = vadd.xlane.f32.xlu0 %v2992
  %v2994 = vpop.xlane.xlu0 %2993
  %v2995 = vmul.f32 %v2985, %v89
  %v2996 = vmul.f32 %v2988, %v89
  %v2997 = vmul.f32 %v2991, %v89
  %v2998 = vmul.f32 %v2994, %v89
  %v2999 = vsub.f32 %v2975, %v2995
  %v3000 = vsub.f32 %v2976, %v2996
  %v3001 = vsub.f32 %v2977, %v2997
  %v3002 = vsub.f32 %v2978, %v2998
  %v3003 = vmul.f32 %v2999, %v2999
  %v3004 = vmul.f32 %v3000, %v3000
  %v3005 = vmul.f32 %v3001, %v3001
  %v3006 = vmul.f32 %v3002, %v3002
  %v3007 = vsel %vm70, %v3003, 0.0
  %3008 = vadd.xlane.f32.xlu0 %v3007
  %v3009 = vpop.xlane.xlu0 %3008
  %v3010 = vsel %vm70, %v3004, 0.0
  %3011 = vadd.xlane.f32.xlu0 %v3010
  %v3012 = vpop.xlane.xlu0 %3011
  %v3013 = vsel %vm70, %v3005, 0.0
  %3014 = vadd.xlane.f32.xlu0 %v3013
  %v3015 = vpop.xlane.xlu0 %3014
  %v3016 = vsel %vm70, %v3006, 0.0
  %3017 = vadd.xlane.f32.xlu0 %v3016
  %v3018 = vpop.xlane.xlu0 %3017
  %v3019 = vmul.f32 %v3009, %v89
  %v3020 = vmul.f32 %v3012, %v89
  %v3021 = vmul.f32 %v3015, %v89
  %v3022 = vmul.f32 %v3018, %v89
  %v3023 = vadd.f32 %v3019, 1e-12
  %v3024 = vadd.f32 %v3020, 1e-12
  %v3025 = vadd.f32 %v3021, 1e-12
  %v3026 = vadd.f32 %v3022, 1e-12
  %v3027 = vrsqrt.pop %v3023
  %v3028 = vmul.f32 %v3027, %v3023
  %v3029 = vmul.f32 %v3028, %v3027
  %v3030 = vmul.f32 0.5, %v3029
  %v3031 = vsub.f32 1.5, %v3030
  %v3032 = vmul.f32 %v3027, %v3031
  %vm3033 = vweird.f32 %v3023
  %vm3034 = vweird.f32 %v3027
  %vm3035 = vmor %vm3033, %vm3034
  %v3036 = vsel %vm3035, %v3027, %v3032
  %v3037 = vrsqrt.pop %v3024
  %v3038 = vmul.f32 %v3037, %v3024
  %v3039 = vmul.f32 %v3038, %v3037
  %v3040 = vmul.f32 0.5, %v3039
  %v3041 = vsub.f32 1.5, %v3040
  %v3042 = vmul.f32 %v3037, %v3041
  %vm3043 = vweird.f32 %v3024
  %vm3044 = vweird.f32 %v3037
  %vm3045 = vmor %vm3043, %vm3044
  %v3046 = vsel %vm3045, %v3037, %v3042
  %v3047 = vrsqrt.pop %v3025
  %v3048 = vmul.f32 %v3047, %v3025
  %v3049 = vmul.f32 %v3048, %v3047
  %v3050 = vmul.f32 0.5, %v3049
  %v3051 = vsub.f32 1.5, %v3050
  %v3052 = vmul.f32 %v3047, %v3051
  %vm3053 = vweird.f32 %v3025
  %vm3054 = vweird.f32 %v3047
  %vm3055 = vmor %vm3053, %vm3054
  %v3056 = vsel %vm3055, %v3047, %v3052
  %v3057 = vrsqrt.pop %v3026
  %v3058 = vmul.f32 %v3057, %v3026
  %v3059 = vmul.f32 %v3058, %v3057
  %v3060 = vmul.f32 0.5, %v3059
  %v3061 = vsub.f32 1.5, %v3060
  %v3062 = vmul.f32 %v3057, %v3061
  %vm3063 = vweird.f32 %v3026
  %vm3064 = vweird.f32 %v3057
  %vm3065 = vmor %vm3063, %vm3064
  %v3066 = vsel %vm3065, %v3057, %v3062
  %v3067 = vmul.f32 %v2999, %v3036
  %v3068 = vmul.f32 %v3000, %v3046
  %v3069 = vmul.f32 %v3001, %v3056
  %v3070 = vmul.f32 %v3002, %v3066
  %v3072 = vperm.slane %v2980, 0
  %v3074 = vmul.f32 %v3067, %v3072
  %v3075 = vmul.f32 %v3068, %v3072
  %v3076 = vmul.f32 %v3069, %v3072
  %v3077 = vmul.f32 %v3070, %v3072
  %v3079 = vperm.slane %v2982, 0
  %v3081 = vadd.f32 %v3074, %v3079
  %v3082 = vadd.f32 %v3075, %v3079
  %v3083 = vadd.f32 %v3076, %v3079
  %v3084 = vadd.f32 %v3077, %v3079
  %v3085 = vpack.c.bf16 %v3082, %v3081
  %v3086 = vpack.c.bf16 %v3084, %v3083
  %s3087 = scalar_lea.vmem %s11, 32
  %v3088 = vld [vmem:[%s3087] sm:$0xf]
  %v3089 = vld [vmem:[%s3087 + $0x4] sm:$0xf]
  %v3090 = vld [vmem:[%s3087 + $0x8] sm:$0xf]
  %v3091 = vld [vmem:[%s3087 + $0xc] sm:$0xf]
  %v3092 = vld [vmem:[%s3087 + $0x10] sm:$0xf]
  %v3093 = vld [vmem:[%s3087 + $0x14] sm:$0xf]
  %v3094 = vld [vmem:[%s3087 + $0x18] sm:$0xf]
  %v3095 = vld [vmem:[%s3087 + $0x1c] sm:$0xf]
  %s3096 = scalar_lea.vmem %s12, 1
  %v3097 = vld [vmem:[%s3096] sm:$0x1]
  %v3099 = vperm.slane %v3097, 0
  %v3109 = vunpack.c.l.b16 %v3088
  %v3110 = vunpack.c.l.b16 %v3089
  %v3111 = vunpack.c.l.b16 %v3090
  %v3112 = vunpack.c.l.b16 %v3091
  %v3113 = vunpack.c.l.b16 %v3092
  %v3114 = vunpack.c.l.b16 %v3093
  %v3115 = vunpack.c.l.b16 %v3094
  %v3116 = vunpack.c.l.b16 %v3095
  %v3117 = vpack.c.b16 %v3110, %v3109
  %v3118 = vpack.c.b16 %v3112, %v3111
  %v3119 = vpack.c.b16 %v3114, %v3113
  %v3120 = vpack.c.b16 %v3116, %v3115
  %v3126 = vsel %vm70, %v3085, 0
  %v3129 = vsel %vm70, %v3086, 0
  %3131 = vmatpush.bf16.msra.mxu0 0
  %3132 = vmatpush.bf16.msra.mxu0 0
  %3133 = vmatpush.bf16.msra.mxu0 0
  %3134 = vmatpush.bf16.msra.mxu0 0
  %3135 = vmatpush.bf16.msra.mxu0 %v3120
  %3136 = vmatpush.bf16.msra.mxu0 %v3119
  %3137 = vmatpush.bf16.msra.mxu0 %v3118
  %3138 = vmatpush.bf16.msra.mxu0 %v3117
  %3139 = vmatmul.bf16.gmra.mxu0 %v3126
  %v3140 = vpop.f32.mrf.mxu0
  %v3141 = vadd.f32 %v3099, %v3140
  %v3142 = vpop.f32.mrf.mxu0
  %v3143 = vadd.f32 %v3099, %v3142
  %3144 = vmatmul.bf16.gmra.mxu0 %v3129
  %v3145 = vpop.f32.mrf.mxu0
  %v3146 = vadd.f32 %v3099, %v3145
  %v3147 = vpop.f32.mrf.mxu0
  %v3148 = vadd.f32 %v3099, %v3147
  %3149 = vdwg.mxu0
  %v3150 = vmul.f32 %v3141, 0.5
  %v3151 = vmul.f32 %v3143, 0.5
  %v3152 = vmul.f32 %v3146, 0.5
  %v3153 = vmul.f32 %v3148, 0.5
  %v3154 = vmul.f32 %v3141, 0.044715
  %v3155 = vmul.f32 %v3143, 0.044715
  %v3156 = vmul.f32 %v3146, 0.044715
  %v3157 = vmul.f32 %v3148, 0.044715
  %v3158 = vmul.f32 %v3154, %v3141
  %v3159 = vmul.f32 %v3155, %v3143
  %v3160 = vmul.f32 %v3156, %v3146
  %v3161 = vmul.f32 %v3157, %v3148
  %v3162 = vmul.f32 %v3158, %v3141
  %v3163 = vmul.f32 %v3159, %v3143
  %v3164 = vmul.f32 %v3160, %v3146
  %v3165 = vmul.f32 %v3161, %v3148
  %v3166 = vadd.f32 %v3141, %v3162
  %v3167 = vadd.f32 %v3143, %v3163
  %v3168 = vadd.f32 %v3146, %v3164
  %v3169 = vadd.f32 %v3148, %v3165
  %v3170 = vmul.f32 %v3166, 0.7978846
  %v3171 = vmul.f32 %v3167, 0.7978846
  %v3172 = vmul.f32 %v3168, 0.7978846
  %v3173 = vmul.f32 %v3169, 0.7978846
  %v3174 = vtanh.pop %v3170
  %v3175 = vtanh.pop %v3171
  %v3176 = vtanh.pop %v3172
  %v3177 = vtanh.pop %v3173
  %v3178 = vadd.f32 %v3174, 1.0
  %v3179 = vadd.f32 %v3175, 1.0
  %v3180 = vadd.f32 %v3176, 1.0
  %v3181 = vadd.f32 %v3177, 1.0
  %v3182 = vmul.f32 %v3150, %v3178
  %v3183 = vmul.f32 %v3151, %v3179
  %v3184 = vmul.f32 %v3152, %v3180
  %v3185 = vmul.f32 %v3153, %v3181
  %v3186 = vpack.c.bf16 %v3183, %v3182
  %v3187 = vpack.c.bf16 %v3185, %v3184
  %s3188 = scalar_lea.vmem %s13, 64
  %v3189 = vld [vmem:[%s3188] sm:$0xf]
  %v3190 = vld [vmem:[%s3188 + $0x4] sm:$0xf]
  %v3191 = vld [vmem:[%s3188 + $0x8] sm:$0xf]
  %v3192 = vld [vmem:[%s3188 + $0xc] sm:$0xf]
  %v3193 = vld [vmem:[%s3188 + $0x10] sm:$0xf]
  %v3194 = vld [vmem:[%s3188 + $0x14] sm:$0xf]
  %v3195 = vld [vmem:[%s3188 + $0x18] sm:$0xf]
  %v3196 = vld [vmem:[%s3188 + $0x1c] sm:$0xf]
  %v3197 = vld [vmem:[%s3188 + $0x20] sm:$0xf]
  %v3198 = vld [vmem:[%s3188 + $0x24] sm:$0xf]
  %v3199 = vld [vmem:[%s3188 + $0x28] sm:$0xf]
  %v3200 = vld [vmem:[%s3188 + $0x2c] sm:$0xf]
  %v3201 = vld [vmem:[%s3188 + $0x30] sm:$0xf]
  %v3202 = vld [vmem:[%s3188 + $0x34] sm:$0xf]
  %v3203 = vld [vmem:[%s3188 + $0x38] sm:$0xf]
  %v3204 = vld [vmem:[%s3188 + $0x3c] sm:$0xf]
  %s3205 = scalar_lea.vmem %s14, 1
  %v3206 = vld [vmem:[%s3205] sm:$0x1]
  %v3208 = vperm.slane %v3206, 0
  %v3226 = vunpack.c.l.b16 %v3189
  %v3227 = vunpack.c.l.b16 %v3190
  %v3228 = vunpack.c.l.b16 %v3191
  %v3229 = vunpack.c.l.b16 %v3192
  %v3230 = vunpack.c.l.b16 %v3193
  %v3231 = vunpack.c.l.b16 %v3194
  %v3232 = vunpack.c.l.b16 %v3195
  %v3233 = vunpack.c.l.b16 %v3196
  %v3234 = vunpack.c.l.b16 %v3197
  %v3235 = vunpack.c.l.b16 %v3198
  %v3236 = vunpack.c.l.b16 %v3199
  %v3237 = vunpack.c.l.b16 %v3200
  %v3238 = vunpack.c.l.b16 %v3201
  %v3239 = vunpack.c.l.b16 %v3202
  %v3240 = vunpack.c.l.b16 %v3203
  %v3241 = vunpack.c.l.b16 %v3204
  %v3242 = vpack.c.b16 %v3227, %v3226
  %v3243 = vpack.c.b16 %v3229, %v3228
  %v3244 = vpack.c.b16 %v3231, %v3230
  %v3245 = vpack.c.b16 %v3233, %v3232
  %v3246 = vpack.c.b16 %v3235, %v3234
  %v3247 = vpack.c.b16 %v3237, %v3236
  %v3248 = vpack.c.b16 %v3239, %v3238
  %v3249 = vpack.c.b16 %v3241, %v3240
  %3258 = vmatpush.bf16.msra.mxu0 %v3249
  %3259 = vmatpush.bf16.msra.mxu0 %v3248
  %3260 = vmatpush.bf16.msra.mxu0 %v3247
  %3261 = vmatpush.bf16.msra.mxu0 %v3246
  %3262 = vmatpush.bf16.msra.mxu0 %v3245
  %3263 = vmatpush.bf16.msra.mxu0 %v3244
  %3264 = vmatpush.bf16.msra.mxu0 %v3243
  %3265 = vmatpush.bf16.msra.mxu0 %v3242
  %3266 = vmatmul.bf16.gmra.mxu0 %v3186
  %v3267 = vpop.f32.mrf.mxu0
  %v3268 = vadd.f32 %v3208, %v3267
  %v3269 = vpop.f32.mrf.mxu0
  %v3270 = vadd.f32 %v3208, %v3269
  %3271 = vmatmul.bf16.gmra.mxu0 %v3187
  %v3272 = vpop.f32.mrf.mxu0
  %v3273 = vadd.f32 %v3208, %v3272
  %v3274 = vpop.f32.mrf.mxu0
  %v3275 = vadd.f32 %v3208, %v3274
  %3276 = vdwg.mxu0
  %v3277 = vadd.f32 %v3268, %v3081
  %v3278 = vadd.f32 %v3270, %v3082
  %v3279 = vadd.f32 %v3273, %v3083
  %v3280 = vadd.f32 %v3275, %v3084
  %s3281 = scalar_lea.vmem %s15, 1
  %v3282 = vld [vmem:[%s3281] sm:$0x1]
  %s3283 = scalar_lea.vmem %s16, 1
  %v3284 = vld [vmem:[%s3283] sm:$0x1]
  %v3285 = vsel %vm70, %v3277, 0.0
  %3286 = vadd.xlane.f32.xlu0 %v3285
  %v3287 = vpop.xlane.xlu0 %3286
  %v3288 = vsel %vm70, %v3278, 0.0
  %3289 = vadd.xlane.f32.xlu0 %v3288
  %v3290 = vpop.xlane.xlu0 %3289
  %v3291 = vsel %vm70, %v3279, 0.0
  %3292 = vadd.xlane.f32.xlu0 %v3291
  %v3293 = vpop.xlane.xlu0 %3292
  %v3294 = vsel %vm70, %v3280, 0.0
  %3295 = vadd.xlane.f32.xlu0 %v3294
  %v3296 = vpop.xlane.xlu0 %3295
  %v3297 = vmul.f32 %v3287, %v89
  %v3298 = vmul.f32 %v3290, %v89
  %v3299 = vmul.f32 %v3293, %v89
  %v3300 = vmul.f32 %v3296, %v89
  %v3301 = vsub.f32 %v3277, %v3297
  %v3302 = vsub.f32 %v3278, %v3298
  %v3303 = vsub.f32 %v3279, %v3299
  %v3304 = vsub.f32 %v3280, %v3300
  %v3305 = vmul.f32 %v3301, %v3301
  %v3306 = vmul.f32 %v3302, %v3302
  %v3307 = vmul.f32 %v3303, %v3303
  %v3308 = vmul.f32 %v3304, %v3304
  %v3309 = vsel %vm70, %v3305, 0.0
  %3310 = vadd.xlane.f32.xlu0 %v3309
  %v3311 = vpop.xlane.xlu0 %3310
  %v3312 = vsel %vm70, %v3306, 0.0
  %3313 = vadd.xlane.f32.xlu0 %v3312
  %v3314 = vpop.xlane.xlu0 %3313
  %v3315 = vsel %vm70, %v3307, 0.0
  %3316 = vadd.xlane.f32.xlu0 %v3315
  %v3317 = vpop.xlane.xlu0 %3316
  %v3318 = vsel %vm70, %v3308, 0.0
  %3319 = vadd.xlane.f32.xlu0 %v3318
  %v3320 = vpop.xlane.xlu0 %3319
  %v3321 = vmul.f32 %v3311, %v89
  %v3322 = vmul.f32 %v3314, %v89
  %v3323 = vmul.f32 %v3317, %v89
  %v3324 = vmul.f32 %v3320, %v89
  %v3325 = vadd.f32 %v3321, 1e-12
  %v3326 = vadd.f32 %v3322, 1e-12
  %v3327 = vadd.f32 %v3323, 1e-12
  %v3328 = vadd.f32 %v3324, 1e-12
  %v3329 = vrsqrt.pop %v3325
  %v3330 = vmul.f32 %v3329, %v3325
  %v3331 = vmul.f32 %v3330, %v3329
  %v3332 = vmul.f32 0.5, %v3331
  %v3333 = vsub.f32 1.5, %v3332
  %v3334 = vmul.f32 %v3329, %v3333
  %vm3335 = vweird.f32 %v3325
  %vm3336 = vweird.f32 %v3329
  %vm3337 = vmor %vm3335, %vm3336
  %v3338 = vsel %vm3337, %v3329, %v3334
  %v3339 = vrsqrt.pop %v3326
  %v3340 = vmul.f32 %v3339, %v3326
  %v3341 = vmul.f32 %v3340, %v3339
  %v3342 = vmul.f32 0.5, %v3341
  %v3343 = vsub.f32 1.5, %v3342
  %v3344 = vmul.f32 %v3339, %v3343
  %vm3345 = vweird.f32 %v3326
  %vm3346 = vweird.f32 %v3339
  %vm3347 = vmor %vm3345, %vm3346
  %v3348 = vsel %vm3347, %v3339, %v3344
  %v3349 = vrsqrt.pop %v3327
  %v3350 = vmul.f32 %v3349, %v3327
  %v3351 = vmul.f32 %v3350, %v3349
  %v3352 = vmul.f32 0.5, %v3351
  %v3353 = vsub.f32 1.5, %v3352
  %v3354 = vmul.f32 %v3349, %v3353
  %vm3355 = vweird.f32 %v3327
  %vm3356 = vweird.f32 %v3349
  %vm3357 = vmor %vm3355, %vm3356
  %v3358 = vsel %vm3357, %v3349, %v3354
  %v3359 = vrsqrt.pop %v3328
  %v3360 = vmul.f32 %v3359, %v3328
  %v3361 = vmul.f32 %v3360, %v3359
  %v3362 = vmul.f32 0.5, %v3361
  %v3363 = vsub.f32 1.5, %v3362
  %v3364 = vmul.f32 %v3359, %v3363
  %vm3365 = vweird.f32 %v3328
  %vm3366 = vweird.f32 %v3359
  %vm3367 = vmor %vm3365, %vm3366
  %v3368 = vsel %vm3367, %v3359, %v3364
  %v3369 = vmul.f32 %v3301, %v3338
  %v3370 = vmul.f32 %v3302, %v3348
  %v3371 = vmul.f32 %v3303, %v3358
  %v3372 = vmul.f32 %v3304, %v3368
  %v3374 = vperm.slane %v3282, 0
  %v3376 = vmul.f32 %v3369, %v3374
  %v3377 = vmul.f32 %v3370, %v3374
  %v3378 = vmul.f32 %v3371, %v3374
  %v3379 = vmul.f32 %v3372, %v3374
  %v3381 = vperm.slane %v3284, 0
  %v3383 = vadd.f32 %v3376, %v3381
  %v3384 = vadd.f32 %v3377, %v3381
  %v3385 = vadd.f32 %v3378, %v3381
  %v3386 = vadd.f32 %v3379, %v3381
  %v3387 = vlaneseq
  %v3388 = vshrl.u32 %v3387, 7
  %v3389 = vld [vmem:[%s2] sm:$0xf]
  %v3390 = vmul.u32 %v3388, 8
  %v3391 = vadd.s32 %v3389, %v3390
  %v3392 = vlaneseq
  %v3393 = vand.u32 %v3392, 127
  %3394 = vset.pattern.permute.xlu0 0
  %3395 = vperm.xlu0 %3394, %v3391
  %v3396 = vpop.permute.xlu0 %3395
  %vm3397 = vcmp.eq.s32.totalorder %v3393, %v3396
  %v3398 = vsel %vm3397, 1, 0
  %v3399 = vcvt.s32.f32 %v3398
  %vm3400 = vcmask 261120
  %v3402 = vsel %vm3400, %v3399, 0
  %3404 = vmatpush.msra.mxu0 0.0
  %3405 = vmatpush.msra.mxu0 0.0
  %3406 = vmatpush.msra.mxu0 0.0
  %3407 = vmatpush.msra.mxu0 0.0
  %3408 = vmatpush.msra.mxu0 0.0
  %3409 = vmatpush.msra.mxu0 0.0
  %3410 = vmatpush.msra.mxu0 0.0
  %3411 = vmatpush.msra.mxu0 0.0
  %3412 = vmatpush.msra.mxu0 0.0
  %3413 = vmatpush.msra.mxu0 0.0
  %3414 = vmatpush.msra.mxu0 0.0
  %3415 = vmatpush.msra.mxu0 0.0
  %3416 = vmatpush.msra.mxu0 %v3386
  %3417 = vmatpush.msra.mxu0 %v3385
  %3418 = vmatpush.msra.mxu0 %v3384
  %3419 = vmatpush.msra.mxu0 %v3383
  %3420 = vmatmul.f32.gmra.mxu0 %v3402
  %v3421 = vpop.f32.mrf.mxu0
  %v3422 = vadd.f32 0.0, %v3421
  %3423 = vdwg.mxu0
  %v3424 = vmul.f32 %v3422, %v3422
  %vm3425 = vcmask 519168
  %v3426 = vsel %vm3425, %v3424, 0.0
  %3427 = vadd.xlane.f32.xlu0 %v3426
  %v3428 = vpop.xlane.xlu0 %3427
  %v3429 = vmax.f32 %v3428, 1e-24
  %v3430 = vrsqrt.pop %v3429
  %v3431 = vmul.f32 %v3430, %v3429
  %v3432 = vmul.f32 %v3431, %v3430
  %v3433 = vmul.f32 0.5, %v3432
  %v3434 = vsub.f32 1.5, %v3433
  %v3435 = vmul.f32 %v3430, %v3434
  %vm3436 = vweird.f32 %v3429
  %vm3437 = vweird.f32 %v3430
  %vm3438 = vmor %vm3436, %vm3437
  %v3439 = vsel %vm3438, %v3430, %v3435
  %v3440 = vmul.f32 %v3422, %v3439
  %3441 = vst.msk [vmem:[%s17] sm:$0xf] %vm3425, %v3440
  // Predicated region
  $region70: #{bert_contrastive_forward.1} parent=0 // pred_check
    _
  $region71: #{bert_contrastive_forward.1} parent=0 // pred_check_branch
    %3443 = sbr.rel (0) target = $region73
  $region72: #{bert_contrastive_forward.1} parent=0 // pred_region
    _
  $region73: #{bert_contrastive_forward.1} parent=0 // pred_fallthru
    _
  // Predicated region
  $region74: #{bert_contrastive_forward.1} parent=0 // pred_check
    _
  $region75: #{bert_contrastive_forward.1} parent=0 // pred_check_branch
    %3445 = sbr.rel (0) target = $region77
  $region76: #{bert_contrastive_forward.1} parent=0 // pred_region
    _
  $region77: #{bert_contrastive_forward.1} parent=0 // pred_fallthru
    _

</llo_original>
